<compile_context>
chip_gen: v7x
topology: tpu7x:2x2x1
jax: 0.10.0
libtpu: 0.0.40
codegen_flags: <defaults>
</compile_context>

<pallas_src>
import functools

import jax
import jax.numpy as jnp
from jax.experimental import pallas as pl
from jax.experimental.pallas import tpu as pltpu


def _round_up(v, m):
    return (v + m - 1) // m * m


def _dense_block_kernel(*refs, H, W, kh, kw, in_ch, growth, n_layers,
                        slab_in, slab_g):
    """Whole DenseBlockNoOutCat forward for one batch sample.

    Ref order:
      x_ref    : (1, in_ch, H*W)         input (channel-major, spatial flat)
      m_ref    : (kh*kw, H*W) f32        precomputed "same"-padding tap masks
      w_refs   : n_layers refs, layer l = (growth, K_l) packed im2col weights
                 with the bias folded in as a column (K_l = slab_in + l*slab_g)
      g_ref    : (n_layers, growth, 1)   GroupNorm gamma
      bt_ref   : (n_layers, growth, 1)   GroupNorm beta
      o_ref    : (1, growth, H*W)        last layer's output
      patch_ref: (K_max, H*W) VMEM       growing dense-concat im2col patch
    """
    x_ref, m_ref = refs[0], refs[1]
    w_refs = refs[2:2 + n_layers]
    g_ref, bt_ref, o_ref, patch_ref = refs[2 + n_layers:2 + n_layers + 4]

    HW = H * W
    ph, pw = kh // 2, kw // 2
    n_taps = kh * kw

    def scatter_group(feat, row_off, slab_rows, extra_rows):
        # Assemble one 8-aligned slab (kh*kw shifted/masked copies of `feat`
        # + extra rows + zero pad) in registers; ONE aligned, unmasked store.
        c = feat.shape[0]
        pieces = []
        for t in range(n_taps):
            ki, kj = t // kw, t % kw
            dy, dx = ki - ph, kj - pw
            shift = (-(dy * W + dx)) % HW
            shifted = feat if shift == 0 else pltpu.roll(feat, shift, 1)
            if not (dy == 0 and dx == 0):
                shifted = shifted * m_ref[t:t + 1, :]   # zero out-of-image taps
            pieces.append(shifted)
        pieces.extend(extra_rows)
        rows = n_taps * c + sum(int(e.shape[0]) for e in extra_rows)
        if slab_rows > rows:
            pieces.append(jnp.zeros((slab_rows - rows, HW), jnp.float32))
        patch_ref[row_off:row_off + slab_rows, :] = jnp.concatenate(pieces, 0)

    # Input slab: taps of x, one constant-1 row (bias folded into the matmul),
    # zero pad up to slab_in.  No full-buffer zero-fill is needed: layer l
    # only ever reads patch[:slab_in + l*slab_g], i.e. rows already written.
    scatter_group(x_ref[0].astype(jnp.float32), 0, slab_in,
                  [jnp.ones((1, HW), jnp.float32)])

    inv_m = 1.0 / float(growth * HW)
    h = None
    for l in range(n_layers):
        k_l = slab_in + l * slab_g
        # Conv2d("same") + bias for layer l as ONE im2col matmul over only the
        # channels that exist so far (K_l rows, all 8-sublane aligned).
        y = jnp.dot(w_refs[l][...], patch_ref[:k_l, :],
                    preferred_element_type=jnp.float32,
                    precision=jax.lax.Precision.HIGHEST)

        # GroupNorm(num_groups=1): single-pass biased stats + fused affine FMA.
        s1 = jnp.sum(y)
        s2 = jnp.sum(y * y)
        mean = s1 * inv_m
        var = s2 * inv_m - mean * mean
        inv_std = jax.lax.rsqrt(var + 1e-5)
        scale = g_ref[l] * inv_std               # (growth, 1)
        offset = bt_ref[l] - mean * scale        # (growth, 1)
        y = y * scale + offset

        # ELU(alpha=1): single EUP transcendental (exp).
        z = jnp.minimum(y, 0.0)
        y = jnp.where(y > 0.0, y, jnp.exp(z) - 1.0)

        if l < n_layers - 1:
            scatter_group(y, slab_in + l * slab_g, slab_g, [])   # dense concat
        h = y

    o_ref[0] = h.astype(o_ref.dtype)             # lane-dense (HW-wide) store


def _tap_masks(H, W, kh, kw):
    """(kh*kw, H*W) f32 border-validity masks for 'same' zero padding."""
    ph, pw = kh // 2, kw // 2
    pos = jnp.arange(H * W, dtype=jnp.int32)
    row, col = pos // W, pos % W
    ms = []
    for ki in range(kh):
        for kj in range(kw):
            dy, dx = ki - ph, kj - pw
            ms.append((row + dy >= 0) & (row + dy < H) &
                      (col + dx >= 0) & (col + dx < W))
    return jnp.stack(ms, axis=0).astype(jnp.float32)


def _pack_layer_weights(params, in_ch, growth, kh, kw, slab_in, slab_g):
    """Per-layer (growth, K_l) im2col weight matrices (bias column folded in),
    column layout matching the kernel's patch-slab layout, plus gamma/beta."""
    n_taps = kh * kw
    w_list = []
    for l, (w, b, _, _) in enumerate(params):
        cols = []
        w0 = jnp.transpose(w[:, :in_ch], (0, 2, 3, 1))        # (G, kh, kw, Cin)
        cols.append(w0.reshape(growth, n_taps * in_ch))        # col = t*Cin + c
        cols.append(b[:, None])                                # bias column
        pad0 = slab_in - n_taps * in_ch - 1
        if pad0:
            cols.append(jnp.zeros((growth, pad0), jnp.float32))
        for g in range(1, l + 1):
            start = in_ch + (g - 1) * growth
            wg = jnp.transpose(w[:, start:start + growth], (0, 2, 3, 1))
            cols.append(wg.reshape(growth, n_taps * growth))
            padg = slab_g - n_taps * growth
            if padg:
                cols.append(jnp.zeros((growth, padg), jnp.float32))
        w_list.append(jnp.concatenate(cols, axis=1).astype(jnp.float32))
    gamma = jnp.stack([p[2] for p in params])[:, :, None].astype(jnp.float32)
    beta = jnp.stack([p[3] for p in params])[:, :, None].astype(jnp.float32)
    return w_list, gamma, beta


@jax.jit
def dense_block_no_out_cat(x_nchw, params):
    """Forward pass of DenseBlockNoOutCat. Input/output are NCHW like torch."""
    N, C, H, W = x_nchw.shape
    n_layers = len(params)
    growth, _, kh, kw = params[0][0].shape
    HW = H * W
    n_taps = kh * kw

    slab_in = _round_up(n_taps * C + 1, 8)     # +1 row for the folded bias
    slab_g = _round_up(n_taps * growth, 8)
    k_max = slab_in + (n_layers - 1) * slab_g  # patch rows (160KB f32 here)

    w_list, gamma, beta = _pack_layer_weights(params, C, growth, kh, kw,
                                              slab_in, slab_g)
    masks = _tap_masks(H, W, kh, kw)
    x_flat = x_nchw.reshape(N, C, HW).astype(jnp.float32)

    kernel = functools.partial(
        _dense_block_kernel, H=H, W=W, kh=kh, kw=kw, in_ch=C, growth=growth,
        n_layers=n_layers, slab_in=slab_in, slab_g=slab_g)

    const2 = lambda n: (0, 0)
    const3 = lambda n: (0, 0, 0)
    in_specs = [
        pl.BlockSpec((1, C, HW), lambda n: (n, 0, 0)),
        pl.BlockSpec((n_taps, HW), const2),
    ]
    in_specs += [pl.BlockSpec((growth, slab_in + l * slab_g), const2)
                 for l in range(n_layers)]
    in_specs += [
        pl.BlockSpec((n_layers, growth, 1), const3),
        pl.BlockSpec((n_layers, growth, 1), const3),
    ]

    out = pl.pallas_call(
        kernel,
        out_shape=jax.ShapeDtypeStruct((N, growth, HW), x_nchw.dtype),
        grid_spec=pltpu.PrefetchScalarGridSpec(
            num_scalar_prefetch=0,
            grid=(N,),
            in_specs=in_specs,
            out_specs=pl.BlockSpec((1, growth, HW), lambda n: (n, 0, 0)),
            scratch_shapes=[pltpu.VMEM((k_max, HW), jnp.float32)],
        ),
        compiler_params=pltpu.CompilerParams(
            dimension_semantics=("parallel",)),
    )(x_flat, masks, *w_list, gamma, beta)

    # (N, G, H*W) -> (N, G, H, W) == NCHW, matching torch.
    return out.reshape(N, growth, H, W)
    # TODO(synk): memory_efficient=1 (torch.utils.checkpoint) is a training-time
    # rematerialization knob with no forward-semantics effect; not modeled.
    # TODO(synk): for large N, widen the lane axis to B_tile*H*W per grid step
    # (needs per-sample segment reductions for GroupNorm); at N=2 that would
    # collapse the grid to 1 and idle one v7x TensorCore, so B_tile=1 here.
    # TODO(synk): optional bf16 matmul operands (v6e/v7x MXU) skipped to stay
    # comfortably inside the 1e-3 tolerance vs. the HIGHEST-precision reference.


def init_dense_block_params(key, in_channels, growth_rate, kernel_size,
                            n_layers):
    """Synthetic params in torch layouts: conv w (G, Cin, kh, kw), bias zero
    (ConvBNReLUBlock.init_weights), GroupNorm affine defaults (gamma=1, beta=0)."""
    kh, kw = kernel_size
    params = []
    sum_c = in_channels
    for _ in range(n_layers):
        key, k1 = jax.random.split(key)
        w = jax.random.normal(k1, (growth_rate, sum_c, kh, kw),
                              jnp.float32) * 0.1
        b = jnp.zeros((growth_rate,), jnp.float32)
        gamma = jnp.ones((growth_rate,), jnp.float32)
        beta = jnp.zeros((growth_rate,), jnp.float32)
        params.append((w, b, gamma, beta))
        sum_c += growth_rate
    return params


def _reference(x_nchw, params):
    """Pure-JAX reference mirroring the PyTorch module's forward."""
    feats = x_nchw
    h = None
    for (w, b, gamma, beta) in params:
        kh, kw = w.shape[2], w.shape[3]
        y = jax.lax.conv_general_dilated(
            feats, w, window_strides=(1, 1),
            padding=((kh // 2, kh // 2), (kw // 2, kw // 2)),
            dimension_numbers=("NCHW", "OIHW", "NCHW"),
            precision=jax.lax.Precision.HIGHEST)
        y = y + b[None, :, None, None]
        mean = jnp.mean(y, axis=(1, 2, 3), keepdims=True)
        var = jnp.mean((y - mean) ** 2, axis=(1, 2, 3), keepdims=True)
        y = (y - mean) * jax.lax.rsqrt(var + 1e-5)
        y = y * gamma[None, :, None, None] + beta[None, :, None, None]
        y = jnp.where(y > 0, y, jnp.expm1(jnp.minimum(y, 0.0)))
        h = y
        feats = jnp.concatenate([feats, y], axis=1)
    return h


if __name__ == "__main__":
    # Small, module-consistent shapes: batch=2, in_channels=4, H=W=16,
    # growth_rate=4, kernel_size=(3,3), n_layers=4 -> output (2, 4, 16, 16).
    N, C, H, W = 2, 4, 16, 16
    growth_rate = 4
    kernel_size = (3, 3)
    n_layers = 4

    key = jax.random.PRNGKey(0)
    key, kx = jax.random.split(key)
    x = jax.random.normal(kx, (N, C, H, W), jnp.float32)
    params = init_dense_block_params(key, C, growth_rate, kernel_size,
                                     n_layers)

    out = jax.block_until_ready(dense_block_no_out_cat(x, params))
    assert out.shape == (N, growth_rate, H, W), out.shape
    assert bool(jnp.all(jnp.isfinite(out)))

    ref = jax.block_until_ready(_reference(x, params))
    max_err = float(jnp.max(jnp.abs(out - ref)))
    assert max_err < 1e-3, f"max |pallas - reference| = {max_err}"

    print("KERNEL_OK")
</pallas_src>

<mosaic_0001>
module attributes {stable_mosaic.version = 11 : i64} {
  func.func @_dense_block_kernel(%arg0: i32, %arg1: memref<1x4x256xf32, #tpu.memory_space<vmem>>, %arg2: memref<9x256xf32, #tpu.memory_space<vmem>>, %arg3: memref<4x40xf32, #tpu.memory_space<vmem>>, %arg4: memref<4x80xf32, #tpu.memory_space<vmem>>, %arg5: memref<4x120xf32, #tpu.memory_space<vmem>>, %arg6: memref<4x160xf32, #tpu.memory_space<vmem>>, %arg7: memref<4x4x1xf32, #tpu.memory_space<vmem>>, %arg8: memref<4x4x1xf32, #tpu.memory_space<vmem>>, %arg9: memref<1x4x256xf32, #tpu.memory_space<vmem>>, %arg10: memref<160x256xf32, #tpu.memory_space<vmem>>) attributes {dimension_semantics = [#tpu.dimension_semantics<parallel>], iteration_bounds = array<i64: 2>, scalar_prefetch = 0 : i64, scratch_operands = 1 : i64, tpu.core_type = #tpu.core_type<tc>, window_params = [{transform_indices = @transform_0, window_bounds = array<i64: 1, 4, 256>}, {pipeline_mode = #tpu.pipeline_mode<synchronous>, transform_indices = @transform_1, window_bounds = array<i64: 9, 256>}, {pipeline_mode = #tpu.pipeline_mode<synchronous>, transform_indices = @transform_2, window_bounds = array<i64: 4, 40>}, {pipeline_mode = #tpu.pipeline_mode<synchronous>, transform_indices = @transform_3, window_bounds = array<i64: 4, 80>}, {pipeline_mode = #tpu.pipeline_mode<synchronous>, transform_indices = @transform_4, window_bounds = array<i64: 4, 120>}, {pipeline_mode = #tpu.pipeline_mode<synchronous>, transform_indices = @transform_5, window_bounds = array<i64: 4, 160>}, {pipeline_mode = #tpu.pipeline_mode<synchronous>, transform_indices = @transform_6, window_bounds = array<i64: 4, 4, 1>}, {pipeline_mode = #tpu.pipeline_mode<synchronous>, transform_indices = @transform_7, window_bounds = array<i64: 4, 4, 1>}, {transform_indices = @transform_8, window_bounds = array<i64: 1, 4, 256>}]} {
    %c0 = arith.constant 0 : index
    %c0_0 = arith.constant 0 : index
    %c0_1 = arith.constant 0 : index
    %0 = vector.load %arg1[%c0, %c0_0, %c0_1] : memref<1x4x256xf32, #tpu.memory_space<vmem>>, vector<1x4x256xf32>
    %1 = vector.shape_cast %0 : vector<1x4x256xf32> to vector<4x256xf32>
    %cst = arith.constant 1.000000e+00 : f32
    %2 = vector.broadcast %cst : f32 to vector<1x256xf32>
    %c17_i32 = arith.constant 17 : i32
    %3 = tpu.dynamic_rotate %1 by %c17_i32 dim 1 : vector<4x256xf32>, i32 -> vector<4x256xf32>
    %c0_2 = arith.constant 0 : index
    %c0_3 = arith.constant 0 : index
    %4 = vector.load %arg2[%c0_2, %c0_3] : memref<9x256xf32, #tpu.memory_space<vmem>>, vector<1x256xf32>
    %5 = vector.broadcast %4 : vector<1x256xf32> to vector<4x256xf32>
    %6 = arith.mulf %3, %5 : vector<4x256xf32>
    %c16_i32 = arith.constant 16 : i32
    %7 = tpu.dynamic_rotate %1 by %c16_i32 dim 1 : vector<4x256xf32>, i32 -> vector<4x256xf32>
    %c1 = arith.constant 1 : index
    %c0_4 = arith.constant 0 : index
    %8 = vector.load %arg2[%c1, %c0_4] : memref<9x256xf32, #tpu.memory_space<vmem>>, vector<1x256xf32>
    %9 = vector.broadcast %8 : vector<1x256xf32> to vector<4x256xf32>
    %10 = arith.mulf %7, %9 : vector<4x256xf32>
    %c15_i32 = arith.constant 15 : i32
    %11 = tpu.dynamic_rotate %1 by %c15_i32 dim 1 : vector<4x256xf32>, i32 -> vector<4x256xf32>
    %c2 = arith.constant 2 : index
    %c0_5 = arith.constant 0 : index
    %12 = vector.load %arg2[%c2, %c0_5] : memref<9x256xf32, #tpu.memory_space<vmem>>, vector<1x256xf32>
    %13 = vector.broadcast %12 : vector<1x256xf32> to vector<4x256xf32>
    %14 = arith.mulf %11, %13 : vector<4x256xf32>
    %c1_i32 = arith.constant 1 : i32
    %15 = tpu.dynamic_rotate %1 by %c1_i32 dim 1 : vector<4x256xf32>, i32 -> vector<4x256xf32>
    %c3 = arith.constant 3 : index
    %c0_6 = arith.constant 0 : index
    %16 = vector.load %arg2[%c3, %c0_6] : memref<9x256xf32, #tpu.memory_space<vmem>>, vector<1x256xf32>
    %17 = vector.broadcast %16 : vector<1x256xf32> to vector<4x256xf32>
    %18 = arith.mulf %15, %17 : vector<4x256xf32>
    %c255_i32 = arith.constant 255 : i32
    %19 = tpu.dynamic_rotate %1 by %c255_i32 dim 1 : vector<4x256xf32>, i32 -> vector<4x256xf32>
    %c5 = arith.constant 5 : index
    %c0_7 = arith.constant 0 : index
    %20 = vector.load %arg2[%c5, %c0_7] : memref<9x256xf32, #tpu.memory_space<vmem>>, vector<1x256xf32>
    %21 = vector.broadcast %20 : vector<1x256xf32> to vector<4x256xf32>
    %22 = arith.mulf %19, %21 : vector<4x256xf32>
    %c241_i32 = arith.constant 241 : i32
    %23 = tpu.dynamic_rotate %1 by %c241_i32 dim 1 : vector<4x256xf32>, i32 -> vector<4x256xf32>
    %c6 = arith.constant 6 : index
    %c0_8 = arith.constant 0 : index
    %24 = vector.load %arg2[%c6, %c0_8] : memref<9x256xf32, #tpu.memory_space<vmem>>, vector<1x256xf32>
    %25 = vector.broadcast %24 : vector<1x256xf32> to vector<4x256xf32>
    %26 = arith.mulf %23, %25 : vector<4x256xf32>
    %c240_i32 = arith.constant 240 : i32
    %27 = tpu.dynamic_rotate %1 by %c240_i32 dim 1 : vector<4x256xf32>, i32 -> vector<4x256xf32>
    %c7 = arith.constant 7 : index
    %c0_9 = arith.constant 0 : index
    %28 = vector.load %arg2[%c7, %c0_9] : memref<9x256xf32, #tpu.memory_space<vmem>>, vector<1x256xf32>
    %29 = vector.broadcast %28 : vector<1x256xf32> to vector<4x256xf32>
    %30 = arith.mulf %27, %29 : vector<4x256xf32>
    %c239_i32 = arith.constant 239 : i32
    %31 = tpu.dynamic_rotate %1 by %c239_i32 dim 1 : vector<4x256xf32>, i32 -> vector<4x256xf32>
    %c8 = arith.constant 8 : index
    %c0_10 = arith.constant 0 : index
    %32 = vector.load %arg2[%c8, %c0_10] : memref<9x256xf32, #tpu.memory_space<vmem>>, vector<1x256xf32>
    %33 = vector.broadcast %32 : vector<1x256xf32> to vector<4x256xf32>
    %34 = arith.mulf %31, %33 : vector<4x256xf32>
    %cst_11 = arith.constant 0.000000e+00 : f32
    %35 = vector.broadcast %cst_11 : f32 to vector<3x256xf32>
    %36 = tpu.concatenate %6, %10, %14, %18, %1, %22, %26, %30, %34, %2, %35 in 0 : vector<4x256xf32>, vector<4x256xf32>, vector<4x256xf32>, vector<4x256xf32>, vector<4x256xf32>, vector<4x256xf32>, vector<4x256xf32>, vector<4x256xf32>, vector<4x256xf32>, vector<1x256xf32>, vector<3x256xf32> -> vector<40x256xf32>
    %c0_12 = arith.constant 0 : index
    %c0_13 = arith.constant 0 : index
    %37 = vector.load %arg10[%c0_12, %c0_13] : memref<160x256xf32, #tpu.memory_space<vmem>>, vector<40x256xf32>
    tpu.vector_store %arg10[%c0_12, %c0_13], %36 {strides = array<i32>} : memref<160x256xf32, #tpu.memory_space<vmem>>, vector<40x256xf32>,
    %c0_14 = arith.constant 0 : index
    %c0_15 = arith.constant 0 : index
    %38 = vector.load %arg3[%c0_14, %c0_15] : memref<4x40xf32, #tpu.memory_space<vmem>>, vector<4x40xf32>
    %c0_16 = arith.constant 0 : index
    %c0_17 = arith.constant 0 : index
    %39 = vector.load %arg10[%c0_16, %c0_17] : memref<160x256xf32, #tpu.memory_space<vmem>>, vector<40x256xf32>
    %cst_18 = arith.constant dense<0.000000e+00> : vector<4x256xf32>
    %40 = tpu.matmul %38, %39, %cst_18 {dimension_numbers = #tpu.dot_dimension_numbers<[1], [0], [0], [1], [0, 0, 1, 1], [], []>, precision = #tpu.contract_precision<fp32>} : vector<4x40xf32>, vector<40x256xf32>, vector<4x256xf32> -> vector<4x256xf32>
    %41 = vector.shape_cast %40 : vector<4x256xf32> to vector<1x4x256xf32>
    %cst_19 = arith.constant dense<0.000000e+00> : vector<1xf32>
    %42 = vector.multi_reduction <add>, %41, %cst_19 [1, 2] : vector<1x4x256xf32> to vector<1xf32>
    %43 = vector.shape_cast %42 : vector<1xf32> to vector<1x1x1xf32>
    %44 = vector.extract %43[0, 0, 0] : f32 from vector<1x1x1xf32>
    %45 = arith.mulf %40, %40 : vector<4x256xf32>
    %46 = vector.shape_cast %45 : vector<4x256xf32> to vector<1x4x256xf32>
    %cst_20 = arith.constant dense<0.000000e+00> : vector<1xf32>
    %47 = vector.multi_reduction <add>, %46, %cst_20 [1, 2] : vector<1x4x256xf32> to vector<1xf32>
    %48 = vector.shape_cast %47 : vector<1xf32> to vector<1x1x1xf32>
    %49 = vector.extract %48[0, 0, 0] : f32 from vector<1x1x1xf32>
    %cst_21 = arith.constant 9.765625E-4 : f32
    %50 = arith.mulf %44, %cst_21 : f32
    %cst_22 = arith.constant 9.765625E-4 : f32
    %51 = arith.mulf %49, %cst_22 : f32
    %52 = arith.mulf %50, %50 : f32
    %53 = arith.subf %51, %52 : f32
    %cst_23 = arith.constant 9.99999974E-6 : f32
    %54 = arith.addf %53, %cst_23 : f32
    %55 = math.rsqrt %54 : f32
    %c0_24 = arith.constant 0 : index
    %c0_25 = arith.constant 0 : index
    %c0_26 = arith.constant 0 : index
    %56 = vector.load %arg7[%c0_24, %c0_25, %c0_26] : memref<4x4x1xf32, #tpu.memory_space<vmem>>, vector<1x4x1xf32>
    %57 = vector.shape_cast %56 : vector<1x4x1xf32> to vector<4x1xf32>
    %58 = vector.broadcast %55 : f32 to vector<4x1xf32>
    %59 = arith.mulf %57, %58 : vector<4x1xf32>
    %c0_27 = arith.constant 0 : index
    %c0_28 = arith.constant 0 : index
    %c0_29 = arith.constant 0 : index
    %60 = vector.load %arg8[%c0_27, %c0_28, %c0_29] : memref<4x4x1xf32, #tpu.memory_space<vmem>>, vector<1x4x1xf32>
    %61 = vector.shape_cast %60 : vector<1x4x1xf32> to vector<4x1xf32>
    %62 = vector.broadcast %50 : f32 to vector<4x1xf32>
    %63 = arith.mulf %62, %59 : vector<4x1xf32>
    %64 = arith.subf %61, %63 : vector<4x1xf32>
    %65 = vector.broadcast %59 : vector<4x1xf32> to vector<4x256xf32>
    %66 = arith.mulf %40, %65 : vector<4x256xf32>
    %67 = vector.broadcast %64 : vector<4x1xf32> to vector<4x256xf32>
    %68 = arith.addf %66, %67 : vector<4x256xf32>
    %cst_30 = arith.constant 0.000000e+00 : f32
    %69 = vector.broadcast %cst_30 : f32 to vector<4x256xf32>
    %70 = arith.minimumf %68, %69 : vector<4x256xf32>
    %cst_31 = arith.constant 0.000000e+00 : f32
    %71 = vector.broadcast %cst_31 : f32 to vector<4x256xf32>
    %72 = arith.cmpf ogt, %68, %71 : vector<4x256xf32>
    %73 = math.exp %70 : vector<4x256xf32>
    %cst_32 = arith.constant 1.000000e+00 : f32
    %74 = vector.broadcast %cst_32 : f32 to vector<4x256xf32>
    %75 = arith.subf %73, %74 : vector<4x256xf32>
    %76 = arith.select %72, %68, %75 : vector<4x256xi1>, vector<4x256xf32>
    %c17_i32_33 = arith.constant 17 : i32
    %77 = tpu.dynamic_rotate %76 by %c17_i32_33 dim 1 : vector<4x256xf32>, i32 -> vector<4x256xf32>
    %c0_34 = arith.constant 0 : index
    %c0_35 = arith.constant 0 : index
    %78 = vector.load %arg2[%c0_34, %c0_35] : memref<9x256xf32, #tpu.memory_space<vmem>>, vector<1x256xf32>
    %79 = vector.broadcast %78 : vector<1x256xf32> to vector<4x256xf32>
    %80 = arith.mulf %77, %79 : vector<4x256xf32>
    %c16_i32_36 = arith.constant 16 : i32
    %81 = tpu.dynamic_rotate %76 by %c16_i32_36 dim 1 : vector<4x256xf32>, i32 -> vector<4x256xf32>
    %c1_37 = arith.constant 1 : index
    %c0_38 = arith.constant 0 : index
    %82 = vector.load %arg2[%c1_37, %c0_38] : memref<9x256xf32, #tpu.memory_space<vmem>>, vector<1x256xf32>
    %83 = vector.broadcast %82 : vector<1x256xf32> to vector<4x256xf32>
    %84 = arith.mulf %81, %83 : vector<4x256xf32>
    %c15_i32_39 = arith.constant 15 : i32
    %85 = tpu.dynamic_rotate %76 by %c15_i32_39 dim 1 : vector<4x256xf32>, i32 -> vector<4x256xf32>
    %c2_40 = arith.constant 2 : index
    %c0_41 = arith.constant 0 : index
    %86 = vector.load %arg2[%c2_40, %c0_41] : memref<9x256xf32, #tpu.memory_space<vmem>>, vector<1x256xf32>
    %87 = vector.broadcast %86 : vector<1x256xf32> to vector<4x256xf32>
    %88 = arith.mulf %85, %87 : vector<4x256xf32>
    %c1_i32_42 = arith.constant 1 : i32
    %89 = tpu.dynamic_rotate %76 by %c1_i32_42 dim 1 : vector<4x256xf32>, i32 -> vector<4x256xf32>
    %c3_43 = arith.constant 3 : index
    %c0_44 = arith.constant 0 : index
    %90 = vector.load %arg2[%c3_43, %c0_44] : memref<9x256xf32, #tpu.memory_space<vmem>>, vector<1x256xf32>
    %91 = vector.broadcast %90 : vector<1x256xf32> to vector<4x256xf32>
    %92 = arith.mulf %89, %91 : vector<4x256xf32>
    %c255_i32_45 = arith.constant 255 : i32
    %93 = tpu.dynamic_rotate %76 by %c255_i32_45 dim 1 : vector<4x256xf32>, i32 -> vector<4x256xf32>
    %c5_46 = arith.constant 5 : index
    %c0_47 = arith.constant 0 : index
    %94 = vector.load %arg2[%c5_46, %c0_47] : memref<9x256xf32, #tpu.memory_space<vmem>>, vector<1x256xf32>
    %95 = vector.broadcast %94 : vector<1x256xf32> to vector<4x256xf32>
    %96 = arith.mulf %93, %95 : vector<4x256xf32>
    %c241_i32_48 = arith.constant 241 : i32
    %97 = tpu.dynamic_rotate %76 by %c241_i32_48 dim 1 : vector<4x256xf32>, i32 -> vector<4x256xf32>
    %c6_49 = arith.constant 6 : index
    %c0_50 = arith.constant 0 : index
    %98 = vector.load %arg2[%c6_49, %c0_50] : memref<9x256xf32, #tpu.memory_space<vmem>>, vector<1x256xf32>
    %99 = vector.broadcast %98 : vector<1x256xf32> to vector<4x256xf32>
    %100 = arith.mulf %97, %99 : vector<4x256xf32>
    %c240_i32_51 = arith.constant 240 : i32
    %101 = tpu.dynamic_rotate %76 by %c240_i32_51 dim 1 : vector<4x256xf32>, i32 -> vector<4x256xf32>
    %c7_52 = arith.constant 7 : index
    %c0_53 = arith.constant 0 : index
    %102 = vector.load %arg2[%c7_52, %c0_53] : memref<9x256xf32, #tpu.memory_space<vmem>>, vector<1x256xf32>
    %103 = vector.broadcast %102 : vector<1x256xf32> to vector<4x256xf32>
    %104 = arith.mulf %101, %103 : vector<4x256xf32>
    %c239_i32_54 = arith.constant 239 : i32
    %105 = tpu.dynamic_rotate %76 by %c239_i32_54 dim 1 : vector<4x256xf32>, i32 -> vector<4x256xf32>
    %c8_55 = arith.constant 8 : index
    %c0_56 = arith.constant 0 : index
    %106 = vector.load %arg2[%c8_55, %c0_56] : memref<9x256xf32, #tpu.memory_space<vmem>>, vector<1x256xf32>
    %107 = vector.broadcast %106 : vector<1x256xf32> to vector<4x256xf32>
    %108 = arith.mulf %105, %107 : vector<4x256xf32>
    %cst_57 = arith.constant 0.000000e+00 : f32
    %109 = vector.broadcast %cst_57 : f32 to vector<4x256xf32>
    %110 = tpu.concatenate %80, %84, %88, %92, %76, %96, %100, %104, %108, %109 in 0 : vector<4x256xf32>, vector<4x256xf32>, vector<4x256xf32>, vector<4x256xf32>, vector<4x256xf32>, vector<4x256xf32>, vector<4x256xf32>, vector<4x256xf32>, vector<4x256xf32>, vector<4x256xf32> -> vector<40x256xf32>
    %c40 = arith.constant 40 : index
    %c0_58 = arith.constant 0 : index
    %111 = vector.load %arg10[%c40, %c0_58] : memref<160x256xf32, #tpu.memory_space<vmem>>, vector<40x256xf32>
    tpu.vector_store %arg10[%c40, %c0_58], %110 {strides = array<i32>} : memref<160x256xf32, #tpu.memory_space<vmem>>, vector<40x256xf32>,
    %c0_59 = arith.constant 0 : index
    %c0_60 = arith.constant 0 : index
    %112 = vector.load %arg4[%c0_59, %c0_60] : memref<4x80xf32, #tpu.memory_space<vmem>>, vector<4x80xf32>
    %c0_61 = arith.constant 0 : index
    %c0_62 = arith.constant 0 : index
    %113 = vector.load %arg10[%c0_61, %c0_62] : memref<160x256xf32, #tpu.memory_space<vmem>>, vector<80x256xf32>
    %cst_63 = arith.constant dense<0.000000e+00> : vector<4x256xf32>
    %114 = tpu.matmul %112, %113, %cst_63 {dimension_numbers = #tpu.dot_dimension_numbers<[1], [0], [0], [1], [0, 0, 1, 1], [], []>, precision = #tpu.contract_precision<fp32>} : vector<4x80xf32>, vector<80x256xf32>, vector<4x256xf32> -> vector<4x256xf32>
    %115 = vector.shape_cast %114 : vector<4x256xf32> to vector<1x4x256xf32>
    %cst_64 = arith.constant dense<0.000000e+00> : vector<1xf32>
    %116 = vector.multi_reduction <add>, %115, %cst_64 [1, 2] : vector<1x4x256xf32> to vector<1xf32>
    %117 = vector.shape_cast %116 : vector<1xf32> to vector<1x1x1xf32>
    %118 = vector.extract %117[0, 0, 0] : f32 from vector<1x1x1xf32>
    %119 = arith.mulf %114, %114 : vector<4x256xf32>
    %120 = vector.shape_cast %119 : vector<4x256xf32> to vector<1x4x256xf32>
    %cst_65 = arith.constant dense<0.000000e+00> : vector<1xf32>
    %121 = vector.multi_reduction <add>, %120, %cst_65 [1, 2] : vector<1x4x256xf32> to vector<1xf32>
    %122 = vector.shape_cast %121 : vector<1xf32> to vector<1x1x1xf32>
    %123 = vector.extract %122[0, 0, 0] : f32 from vector<1x1x1xf32>
    %cst_66 = arith.constant 9.765625E-4 : f32
    %124 = arith.mulf %118, %cst_66 : f32
    %cst_67 = arith.constant 9.765625E-4 : f32
    %125 = arith.mulf %123, %cst_67 : f32
    %126 = arith.mulf %124, %124 : f32
    %127 = arith.subf %125, %126 : f32
    %cst_68 = arith.constant 9.99999974E-6 : f32
    %128 = arith.addf %127, %cst_68 : f32
    %129 = math.rsqrt %128 : f32
    %c1_69 = arith.constant 1 : index
    %c0_70 = arith.constant 0 : index
    %c0_71 = arith.constant 0 : index
    %130 = vector.load %arg7[%c1_69, %c0_70, %c0_71] : memref<4x4x1xf32, #tpu.memory_space<vmem>>, vector<1x4x1xf32>
    %131 = vector.shape_cast %130 : vector<1x4x1xf32> to vector<4x1xf32>
    %132 = vector.broadcast %129 : f32 to vector<4x1xf32>
    %133 = arith.mulf %131, %132 : vector<4x1xf32>
    %c1_72 = arith.constant 1 : index
    %c0_73 = arith.constant 0 : index
    %c0_74 = arith.constant 0 : index
    %134 = vector.load %arg8[%c1_72, %c0_73, %c0_74] : memref<4x4x1xf32, #tpu.memory_space<vmem>>, vector<1x4x1xf32>
    %135 = vector.shape_cast %134 : vector<1x4x1xf32> to vector<4x1xf32>
    %136 = vector.broadcast %124 : f32 to vector<4x1xf32>
    %137 = arith.mulf %136, %133 : vector<4x1xf32>
    %138 = arith.subf %135, %137 : vector<4x1xf32>
    %139 = vector.broadcast %133 : vector<4x1xf32> to vector<4x256xf32>
    %140 = arith.mulf %114, %139 : vector<4x256xf32>
    %141 = vector.broadcast %138 : vector<4x1xf32> to vector<4x256xf32>
    %142 = arith.addf %140, %141 : vector<4x256xf32>
    %cst_75 = arith.constant 0.000000e+00 : f32
    %143 = vector.broadcast %cst_75 : f32 to vector<4x256xf32>
    %144 = arith.minimumf %142, %143 : vector<4x256xf32>
    %cst_76 = arith.constant 0.000000e+00 : f32
    %145 = vector.broadcast %cst_76 : f32 to vector<4x256xf32>
    %146 = arith.cmpf ogt, %142, %145 : vector<4x256xf32>
    %147 = math.exp %144 : vector<4x256xf32>
    %cst_77 = arith.constant 1.000000e+00 : f32
    %148 = vector.broadcast %cst_77 : f32 to vector<4x256xf32>
    %149 = arith.subf %147, %148 : vector<4x256xf32>
    %150 = arith.select %146, %142, %149 : vector<4x256xi1>, vector<4x256xf32>
    %c17_i32_78 = arith.constant 17 : i32
    %151 = tpu.dynamic_rotate %150 by %c17_i32_78 dim 1 : vector<4x256xf32>, i32 -> vector<4x256xf32>
    %c0_79 = arith.constant 0 : index
    %c0_80 = arith.constant 0 : index
    %152 = vector.load %arg2[%c0_79, %c0_80] : memref<9x256xf32, #tpu.memory_space<vmem>>, vector<1x256xf32>
    %153 = vector.broadcast %152 : vector<1x256xf32> to vector<4x256xf32>
    %154 = arith.mulf %151, %153 : vector<4x256xf32>
    %c16_i32_81 = arith.constant 16 : i32
    %155 = tpu.dynamic_rotate %150 by %c16_i32_81 dim 1 : vector<4x256xf32>, i32 -> vector<4x256xf32>
    %c1_82 = arith.constant 1 : index
    %c0_83 = arith.constant 0 : index
    %156 = vector.load %arg2[%c1_82, %c0_83] : memref<9x256xf32, #tpu.memory_space<vmem>>, vector<1x256xf32>
    %157 = vector.broadcast %156 : vector<1x256xf32> to vector<4x256xf32>
    %158 = arith.mulf %155, %157 : vector<4x256xf32>
    %c15_i32_84 = arith.constant 15 : i32
    %159 = tpu.dynamic_rotate %150 by %c15_i32_84 dim 1 : vector<4x256xf32>, i32 -> vector<4x256xf32>
    %c2_85 = arith.constant 2 : index
    %c0_86 = arith.constant 0 : index
    %160 = vector.load %arg2[%c2_85, %c0_86] : memref<9x256xf32, #tpu.memory_space<vmem>>, vector<1x256xf32>
    %161 = vector.broadcast %160 : vector<1x256xf32> to vector<4x256xf32>
    %162 = arith.mulf %159, %161 : vector<4x256xf32>
    %c1_i32_87 = arith.constant 1 : i32
    %163 = tpu.dynamic_rotate %150 by %c1_i32_87 dim 1 : vector<4x256xf32>, i32 -> vector<4x256xf32>
    %c3_88 = arith.constant 3 : index
    %c0_89 = arith.constant 0 : index
    %164 = vector.load %arg2[%c3_88, %c0_89] : memref<9x256xf32, #tpu.memory_space<vmem>>, vector<1x256xf32>
    %165 = vector.broadcast %164 : vector<1x256xf32> to vector<4x256xf32>
    %166 = arith.mulf %163, %165 : vector<4x256xf32>
    %c255_i32_90 = arith.constant 255 : i32
    %167 = tpu.dynamic_rotate %150 by %c255_i32_90 dim 1 : vector<4x256xf32>, i32 -> vector<4x256xf32>
    %c5_91 = arith.constant 5 : index
    %c0_92 = arith.constant 0 : index
    %168 = vector.load %arg2[%c5_91, %c0_92] : memref<9x256xf32, #tpu.memory_space<vmem>>, vector<1x256xf32>
    %169 = vector.broadcast %168 : vector<1x256xf32> to vector<4x256xf32>
    %170 = arith.mulf %167, %169 : vector<4x256xf32>
    %c241_i32_93 = arith.constant 241 : i32
    %171 = tpu.dynamic_rotate %150 by %c241_i32_93 dim 1 : vector<4x256xf32>, i32 -> vector<4x256xf32>
    %c6_94 = arith.constant 6 : index
    %c0_95 = arith.constant 0 : index
    %172 = vector.load %arg2[%c6_94, %c0_95] : memref<9x256xf32, #tpu.memory_space<vmem>>, vector<1x256xf32>
    %173 = vector.broadcast %172 : vector<1x256xf32> to vector<4x256xf32>
    %174 = arith.mulf %171, %173 : vector<4x256xf32>
    %c240_i32_96 = arith.constant 240 : i32
    %175 = tpu.dynamic_rotate %150 by %c240_i32_96 dim 1 : vector<4x256xf32>, i32 -> vector<4x256xf32>
    %c7_97 = arith.constant 7 : index
    %c0_98 = arith.constant 0 : index
    %176 = vector.load %arg2[%c7_97, %c0_98] : memref<9x256xf32, #tpu.memory_space<vmem>>, vector<1x256xf32>
    %177 = vector.broadcast %176 : vector<1x256xf32> to vector<4x256xf32>
    %178 = arith.mulf %175, %177 : vector<4x256xf32>
    %c239_i32_99 = arith.constant 239 : i32
    %179 = tpu.dynamic_rotate %150 by %c239_i32_99 dim 1 : vector<4x256xf32>, i32 -> vector<4x256xf32>
    %c8_100 = arith.constant 8 : index
    %c0_101 = arith.constant 0 : index
    %180 = vector.load %arg2[%c8_100, %c0_101] : memref<9x256xf32, #tpu.memory_space<vmem>>, vector<1x256xf32>
    %181 = vector.broadcast %180 : vector<1x256xf32> to vector<4x256xf32>
    %182 = arith.mulf %179, %181 : vector<4x256xf32>
    %cst_102 = arith.constant 0.000000e+00 : f32
    %183 = vector.broadcast %cst_102 : f32 to vector<4x256xf32>
    %184 = tpu.concatenate %154, %158, %162, %166, %150, %170, %174, %178, %182, %183 in 0 : vector<4x256xf32>, vector<4x256xf32>, vector<4x256xf32>, vector<4x256xf32>, vector<4x256xf32>, vector<4x256xf32>, vector<4x256xf32>, vector<4x256xf32>, vector<4x256xf32>, vector<4x256xf32> -> vector<40x256xf32>
    %c80 = arith.constant 80 : index
    %c0_103 = arith.constant 0 : index
    %185 = vector.load %arg10[%c80, %c0_103] : memref<160x256xf32, #tpu.memory_space<vmem>>, vector<40x256xf32>
    tpu.vector_store %arg10[%c80, %c0_103], %184 {strides = array<i32>} : memref<160x256xf32, #tpu.memory_space<vmem>>, vector<40x256xf32>,
    %c0_104 = arith.constant 0 : index
    %c0_105 = arith.constant 0 : index
    %186 = vector.load %arg5[%c0_104, %c0_105] : memref<4x120xf32, #tpu.memory_space<vmem>>, vector<4x120xf32>
    %c0_106 = arith.constant 0 : index
    %c0_107 = arith.constant 0 : index
    %187 = vector.load %arg10[%c0_106, %c0_107] : memref<160x256xf32, #tpu.memory_space<vmem>>, vector<120x256xf32>
    %cst_108 = arith.constant dense<0.000000e+00> : vector<4x256xf32>
    %188 = tpu.matmul %186, %187, %cst_108 {dimension_numbers = #tpu.dot_dimension_numbers<[1], [0], [0], [1], [0, 0, 1, 1], [], []>, precision = #tpu.contract_precision<fp32>} : vector<4x120xf32>, vector<120x256xf32>, vector<4x256xf32> -> vector<4x256xf32>
    %189 = vector.shape_cast %188 : vector<4x256xf32> to vector<1x4x256xf32>
    %cst_109 = arith.constant dense<0.000000e+00> : vector<1xf32>
    %190 = vector.multi_reduction <add>, %189, %cst_109 [1, 2] : vector<1x4x256xf32> to vector<1xf32>
    %191 = vector.shape_cast %190 : vector<1xf32> to vector<1x1x1xf32>
    %192 = vector.extract %191[0, 0, 0] : f32 from vector<1x1x1xf32>
    %193 = arith.mulf %188, %188 : vector<4x256xf32>
    %194 = vector.shape_cast %193 : vector<4x256xf32> to vector<1x4x256xf32>
    %cst_110 = arith.constant dense<0.000000e+00> : vector<1xf32>
    %195 = vector.multi_reduction <add>, %194, %cst_110 [1, 2] : vector<1x4x256xf32> to vector<1xf32>
    %196 = vector.shape_cast %195 : vector<1xf32> to vector<1x1x1xf32>
    %197 = vector.extract %196[0, 0, 0] : f32 from vector<1x1x1xf32>
    %cst_111 = arith.constant 9.765625E-4 : f32
    %198 = arith.mulf %192, %cst_111 : f32
    %cst_112 = arith.constant 9.765625E-4 : f32
    %199 = arith.mulf %197, %cst_112 : f32
    %200 = arith.mulf %198, %198 : f32
    %201 = arith.subf %199, %200 : f32
    %cst_113 = arith.constant 9.99999974E-6 : f32
    %202 = arith.addf %201, %cst_113 : f32
    %203 = math.rsqrt %202 : f32
    %c2_114 = arith.constant 2 : index
    %c0_115 = arith.constant 0 : index
    %c0_116 = arith.constant 0 : index
    %204 = vector.load %arg7[%c2_114, %c0_115, %c0_116] : memref<4x4x1xf32, #tpu.memory_space<vmem>>, vector<1x4x1xf32>
    %205 = vector.shape_cast %204 : vector<1x4x1xf32> to vector<4x1xf32>
    %206 = vector.broadcast %203 : f32 to vector<4x1xf32>
    %207 = arith.mulf %205, %206 : vector<4x1xf32>
    %c2_117 = arith.constant 2 : index
    %c0_118 = arith.constant 0 : index
    %c0_119 = arith.constant 0 : index
    %208 = vector.load %arg8[%c2_117, %c0_118, %c0_119] : memref<4x4x1xf32, #tpu.memory_space<vmem>>, vector<1x4x1xf32>
    %209 = vector.shape_cast %208 : vector<1x4x1xf32> to vector<4x1xf32>
    %210 = vector.broadcast %198 : f32 to vector<4x1xf32>
    %211 = arith.mulf %210, %207 : vector<4x1xf32>
    %212 = arith.subf %209, %211 : vector<4x1xf32>
    %213 = vector.broadcast %207 : vector<4x1xf32> to vector<4x256xf32>
    %214 = arith.mulf %188, %213 : vector<4x256xf32>
    %215 = vector.broadcast %212 : vector<4x1xf32> to vector<4x256xf32>
    %216 = arith.addf %214, %215 : vector<4x256xf32>
    %cst_120 = arith.constant 0.000000e+00 : f32
    %217 = vector.broadcast %cst_120 : f32 to vector<4x256xf32>
    %218 = arith.minimumf %216, %217 : vector<4x256xf32>
    %cst_121 = arith.constant 0.000000e+00 : f32
    %219 = vector.broadcast %cst_121 : f32 to vector<4x256xf32>
    %220 = arith.cmpf ogt, %216, %219 : vector<4x256xf32>
    %221 = math.exp %218 : vector<4x256xf32>
    %cst_122 = arith.constant 1.000000e+00 : f32
    %222 = vector.broadcast %cst_122 : f32 to vector<4x256xf32>
    %223 = arith.subf %221, %222 : vector<4x256xf32>
    %224 = arith.select %220, %216, %223 : vector<4x256xi1>, vector<4x256xf32>
    %c17_i32_123 = arith.constant 17 : i32
    %225 = tpu.dynamic_rotate %224 by %c17_i32_123 dim 1 : vector<4x256xf32>, i32 -> vector<4x256xf32>
    %c0_124 = arith.constant 0 : index
    %c0_125 = arith.constant 0 : index
    %226 = vector.load %arg2[%c0_124, %c0_125] : memref<9x256xf32, #tpu.memory_space<vmem>>, vector<1x256xf32>
    %227 = vector.broadcast %226 : vector<1x256xf32> to vector<4x256xf32>
    %228 = arith.mulf %225, %227 : vector<4x256xf32>
    %c16_i32_126 = arith.constant 16 : i32
    %229 = tpu.dynamic_rotate %224 by %c16_i32_126 dim 1 : vector<4x256xf32>, i32 -> vector<4x256xf32>
    %c1_127 = arith.constant 1 : index
    %c0_128 = arith.constant 0 : index
    %230 = vector.load %arg2[%c1_127, %c0_128] : memref<9x256xf32, #tpu.memory_space<vmem>>, vector<1x256xf32>
    %231 = vector.broadcast %230 : vector<1x256xf32> to vector<4x256xf32>
    %232 = arith.mulf %229, %231 : vector<4x256xf32>
    %c15_i32_129 = arith.constant 15 : i32
    %233 = tpu.dynamic_rotate %224 by %c15_i32_129 dim 1 : vector<4x256xf32>, i32 -> vector<4x256xf32>
    %c2_130 = arith.constant 2 : index
    %c0_131 = arith.constant 0 : index
    %234 = vector.load %arg2[%c2_130, %c0_131] : memref<9x256xf32, #tpu.memory_space<vmem>>, vector<1x256xf32>
    %235 = vector.broadcast %234 : vector<1x256xf32> to vector<4x256xf32>
    %236 = arith.mulf %233, %235 : vector<4x256xf32>
    %c1_i32_132 = arith.constant 1 : i32
    %237 = tpu.dynamic_rotate %224 by %c1_i32_132 dim 1 : vector<4x256xf32>, i32 -> vector<4x256xf32>
    %c3_133 = arith.constant 3 : index
    %c0_134 = arith.constant 0 : index
    %238 = vector.load %arg2[%c3_133, %c0_134] : memref<9x256xf32, #tpu.memory_space<vmem>>, vector<1x256xf32>
    %239 = vector.broadcast %238 : vector<1x256xf32> to vector<4x256xf32>
    %240 = arith.mulf %237, %239 : vector<4x256xf32>
    %c255_i32_135 = arith.constant 255 : i32
    %241 = tpu.dynamic_rotate %224 by %c255_i32_135 dim 1 : vector<4x256xf32>, i32 -> vector<4x256xf32>
    %c5_136 = arith.constant 5 : index
    %c0_137 = arith.constant 0 : index
    %242 = vector.load %arg2[%c5_136, %c0_137] : memref<9x256xf32, #tpu.memory_space<vmem>>, vector<1x256xf32>
    %243 = vector.broadcast %242 : vector<1x256xf32> to vector<4x256xf32>
    %244 = arith.mulf %241, %243 : vector<4x256xf32>
    %c241_i32_138 = arith.constant 241 : i32
    %245 = tpu.dynamic_rotate %224 by %c241_i32_138 dim 1 : vector<4x256xf32>, i32 -> vector<4x256xf32>
    %c6_139 = arith.constant 6 : index
    %c0_140 = arith.constant 0 : index
    %246 = vector.load %arg2[%c6_139, %c0_140] : memref<9x256xf32, #tpu.memory_space<vmem>>, vector<1x256xf32>
    %247 = vector.broadcast %246 : vector<1x256xf32> to vector<4x256xf32>
    %248 = arith.mulf %245, %247 : vector<4x256xf32>
    %c240_i32_141 = arith.constant 240 : i32
    %249 = tpu.dynamic_rotate %224 by %c240_i32_141 dim 1 : vector<4x256xf32>, i32 -> vector<4x256xf32>
    %c7_142 = arith.constant 7 : index
    %c0_143 = arith.constant 0 : index
    %250 = vector.load %arg2[%c7_142, %c0_143] : memref<9x256xf32, #tpu.memory_space<vmem>>, vector<1x256xf32>
    %251 = vector.broadcast %250 : vector<1x256xf32> to vector<4x256xf32>
    %252 = arith.mulf %249, %251 : vector<4x256xf32>
    %c239_i32_144 = arith.constant 239 : i32
    %253 = tpu.dynamic_rotate %224 by %c239_i32_144 dim 1 : vector<4x256xf32>, i32 -> vector<4x256xf32>
    %c8_145 = arith.constant 8 : index
    %c0_146 = arith.constant 0 : index
    %254 = vector.load %arg2[%c8_145, %c0_146] : memref<9x256xf32, #tpu.memory_space<vmem>>, vector<1x256xf32>
    %255 = vector.broadcast %254 : vector<1x256xf32> to vector<4x256xf32>
    %256 = arith.mulf %253, %255 : vector<4x256xf32>
    %cst_147 = arith.constant 0.000000e+00 : f32
    %257 = vector.broadcast %cst_147 : f32 to vector<4x256xf32>
    %258 = tpu.concatenate %228, %232, %236, %240, %224, %244, %248, %252, %256, %257 in 0 : vector<4x256xf32>, vector<4x256xf32>, vector<4x256xf32>, vector<4x256xf32>, vector<4x256xf32>, vector<4x256xf32>, vector<4x256xf32>, vector<4x256xf32>, vector<4x256xf32>, vector<4x256xf32> -> vector<40x256xf32>
    %c120 = arith.constant 120 : index
    %c0_148 = arith.constant 0 : index
    %259 = vector.load %arg10[%c120, %c0_148] : memref<160x256xf32, #tpu.memory_space<vmem>>, vector<40x256xf32>
    tpu.vector_store %arg10[%c120, %c0_148], %258 {strides = array<i32>} : memref<160x256xf32, #tpu.memory_space<vmem>>, vector<40x256xf32>,
    %c0_149 = arith.constant 0 : index
    %c0_150 = arith.constant 0 : index
    %260 = vector.load %arg6[%c0_149, %c0_150] : memref<4x160xf32, #tpu.memory_space<vmem>>, vector<4x160xf32>
    %c0_151 = arith.constant 0 : index
    %c0_152 = arith.constant 0 : index
    %261 = vector.load %arg10[%c0_151, %c0_152] : memref<160x256xf32, #tpu.memory_space<vmem>>, vector<160x256xf32>
    %cst_153 = arith.constant dense<0.000000e+00> : vector<4x256xf32>
    %262 = tpu.matmul %260, %261, %cst_153 {dimension_numbers = #tpu.dot_dimension_numbers<[1], [0], [0], [1], [0, 0, 1, 1], [], []>, precision = #tpu.contract_precision<fp32>} : vector<4x160xf32>, vector<160x256xf32>, vector<4x256xf32> -> vector<4x256xf32>
    %263 = vector.shape_cast %262 : vector<4x256xf32> to vector<1x4x256xf32>
    %cst_154 = arith.constant dense<0.000000e+00> : vector<1xf32>
    %264 = vector.multi_reduction <add>, %263, %cst_154 [1, 2] : vector<1x4x256xf32> to vector<1xf32>
    %265 = vector.shape_cast %264 : vector<1xf32> to vector<1x1x1xf32>
    %266 = vector.extract %265[0, 0, 0] : f32 from vector<1x1x1xf32>
    %267 = arith.mulf %262, %262 : vector<4x256xf32>
    %268 = vector.shape_cast %267 : vector<4x256xf32> to vector<1x4x256xf32>
    %cst_155 = arith.constant dense<0.000000e+00> : vector<1xf32>
    %269 = vector.multi_reduction <add>, %268, %cst_155 [1, 2] : vector<1x4x256xf32> to vector<1xf32>
    %270 = vector.shape_cast %269 : vector<1xf32> to vector<1x1x1xf32>
    %271 = vector.extract %270[0, 0, 0] : f32 from vector<1x1x1xf32>
    %cst_156 = arith.constant 9.765625E-4 : f32
    %272 = arith.mulf %266, %cst_156 : f32
    %cst_157 = arith.constant 9.765625E-4 : f32
    %273 = arith.mulf %271, %cst_157 : f32
    %274 = arith.mulf %272, %272 : f32
    %275 = arith.subf %273, %274 : f32
    %cst_158 = arith.constant 9.99999974E-6 : f32
    %276 = arith.addf %275, %cst_158 : f32
    %277 = math.rsqrt %276 : f32
    %c3_159 = arith.constant 3 : index
    %c0_160 = arith.constant 0 : index
    %c0_161 = arith.constant 0 : index
    %278 = vector.load %arg7[%c3_159, %c0_160, %c0_161] : memref<4x4x1xf32, #tpu.memory_space<vmem>>, vector<1x4x1xf32>
    %279 = vector.shape_cast %278 : vector<1x4x1xf32> to vector<4x1xf32>
    %280 = vector.broadcast %277 : f32 to vector<4x1xf32>
    %281 = arith.mulf %279, %280 : vector<4x1xf32>
    %c3_162 = arith.constant 3 : index
    %c0_163 = arith.constant 0 : index
    %c0_164 = arith.constant 0 : index
    %282 = vector.load %arg8[%c3_162, %c0_163, %c0_164] : memref<4x4x1xf32, #tpu.memory_space<vmem>>, vector<1x4x1xf32>
    %283 = vector.shape_cast %282 : vector<1x4x1xf32> to vector<4x1xf32>
    %284 = vector.broadcast %272 : f32 to vector<4x1xf32>
    %285 = arith.mulf %284, %281 : vector<4x1xf32>
    %286 = arith.subf %283, %285 : vector<4x1xf32>
    %287 = vector.broadcast %281 : vector<4x1xf32> to vector<4x256xf32>
    %288 = arith.mulf %262, %287 : vector<4x256xf32>
    %289 = vector.broadcast %286 : vector<4x1xf32> to vector<4x256xf32>
    %290 = arith.addf %288, %289 : vector<4x256xf32>
    %cst_165 = arith.constant 0.000000e+00 : f32
    %291 = vector.broadcast %cst_165 : f32 to vector<4x256xf32>
    %292 = arith.minimumf %290, %291 : vector<4x256xf32>
    %cst_166 = arith.constant 0.000000e+00 : f32
    %293 = vector.broadcast %cst_166 : f32 to vector<4x256xf32>
    %294 = arith.cmpf ogt, %290, %293 : vector<4x256xf32>
    %295 = math.exp %292 : vector<4x256xf32>
    %cst_167 = arith.constant 1.000000e+00 : f32
    %296 = vector.broadcast %cst_167 : f32 to vector<4x256xf32>
    %297 = arith.subf %295, %296 : vector<4x256xf32>
    %298 = arith.select %294, %290, %297 : vector<4x256xi1>, vector<4x256xf32>
    %c0_168 = arith.constant 0 : index
    %c0_169 = arith.constant 0 : index
    %c0_170 = arith.constant 0 : index
    %299 = vector.load %arg9[%c0_168, %c0_169, %c0_170] : memref<1x4x256xf32, #tpu.memory_space<vmem>>, vector<1x4x256xf32>
    %300 = vector.shape_cast %299 : vector<1x4x256xf32> to vector<4x256xf32>
    %301 = vector.shape_cast %298 : vector<4x256xf32> to vector<1x4x256xf32>
    tpu.vector_store %arg9[%c0_168, %c0_169, %c0_170], %301 {strides = array<i32>} : memref<1x4x256xf32, #tpu.memory_space<vmem>>, vector<1x4x256xf32>,
    return
  }
  func.func @transform_0(%arg0: i32) -> (i32, i32, i32) {
    %c0_i32 = arith.constant 0 : i32
    %c0_i32_0 = arith.constant 0 : i32
    %c0_i32_1 = arith.constant 0 : i32
    return %arg0, %c0_i32, %c0_i32_0 : i32, i32, i32
  }
  func.func @transform_1(%arg0: i32) -> (i32, i32) {
    %c0_i32 = arith.constant 0 : i32
    %c0_i32_0 = arith.constant 0 : i32
    %c0_i32_1 = arith.constant 0 : i32
    return %c0_i32, %c0_i32_0 : i32, i32
  }
  func.func @transform_2(%arg0: i32) -> (i32, i32) {
    %c0_i32 = arith.constant 0 : i32
    %c0_i32_0 = arith.constant 0 : i32
    %c0_i32_1 = arith.constant 0 : i32
    return %c0_i32, %c0_i32_0 : i32, i32
  }
  func.func @transform_3(%arg0: i32) -> (i32, i32) {
    %c0_i32 = arith.constant 0 : i32
    %c0_i32_0 = arith.constant 0 : i32
    %c0_i32_1 = arith.constant 0 : i32
    return %c0_i32, %c0_i32_0 : i32, i32
  }
  func.func @transform_4(%arg0: i32) -> (i32, i32) {
    %c0_i32 = arith.constant 0 : i32
    %c0_i32_0 = arith.constant 0 : i32
    %c0_i32_1 = arith.constant 0 : i32
    return %c0_i32, %c0_i32_0 : i32, i32
  }
  func.func @transform_5(%arg0: i32) -> (i32, i32) {
    %c0_i32 = arith.constant 0 : i32
    %c0_i32_0 = arith.constant 0 : i32
    %c0_i32_1 = arith.constant 0 : i32
    return %c0_i32, %c0_i32_0 : i32, i32
  }
  func.func @transform_6(%arg0: i32) -> (i32, i32, i32) {
    %c0_i32 = arith.constant 0 : i32
    %c0_i32_0 = arith.constant 0 : i32
    %c0_i32_1 = arith.constant 0 : i32
    %c0_i32_2 = arith.constant 0 : i32
    return %c0_i32, %c0_i32_0, %c0_i32_1 : i32, i32, i32
  }
  func.func @transform_7(%arg0: i32) -> (i32, i32, i32) {
    %c0_i32 = arith.constant 0 : i32
    %c0_i32_0 = arith.constant 0 : i32
    %c0_i32_1 = arith.constant 0 : i32
    %c0_i32_2 = arith.constant 0 : i32
    return %c0_i32, %c0_i32_0, %c0_i32_1 : i32, i32, i32
  }
  func.func @transform_8(%arg0: i32) -> (i32, i32, i32) {
    %c0_i32 = arith.constant 0 : i32
    %c0_i32_0 = arith.constant 0 : i32
    %c0_i32_1 = arith.constant 0 : i32
    return %arg0, %c0_i32, %c0_i32_0 : i32, i32, i32
  }
}

</mosaic_0001>

<llo_original>
// kernel: dense_block_no_out_cat.1
$region0: #{dense_block_no_out_cat.1}
  #allocation0 [shape = 'u32[]', space=smem, size = 0x4, offset = 0x4, fixed_abs, tag = 'smem constant byte address 0x4 - core index']
  #allocation1 [shape = 'u32[144,128]{1,0:T(1,128)}', space=vmem, size = 0x12000, scoped, tag = 'internal scratch']
  #allocation2 [shape = 'f32[160,256]{1,0:T(8,128)}', space=vmem, size = 0x28000, scoped, tag = 'scratch operand']
  %s0 = inlined_call_operand.vmem [shape: f32[2,4,256], index: 0, kind: input, shape index: {}]
  %s1 = inlined_call_operand.vmem [shape: f32[9,256], index: 1, kind: input, shape index: {}]
  %s2 = inlined_call_operand.vmem [shape: f32[4,40], index: 2, kind: input, shape index: {}]
  %s3 = inlined_call_operand.vmem [shape: f32[4,80], index: 3, kind: input, shape index: {}]
  %s4 = inlined_call_operand.vmem [shape: f32[4,120], index: 4, kind: input, shape index: {}]
  %s5 = inlined_call_operand.vmem [shape: f32[4,160], index: 5, kind: input, shape index: {}]
  %s6 = inlined_call_operand.vmem [shape: f32[4,4,1], index: 6, kind: input, shape index: {}]
  %s7 = inlined_call_operand.vmem [shape: f32[4,4,1], index: 7, kind: input, shape index: {}]
  %s8 = inlined_call_operand.vmem [shape: f32[2,4,256], index: 8, kind: output, shape index: {}]
  %s9 = sld [smem:[#allocation0]]
  $region65: #{dense_block_no_out_cat.1} parent=0
    _
  %s11 = ssub.s32 1, %s9
  %s12 = scalar_select 0, %s11, %s9
  loop: start=0, step=1, limit=4
  $region2: #{dense_block_no_out_cat.1} parent=0 // loop_pre_header
    _
  $region3: #{dense_block_no_out_cat.1} parent=0 // loop_header
    %s14 = sphi 0, %s18
    %p15 = scmp.ge.s32.totalorder %s14, 4
    %s24 = sphi 0, %s26
    %s27 = sphi 0, %s24
    %s28 = sphi 0, %s27
    %s44 = sphi 0, %s28
    %s48 = sphi 0, %s48
    %s50 = sphi 0, %s48
    %s51 = sphi 0, %s50
    %s65 = sphi 0, %s51
    %s69 = sphi 0, %s69
    %s71 = sphi 0, %s69
    %s72 = sphi 0, %s71
    %s86 = sphi 0, %s72
    %s90 = sphi 0, %s90
    %s92 = sphi 0, %s90
    %s93 = sphi 0, %s92
    %s107 = sphi 0, %s93
    %s111 = sphi 0, %s111
    %s113 = sphi 0, %s111
    %s114 = sphi 0, %s113
    %s128 = sphi 0, %s114
    %s132 = sphi 0, %s132
    %s134 = sphi 0, %s132
    %s135 = sphi 0, %s134
    %s149 = sphi 0, %s135
    %s153 = sphi 0, %s153
    %s155 = sphi 0, %s153
    %s156 = sphi 0, %s155
    %s170 = sphi 0, %s156
    %s174 = sphi 0, %s174
    %s176 = sphi 0, %s174
    %s177 = sphi 0, %s176
    %s191 = sphi 0, %s177
    %s197 = sphi 0, %s199
    %s200 = sphi 0, %s197
    %s201 = sphi 0, %s200
    %s217 = sphi 0, %s201
  $region4: #{dense_block_no_out_cat.1} parent=0 // loop_header_branch
    %17 = sbr.rel (%p15) target = $region8
  $region5: #{dense_block_no_out_cat.1} parent=0 // loop_body
    %s19 = ssub.s32 %s14, 1
    %s20 = ssub.s32 %s14, 2
    %s21 = sadd.s32 %s14, 1
    %s22 = ssub.s32 %s14, %s21
    %p23 = scmp.eq.s32.totalorder %s22, 0
    %s25 = sadd.s32 %s24, 1
    %s26 = scalar_select %p23, %s24, %s25
    %p29 = pneg %p23
    %p30 = scmp.eq.s32.totalorder %s14, 1
    %p31 = por %p29, %p30
    %p32 = scmp.ne.s32.totalorder %s24, %s27
    %p33 = scmp.eq.s32.totalorder %s14, 0
    %p34 = por %p32, %p33
    %p35 = scmp.ne.s32.totalorder %s24, %s27
    %p36 = scmp.eq.s32.totalorder %s19, 1
    %p37 = por %p35, %p36
    %p38 = scmp.ne.s32.totalorder %s27, %s28
    %p39 = scmp.eq.s32.totalorder %s19, 0
    %p40 = por %p38, %p39
    %p41 = scmp.ne.s32.totalorder %s27, %s28
    %p42 = scmp.eq.s32.totalorder %s20, 1
    %p43 = por %p41, %p42
    %p45 = scmp.ne.s32.totalorder %s28, %s44
    %p46 = scmp.eq.s32.totalorder %s20, 0
    %p47 = por %p45, %p46
    %s49 = sadd.s32 %s48, 1
    %p52 = scmp.eq.s32.totalorder %s14, 1
    %p53 = scmp.ne.s32.totalorder %s48, %s50
    %p54 = scmp.eq.s32.totalorder %s14, 0
    %p55 = por %p53, %p54
    %p56 = scmp.ne.s32.totalorder %s48, %s50
    %p57 = scmp.eq.s32.totalorder %s19, 1
    %p58 = por %p56, %p57
    %p59 = scmp.ne.s32.totalorder %s50, %s51
    %p60 = scmp.eq.s32.totalorder %s19, 0
    %p61 = por %p59, %p60
    %p62 = scmp.ne.s32.totalorder %s50, %s51
    %p63 = scmp.eq.s32.totalorder %s20, 1
    %p64 = por %p62, %p63
    %p66 = scmp.ne.s32.totalorder %s51, %s65
    %p67 = scmp.eq.s32.totalorder %s20, 0
    %p68 = por %p66, %p67
    %s70 = sadd.s32 %s69, 1
    %p73 = scmp.eq.s32.totalorder %s14, 1
    %p74 = scmp.ne.s32.totalorder %s69, %s71
    %p75 = scmp.eq.s32.totalorder %s14, 0
    %p76 = por %p74, %p75
    %p77 = scmp.ne.s32.totalorder %s69, %s71
    %p78 = scmp.eq.s32.totalorder %s19, 1
    %p79 = por %p77, %p78
    %p80 = scmp.ne.s32.totalorder %s71, %s72
    %p81 = scmp.eq.s32.totalorder %s19, 0
    %p82 = por %p80, %p81
    %p83 = scmp.ne.s32.totalorder %s71, %s72
    %p84 = scmp.eq.s32.totalorder %s20, 1
    %p85 = por %p83, %p84
    %p87 = scmp.ne.s32.totalorder %s72, %s86
    %p88 = scmp.eq.s32.totalorder %s20, 0
    %p89 = por %p87, %p88
    %s91 = sadd.s32 %s90, 1
    %p94 = scmp.eq.s32.totalorder %s14, 1
    %p95 = scmp.ne.s32.totalorder %s90, %s92
    %p96 = scmp.eq.s32.totalorder %s14, 0
    %p97 = por %p95, %p96
    %p98 = scmp.ne.s32.totalorder %s90, %s92
    %p99 = scmp.eq.s32.totalorder %s19, 1
    %p100 = por %p98, %p99
    %p101 = scmp.ne.s32.totalorder %s92, %s93
    %p102 = scmp.eq.s32.totalorder %s19, 0
    %p103 = por %p101, %p102
    %p104 = scmp.ne.s32.totalorder %s92, %s93
    %p105 = scmp.eq.s32.totalorder %s20, 1
    %p106 = por %p104, %p105
    %p108 = scmp.ne.s32.totalorder %s93, %s107
    %p109 = scmp.eq.s32.totalorder %s20, 0
    %p110 = por %p108, %p109
    %s112 = sadd.s32 %s111, 1
    %p115 = scmp.eq.s32.totalorder %s14, 1
    %p116 = scmp.ne.s32.totalorder %s111, %s113
    %p117 = scmp.eq.s32.totalorder %s14, 0
    %p118 = por %p116, %p117
    %p119 = scmp.ne.s32.totalorder %s111, %s113
    %p120 = scmp.eq.s32.totalorder %s19, 1
    %p121 = por %p119, %p120
    %p122 = scmp.ne.s32.totalorder %s113, %s114
    %p123 = scmp.eq.s32.totalorder %s19, 0
    %p124 = por %p122, %p123
    %p125 = scmp.ne.s32.totalorder %s113, %s114
    %p126 = scmp.eq.s32.totalorder %s20, 1
    %p127 = por %p125, %p126
    %p129 = scmp.ne.s32.totalorder %s114, %s128
    %p130 = scmp.eq.s32.totalorder %s20, 0
    %p131 = por %p129, %p130
    %s133 = sadd.s32 %s132, 1
    %p136 = scmp.eq.s32.totalorder %s14, 1
    %p137 = scmp.ne.s32.totalorder %s132, %s134
    %p138 = scmp.eq.s32.totalorder %s14, 0
    %p139 = por %p137, %p138
    %p140 = scmp.ne.s32.totalorder %s132, %s134
    %p141 = scmp.eq.s32.totalorder %s19, 1
    %p142 = por %p140, %p141
    %p143 = scmp.ne.s32.totalorder %s134, %s135
    %p144 = scmp.eq.s32.totalorder %s19, 0
    %p145 = por %p143, %p144
    %p146 = scmp.ne.s32.totalorder %s134, %s135
    %p147 = scmp.eq.s32.totalorder %s20, 1
    %p148 = por %p146, %p147
    %p150 = scmp.ne.s32.totalorder %s135, %s149
    %p151 = scmp.eq.s32.totalorder %s20, 0
    %p152 = por %p150, %p151
    %s154 = sadd.s32 %s153, 1
    %p157 = scmp.eq.s32.totalorder %s14, 1
    %p158 = scmp.ne.s32.totalorder %s153, %s155
    %p159 = scmp.eq.s32.totalorder %s14, 0
    %p160 = por %p158, %p159
    %p161 = scmp.ne.s32.totalorder %s153, %s155
    %p162 = scmp.eq.s32.totalorder %s19, 1
    %p163 = por %p161, %p162
    %p164 = scmp.ne.s32.totalorder %s155, %s156
    %p165 = scmp.eq.s32.totalorder %s19, 0
    %p166 = por %p164, %p165
    %p167 = scmp.ne.s32.totalorder %s155, %s156
    %p168 = scmp.eq.s32.totalorder %s20, 1
    %p169 = por %p167, %p168
    %p171 = scmp.ne.s32.totalorder %s156, %s170
    %p172 = scmp.eq.s32.totalorder %s20, 0
    %p173 = por %p171, %p172
    %s175 = sadd.s32 %s174, 1
    %p178 = scmp.eq.s32.totalorder %s14, 1
    %p179 = scmp.ne.s32.totalorder %s174, %s176
    %p180 = scmp.eq.s32.totalorder %s14, 0
    %p181 = por %p179, %p180
    %p182 = scmp.ne.s32.totalorder %s174, %s176
    %p183 = scmp.eq.s32.totalorder %s19, 1
    %p184 = por %p182, %p183
    %p185 = scmp.ne.s32.totalorder %s176, %s177
    %p186 = scmp.eq.s32.totalorder %s19, 0
    %p187 = por %p185, %p186
    %p188 = scmp.ne.s32.totalorder %s176, %s177
    %p189 = scmp.eq.s32.totalorder %s20, 1
    %p190 = por %p188, %p189
    %p192 = scmp.ne.s32.totalorder %s177, %s191
    %p193 = scmp.eq.s32.totalorder %s20, 0
    %p194 = por %p192, %p193
    %s195 = ssub.s32 %s14, %s21
    %p196 = scmp.eq.s32.totalorder %s195, 0
    %s198 = sadd.s32 %s197, 1
    %s199 = scalar_select %p196, %s197, %s198
    %p202 = pneg %p196
    %p203 = scmp.eq.s32.totalorder %s14, 1
    %p204 = por %p202, %p203
    %p205 = scmp.ne.s32.totalorder %s197, %s200
    %p206 = scmp.eq.s32.totalorder %s14, 0
    %p207 = por %p205, %p206
    %p208 = scmp.ne.s32.totalorder %s197, %s200
    %p209 = scmp.eq.s32.totalorder %s19, 1
    %p210 = por %p208, %p209
    %p211 = scmp.ne.s32.totalorder %s200, %s201
    %p212 = scmp.eq.s32.totalorder %s19, 0
    %p213 = por %p211, %p212
    %p214 = scmp.ne.s32.totalorder %s200, %s201
    %p215 = scmp.eq.s32.totalorder %s20, 1
    %p216 = por %p214, %p215
    %p218 = scmp.ne.s32.totalorder %s201, %s217
    %p219 = scmp.eq.s32.totalorder %s20, 0
    %p220 = por %p218, %p219
    %p221 = scmp.le.s32.totalorder 1, %s14
    %p222 = scmp.lt.s32.totalorder %s14, 3
    %p223 = pnand %p221, %p222
    %p224 = pneg %p223
    // Predicated region
    $region9: #{dense_block_no_out_cat.1} parent=5 // pred_check
      _
    $region10: #{dense_block_no_out_cat.1} parent=5 // pred_check_branch
      %226 = sbr.rel (%p223) target = $region12
    $region11: #{dense_block_no_out_cat.1} parent=5 // pred_region
      %s227 = ssub.s32 %s14, 1
      // Predicated region
      $region13: #{dense_block_no_out_cat.1} parent=11 // pred_check
        %p228 = pneg %p61
      $region14: #{dense_block_no_out_cat.1} parent=11 // pred_check_branch
        %230 = sbr.rel (%p228) target = $region16
      $region15: #{dense_block_no_out_cat.1} parent=11 // pred_region
        _
      $region16: #{dense_block_no_out_cat.1} parent=11 // pred_fallthru
        _
      // Predicated region
      $region17: #{dense_block_no_out_cat.1} parent=11 // pred_check
        %p231 = pneg %p82
      $region18: #{dense_block_no_out_cat.1} parent=11 // pred_check_branch
        %233 = sbr.rel (%p231) target = $region20
      $region19: #{dense_block_no_out_cat.1} parent=11 // pred_region
        _
      $region20: #{dense_block_no_out_cat.1} parent=11 // pred_fallthru
        _
      // Predicated region
      $region21: #{dense_block_no_out_cat.1} parent=11 // pred_check
        %p234 = pneg %p103
      $region22: #{dense_block_no_out_cat.1} parent=11 // pred_check_branch
        %236 = sbr.rel (%p234) target = $region24
      $region23: #{dense_block_no_out_cat.1} parent=11 // pred_region
        _
      $region24: #{dense_block_no_out_cat.1} parent=11 // pred_fallthru
        _
      // Predicated region
      $region25: #{dense_block_no_out_cat.1} parent=11 // pred_check
        %p237 = pneg %p124
      $region26: #{dense_block_no_out_cat.1} parent=11 // pred_check_branch
        %239 = sbr.rel (%p237) target = $region28
      $region27: #{dense_block_no_out_cat.1} parent=11 // pred_region
        _
      $region28: #{dense_block_no_out_cat.1} parent=11 // pred_fallthru
        _
      // Predicated region
      $region29: #{dense_block_no_out_cat.1} parent=11 // pred_check
        %p240 = pneg %p145
      $region30: #{dense_block_no_out_cat.1} parent=11 // pred_check_branch
        %242 = sbr.rel (%p240) target = $region32
      $region31: #{dense_block_no_out_cat.1} parent=11 // pred_region
        _
      $region32: #{dense_block_no_out_cat.1} parent=11 // pred_fallthru
        _
      // Predicated region
      $region33: #{dense_block_no_out_cat.1} parent=11 // pred_check
        %p243 = pneg %p166
      $region34: #{dense_block_no_out_cat.1} parent=11 // pred_check_branch
        %245 = sbr.rel (%p243) target = $region36
      $region35: #{dense_block_no_out_cat.1} parent=11 // pred_region
        _
      $region36: #{dense_block_no_out_cat.1} parent=11 // pred_fallthru
        _
      // Predicated region
      $region37: #{dense_block_no_out_cat.1} parent=11 // pred_check
        %p246 = pneg %p187
      $region38: #{dense_block_no_out_cat.1} parent=11 // pred_check_branch
        %248 = sbr.rel (%p246) target = $region40
      $region39: #{dense_block_no_out_cat.1} parent=11 // pred_region
        _
      $region40: #{dense_block_no_out_cat.1} parent=11 // pred_fallthru
        _
    $region12: #{dense_block_no_out_cat.1} parent=5 // pred_fallthru
      _
    %p249 = scmp.lt.s32.totalorder %s14, 2
    // Predicated region
    $region41: #{dense_block_no_out_cat.1} parent=5 // pred_check
      %p250 = pneg %p249
    $region42: #{dense_block_no_out_cat.1} parent=5 // pred_check_branch
      %252 = sbr.rel (%p250) target = $region44
    $region43: #{dense_block_no_out_cat.1} parent=5 // pred_region
      // Predicated region
      $region45: #{dense_block_no_out_cat.1} parent=43 // pred_check
        %p253 = pneg %p34
      $region46: #{dense_block_no_out_cat.1} parent=43 // pred_check_branch
        %255 = sbr.rel (%p253) target = $region48
      $region47: #{dense_block_no_out_cat.1} parent=43 // pred_region
        %p256 = scmp.lt.s32.totalorder %s14, 1
        %s257 = scalar_select %p256, %s14, 1
        %s258 = smul.addr %s257, 2
        %s259 = smul.addr %s258, 4
        %s260 = scalar_lea.vmem %s0, %s259
      $region48: #{dense_block_no_out_cat.1} parent=43 // pred_fallthru
        _
    $region44: #{dense_block_no_out_cat.1} parent=5 // pred_fallthru
      _
    %p261 = scmp.le.s32.totalorder 1, %s14
    %p262 = scmp.lt.s32.totalorder %s14, 3
    %p263 = pnand %p261, %p262
    %p264 = pneg %p263
    // Predicated region
    $region49: #{dense_block_no_out_cat.1} parent=5 // pred_check
      _
    $region50: #{dense_block_no_out_cat.1} parent=5 // pred_check_branch
      %266 = sbr.rel (%p263) target = $region52
    $region51: #{dense_block_no_out_cat.1} parent=5 // pred_region
      %s267 = ssub.s32 %s14, 1
      %p268 = scmp.lt.s32.totalorder %s19, 1
      %s269 = scalar_select %p268, %s19, 1
      %s270 = smul.addr %s269, 2
      %s271 = smul.addr %s270, 4
      %s272 = scalar_lea.vmem %s0, %s271
      %p273 = pneg %p40
      %p274 = pneg %p37
      %p275 = pneg %p61
      %p276 = pneg %p58
      %p277 = pneg %p82
      %p278 = pneg %p79
      %p279 = pneg %p103
      %p280 = pneg %p100
      %p281 = pneg %p124
      %p282 = pneg %p121
      %p283 = pneg %p145
      %p284 = pneg %p142
      %p285 = pneg %p166
      %p286 = pneg %p163
      %p287 = pneg %p187
      %p288 = pneg %p184
      %p289 = pneg %p213
      %p290 = pneg %p210
      %p291 = scmp.lt.s32.totalorder %s19, 1
      %s292 = scalar_select %p291, %s19, 1
      %s293 = smul.addr %s292, 2
      %s294 = smul.addr %s293, 4
      %s295 = scalar_lea.vmem %s8, %s294
      %p296 = scmp.lt.s32.totalorder %s19, 1
      %s297 = scalar_select %p296, %s19, 1
      %s298 = smul.addr %s297, 2
      %s299 = smul.addr %s298, 4
      %s300 = scalar_lea.vmem %s0, %s299
      %p301 = scmp.lt.s32.totalorder %s19, 1
      %s302 = scalar_select %p301, %s19, 1
      %s303 = smul.addr %s302, 2
      %s304 = smul.addr %s303, 4
      %s305 = scalar_lea.vmem %s8, %s304
      %v306 = vld [vmem:[%s300] sm:$0xff]
      %v308 = vcombine.high %v306, %v306
      %310 = vrot.lane.b32.xlu0 %v306, 17
      %v311 = vpop.permute.xlu0 %310
      %312 = vrot.lane.b32.xlu0 %v308, 17
      %v313 = vpop.permute.xlu0 %312
      %v314 = vlaneseq
      %v315 = vand.u32 %v314, 127
      %vm316 = vcmp.lt.s32.totalorder %v315, 17
      %v317 = vsel %vm316, %v311, %v313
      %v318 = vsel %vm316, %v313, %v311
      %v319 = vld [vmem:[%s1] ss:$8 sm:$0x3]
      %v321 = vlaneseq
      %v322 = vshrl.u32 %v321, 7
      %v323 = vsub.s32 0, %v322
      %v324 = vrot.slane %v319, %v323
      %v325 = vlaneseq
      %v326 = vshrl.u32 %v325, 7
      %v327 = vsub.s32 1, %v326
      %v328 = vrot.slane %v319, %v327
      %v331 = vmul.f32 %v318, %v324
      %v332 = vmul.f32 %v317, %v328
      %333 = vrot.lane.b32.xlu0 %v306, 16
      %v334 = vpop.permute.xlu0 %333
      %335 = vrot.lane.b32.xlu0 %v308, 16
      %v336 = vpop.permute.xlu0 %335
      %vm337 = vcmp.lt.s32.totalorder %v315, 16
      %v338 = vsel %vm337, %v334, %v336
      %v339 = vsel %vm337, %v336, %v334
      %s340 = scalar_lea.vmem %s1, 1
      %v341 = vld [vmem:[%s340] ss:$8 sm:$0x3]
      %v343 = vlaneseq
      %v344 = vshrl.u32 %v343, 7
      %v345 = vsub.s32 0, %v344
      %v346 = vrot.slane %v341, %v345
      %v347 = vlaneseq
      %v348 = vshrl.u32 %v347, 7
      %v349 = vsub.s32 1, %v348
      %v350 = vrot.slane %v341, %v349
      %v353 = vmul.f32 %v339, %v346
      %v354 = vmul.f32 %v338, %v350
      %355 = vrot.lane.b32.xlu0 %v306, 15
      %v356 = vpop.permute.xlu0 %355
      %357 = vrot.lane.b32.xlu0 %v308, 15
      %v358 = vpop.permute.xlu0 %357
      %vm359 = vcmp.lt.s32.totalorder %v315, 15
      %v360 = vsel %vm359, %v356, %v358
      %v361 = vsel %vm359, %v358, %v356
      %s362 = scalar_lea.vmem %s1, 2
      %v363 = vld [vmem:[%s362] ss:$8 sm:$0x3]
      %v365 = vlaneseq
      %v366 = vshrl.u32 %v365, 7
      %v367 = vsub.s32 0, %v366
      %v368 = vrot.slane %v363, %v367
      %v369 = vlaneseq
      %v370 = vshrl.u32 %v369, 7
      %v371 = vsub.s32 1, %v370
      %v372 = vrot.slane %v363, %v371
      %v375 = vmul.f32 %v361, %v368
      %v376 = vmul.f32 %v360, %v372
      %377 = vrot.lane.b32.xlu0 %v306, 1
      %v378 = vpop.permute.xlu0 %377
      %379 = vrot.lane.b32.xlu0 %v308, 1
      %v380 = vpop.permute.xlu0 %379
      %vm381 = vcmp.lt.s32.totalorder %v315, 1
      %v382 = vsel %vm381, %v378, %v380
      %v383 = vsel %vm381, %v380, %v378
      %s384 = scalar_lea.vmem %s1, 3
      %v385 = vld [vmem:[%s384] ss:$8 sm:$0x3]
      %v387 = vlaneseq
      %v388 = vshrl.u32 %v387, 7
      %v389 = vsub.s32 0, %v388
      %v390 = vrot.slane %v385, %v389
      %v391 = vlaneseq
      %v392 = vshrl.u32 %v391, 7
      %v393 = vsub.s32 1, %v392
      %v394 = vrot.slane %v385, %v393
      %v397 = vmul.f32 %v383, %v390
      %v398 = vmul.f32 %v382, %v394
      %399 = vrot.lane.b32.xlu0 %v306, 127
      %v400 = vpop.permute.xlu0 %399
      %401 = vrot.lane.b32.xlu0 %v308, 127
      %v402 = vpop.permute.xlu0 %401
      %vm403 = vcmp.lt.s32.totalorder %v315, 127
      %v404 = vsel %vm403, %v400, %v402
      %v405 = vsel %vm403, %v402, %v400
      %s406 = scalar_lea.vmem %s1, 5
      %v407 = vld [vmem:[%s406] ss:$8 sm:$0x3]
      %v409 = vlaneseq
      %v410 = vshrl.u32 %v409, 7
      %v411 = vsub.s32 0, %v410
      %v412 = vrot.slane %v407, %v411
      %v413 = vlaneseq
      %v414 = vshrl.u32 %v413, 7
      %v415 = vsub.s32 1, %v414
      %v416 = vrot.slane %v407, %v415
      %v419 = vmul.f32 %v404, %v412
      %v420 = vmul.f32 %v405, %v416
      %421 = vrot.lane.b32.xlu0 %v306, 113
      %v422 = vpop.permute.xlu0 %421
      %423 = vrot.lane.b32.xlu0 %v308, 113
      %v424 = vpop.permute.xlu0 %423
      %vm425 = vcmp.lt.s32.totalorder %v315, 113
      %v426 = vsel %vm425, %v422, %v424
      %v427 = vsel %vm425, %v424, %v422
      %s428 = scalar_lea.vmem %s1, 6
      %v429 = vld [vmem:[%s428] ss:$8 sm:$0x3]
      %v431 = vlaneseq
      %v432 = vshrl.u32 %v431, 7
      %v433 = vsub.s32 0, %v432
      %v434 = vrot.slane %v429, %v433
      %v435 = vlaneseq
      %v436 = vshrl.u32 %v435, 7
      %v437 = vsub.s32 1, %v436
      %v438 = vrot.slane %v429, %v437
      %v441 = vmul.f32 %v426, %v434
      %v442 = vmul.f32 %v427, %v438
      %443 = vrot.lane.b32.xlu0 %v306, 112
      %v444 = vpop.permute.xlu0 %443
      %445 = vrot.lane.b32.xlu0 %v308, 112
      %v446 = vpop.permute.xlu0 %445
      %vm447 = vcmp.lt.s32.totalorder %v315, 112
      %v448 = vsel %vm447, %v444, %v446
      %v449 = vsel %vm447, %v446, %v444
      %s450 = scalar_lea.vmem %s1, 7
      %v451 = vld [vmem:[%s450] ss:$8 sm:$0x3]
      %v453 = vlaneseq
      %v454 = vshrl.u32 %v453, 7
      %v455 = vsub.s32 0, %v454
      %v456 = vrot.slane %v451, %v455
      %v457 = vlaneseq
      %v458 = vshrl.u32 %v457, 7
      %v459 = vsub.s32 1, %v458
      %v460 = vrot.slane %v451, %v459
      %v463 = vmul.f32 %v448, %v456
      %v464 = vmul.f32 %v449, %v460
      %465 = vrot.lane.b32.xlu0 %v306, 111
      %v466 = vpop.permute.xlu0 %465
      %467 = vrot.lane.b32.xlu0 %v308, 111
      %v468 = vpop.permute.xlu0 %467
      %vm469 = vcmp.lt.s32.totalorder %v315, 111
      %v470 = vsel %vm469, %v466, %v468
      %v471 = vsel %vm469, %v468, %v466
      %s472 = scalar_lea.vmem %s1, 16
      %v473 = vld [vmem:[%s472] ss:$8 sm:$0x3]
      %v475 = vlaneseq
      %v476 = vshrl.u32 %v475, 7
      %v477 = vsub.s32 0, %v476
      %v478 = vrot.slane %v473, %v477
      %v479 = vlaneseq
      %v480 = vshrl.u32 %v479, 7
      %v481 = vsub.s32 1, %v480
      %v482 = vrot.slane %v473, %v481
      %v485 = vmul.f32 %v470, %v478
      %v486 = vmul.f32 %v471, %v482
      %v489 = vrot.slane %v353, 4
      %v490 = vrot.slane %v354, 4
      %v495 = vrot.slane %v397, 4
      %v496 = vrot.slane %v398, 4
      %v501 = vrot.slane %v419, 4
      %v502 = vrot.slane %v420, 4
      %v507 = vrot.slane %v463, 4
      %v508 = vrot.slane %v464, 4
      %vm511 = vcmask 1043456
      %v512 = vsel %vm511, %v331, %v489
      %v513 = vsel %vm511, %v332, %v490
      %v514 = vsel %vm511, %v375, %v495
      %v515 = vsel %vm511, %v376, %v496
      %v516 = vsel %vm511, %v306, %v501
      %v517 = vsel %vm511, %v308, %v502
      %v518 = vsel %vm511, %v441, %v507
      %v519 = vsel %vm511, %v442, %v508
      %v520 = vsel %vm511, %v485, 1.0
      %v521 = vsel %vm511, %v486, 1.0
      %vm522 = vcmask 1044480
      %v523 = vsel %vm522, %v520, 0.0
      %v524 = vsel %vm522, %v521, 0.0
      %525 = vst [vmem:[#allocation2] sm:$0xff] %v512
      %526 = vst [vmem:[#allocation2 + $0x8] sm:$0xff] %v513
      %527 = vst [vmem:[#allocation2 + $0x10] sm:$0xff] %v514
      %528 = vst [vmem:[#allocation2 + $0x18] sm:$0xff] %v515
      %529 = vst [vmem:[#allocation2 + $0x20] sm:$0xff] %v516
      %530 = vst [vmem:[#allocation2 + $0x28] sm:$0xff] %v517
      %531 = vst [vmem:[#allocation2 + $0x30] sm:$0xff] %v518
      %532 = vst [vmem:[#allocation2 + $0x38] sm:$0xff] %v519
      %533 = vst [vmem:[#allocation2 + $0x40] sm:$0xff] %v523
      %534 = vst [vmem:[#allocation2 + $0x48] sm:$0xff] %v524
      %v535 = vld [vmem:[%s2] sm:$0xf]
      %v536 = vld [vmem:[#allocation2] sm:$0xff]
      %v537 = vld [vmem:[#allocation2 + $0x8] sm:$0xff]
      %v538 = vld [vmem:[#allocation2 + $0x10] sm:$0xff]
      %v539 = vld [vmem:[#allocation2 + $0x18] sm:$0xff]
      %v540 = vld [vmem:[#allocation2 + $0x20] sm:$0xff]
      %v541 = vld [vmem:[#allocation2 + $0x28] sm:$0xff]
      %v542 = vld [vmem:[#allocation2 + $0x30] sm:$0xff]
      %v543 = vld [vmem:[#allocation2 + $0x38] sm:$0xff]
      %v544 = vld [vmem:[#allocation2 + $0x40] sm:$0xff]
      %v545 = vld [vmem:[#allocation2 + $0x48] sm:$0xff]
      %vm546 = vcmask 326656
      %v548 = vsel %vm546, %v535, 0
      %v550 = vand.u32 %v537, 4294901760
      %551 = vmatprep.subr.mxu0 %v550
      %v552 = vand.u32 %v536, 4294901760
      %553 = vmatpush1.msra.mxu0 %v552
      %v554 = vand.u32 %v539, 4294901760
      %555 = vmatprep.subr.mxu0 %v554
      %v556 = vand.u32 %v538, 4294901760
      %557 = vmatpush1.msra.mxu0 %v556
      %v558 = vand.u32 %v541, 4294901760
      %559 = vmatprep.subr.mxu0 %v558
      %v560 = vand.u32 %v540, 4294901760
      %561 = vmatpush1.msra.mxu0 %v560
      %v562 = vand.u32 %v543, 4294901760
      %563 = vmatprep.subr.mxu0 %v562
      %v564 = vand.u32 %v542, 4294901760
      %565 = vmatpush1.msra.mxu0 %v564
      %v566 = vand.u32 %v545, 4294901760
      %567 = vmatprep.subr.mxu0 %v566
      %v568 = vand.u32 %v544, 4294901760
      %569 = vmatpush1.msra.mxu0 %v568
      %570 = vmatprep.subr.mxu0 0.0
      %571 = vmatpush1.msra.mxu0 0.0
      %572 = vmatprep.subr.mxu0 0.0
      %573 = vmatpush1.msra.mxu0 0.0
      %574 = vmatprep.subr.mxu0 0.0
      %575 = vmatpush1.msra.mxu0 0.0
      %576 = vmatprep.subr.mxu0 0.0
      %577 = vmatpush1.msra.mxu0 0.0
      %578 = vmatprep.subr.mxu0 0.0
      %579 = vmatpush1.msra.mxu0 0.0
      %580 = vmatprep.subr.mxu0 0.0
      %581 = vmatpush1.msra.mxu0 0.0
      %582 = vmatprep.subr.mxu0 0.0
      %583 = vmatpush1.msra.mxu0 0.0
      %584 = vmatprep.subr.mxu0 0.0
      %585 = vmatpush1.msra.mxu0 0.0
      %586 = vmatprep.subr.mxu0 0.0
      %587 = vmatpush1.msra.mxu0 0.0
      %588 = vmatprep.subr.mxu0 0.0
      %589 = vmatpush1.msra.mxu0 0.0
      %590 = vmatprep.subr.mxu0 0.0
      %591 = vmatpush1.msra.mxu0 0.0
      %592 = vmatprep.subr.mxu0 0.0
      %593 = vmatpush1.msra.mxu0 0.0
      %594 = vmatprep.subr.mxu0 0.0
      %595 = vmatpush1.msra.mxu0 0.0
      %596 = vmatprep.subr.mxu0 0.0
      %597 = vmatpush1.msra.mxu0 0.0
      %598 = vmatprep.subr.mxu0 0.0
      %599 = vmatpush1.msra.mxu0 0.0
      %600 = vmatprep.subr.mxu0 0.0
      %601 = vmatpush1.msra.mxu0 0.0
      %602 = vmatprep.subr.mxu0 0.0
      %603 = vmatpush1.msra.mxu0 0.0
      %604 = vmatprep.subr.mxu0 0.0
      %605 = vmatpush1.msra.mxu0 0.0
      %606 = vmatprep.subr.mxu0 0.0
      %607 = vmatpush1.msra.mxu0 0.0
      %608 = vmatprep.subr.mxu0 0.0
      %609 = vmatpush1.msra.mxu0 0.0
      %610 = vmatprep.subr.mxu0 0.0
      %611 = vmatpush1.msra.mxu0 0.0
      %612 = vmatprep.subr.mxu0 0.0
      %613 = vmatpush1.msra.mxu0 0.0
      %614 = vmatprep.subr.mxu0 0.0
      %615 = vmatpush1.msra.mxu0 0.0
      %616 = vmatprep.subr.mxu0 0.0
      %617 = vmatpush1.msra.mxu0 0.0
      %618 = vmatprep.subr.mxu0 0.0
      %619 = vmatpush1.msra.mxu0 0.0
      %620 = vmatprep.subr.mxu0 0.0
      %621 = vmatpush1.msra.mxu0 0.0
      %622 = vmatprep.subr.mxu0 0.0
      %623 = vmatpush1.msra.mxu0 0.0
      %624 = vmatprep.mubr.f32.mxu0 0.0
      %v625 = vand.u32 %v548, 4294901760
      %v626 = vsub.f32 %v548, %v625
      %v627 = vand.u32 %v626, 4294901760
      %v628 = vsub.f32 %v626, %v627
      %v629 = vand.u32 %v628, 4294901760
      %630 = vmatmul.mubr.f32.gmra.mrb[0].mxu0 %v629
      %v631 = vpop.f32.mrb[0].mxu0
      %v632 = vadd.f32 0.0, %v631
      %v633 = vpop.f32.mrb[0].mxu0
      %v634 = vadd.f32 0.0, %v633
      %635 = vdwg.mxu0
      %v636 = vand.u32 %v537, 4294901760
      %v637 = vsub.f32 %v537, %v636
      %v638 = vand.u32 %v637, 4294901760
      %v639 = vsub.f32 %v637, %v638
      %v640 = vand.u32 %v639, 4294901760
      %641 = vmatprep.subr.mxu0 %v640
      %v642 = vand.u32 %v536, 4294901760
      %v643 = vsub.f32 %v536, %v642
      %v644 = vand.u32 %v643, 4294901760
      %v645 = vsub.f32 %v643, %v644
      %v646 = vand.u32 %v645, 4294901760
      %647 = vmatpush1.msra.mxu0 %v646
      %v648 = vand.u32 %v539, 4294901760
      %v649 = vsub.f32 %v539, %v648
      %v650 = vand.u32 %v649, 4294901760
      %v651 = vsub.f32 %v649, %v650
      %v652 = vand.u32 %v651, 4294901760
      %653 = vmatprep.subr.mxu0 %v652
      %v654 = vand.u32 %v538, 4294901760
      %v655 = vsub.f32 %v538, %v654
      %v656 = vand.u32 %v655, 4294901760
      %v657 = vsub.f32 %v655, %v656
      %v658 = vand.u32 %v657, 4294901760
      %659 = vmatpush1.msra.mxu0 %v658
      %v660 = vand.u32 %v541, 4294901760
      %v661 = vsub.f32 %v541, %v660
      %v662 = vand.u32 %v661, 4294901760
      %v663 = vsub.f32 %v661, %v662
      %v664 = vand.u32 %v663, 4294901760
      %665 = vmatprep.subr.mxu0 %v664
      %v666 = vand.u32 %v540, 4294901760
      %v667 = vsub.f32 %v540, %v666
      %v668 = vand.u32 %v667, 4294901760
      %v669 = vsub.f32 %v667, %v668
      %v670 = vand.u32 %v669, 4294901760
      %671 = vmatpush1.msra.mxu0 %v670
      %v672 = vand.u32 %v543, 4294901760
      %v673 = vsub.f32 %v543, %v672
      %v674 = vand.u32 %v673, 4294901760
      %v675 = vsub.f32 %v673, %v674
      %v676 = vand.u32 %v675, 4294901760
      %677 = vmatprep.subr.mxu0 %v676
      %v678 = vand.u32 %v542, 4294901760
      %v679 = vsub.f32 %v542, %v678
      %v680 = vand.u32 %v679, 4294901760
      %v681 = vsub.f32 %v679, %v680
      %v682 = vand.u32 %v681, 4294901760
      %683 = vmatpush1.msra.mxu0 %v682
      %v684 = vand.u32 %v545, 4294901760
      %v685 = vsub.f32 %v545, %v684
      %v686 = vand.u32 %v685, 4294901760
      %v687 = vsub.f32 %v685, %v686
      %v688 = vand.u32 %v687, 4294901760
      %689 = vmatprep.subr.mxu0 %v688
      %v690 = vand.u32 %v544, 4294901760
      %v691 = vsub.f32 %v544, %v690
      %v692 = vand.u32 %v691, 4294901760
      %v693 = vsub.f32 %v691, %v692
      %v694 = vand.u32 %v693, 4294901760
      %695 = vmatpush1.msra.mxu0 %v694
      %696 = vmatprep.subr.mxu0 0.0
      %697 = vmatpush1.msra.mxu0 0.0
      %698 = vmatprep.subr.mxu0 0.0
      %699 = vmatpush1.msra.mxu0 0.0
      %700 = vmatprep.subr.mxu0 0.0
      %701 = vmatpush1.msra.mxu0 0.0
      %702 = vmatprep.subr.mxu0 0.0
      %703 = vmatpush1.msra.mxu0 0.0
      %704 = vmatprep.subr.mxu0 0.0
      %705 = vmatpush1.msra.mxu0 0.0
      %706 = vmatprep.subr.mxu0 0.0
      %707 = vmatpush1.msra.mxu0 0.0
      %708 = vmatprep.subr.mxu0 0.0
      %709 = vmatpush1.msra.mxu0 0.0
      %710 = vmatprep.subr.mxu0 0.0
      %711 = vmatpush1.msra.mxu0 0.0
      %712 = vmatprep.subr.mxu0 0.0
      %713 = vmatpush1.msra.mxu0 0.0
      %714 = vmatprep.subr.mxu0 0.0
      %715 = vmatpush1.msra.mxu0 0.0
      %716 = vmatprep.subr.mxu0 0.0
      %717 = vmatpush1.msra.mxu0 0.0
      %718 = vmatprep.subr.mxu0 0.0
      %719 = vmatpush1.msra.mxu0 0.0
      %720 = vmatprep.subr.mxu0 0.0
      %721 = vmatpush1.msra.mxu0 0.0
      %722 = vmatprep.subr.mxu0 0.0
      %723 = vmatpush1.msra.mxu0 0.0
      %724 = vmatprep.subr.mxu0 0.0
      %725 = vmatpush1.msra.mxu0 0.0
      %726 = vmatprep.subr.mxu0 0.0
      %727 = vmatpush1.msra.mxu0 0.0
      %728 = vmatprep.subr.mxu0 0.0
      %729 = vmatpush1.msra.mxu0 0.0
      %730 = vmatprep.subr.mxu0 0.0
      %731 = vmatpush1.msra.mxu0 0.0
      %732 = vmatprep.subr.mxu0 0.0
      %733 = vmatpush1.msra.mxu0 0.0
      %734 = vmatprep.subr.mxu0 0.0
      %735 = vmatpush1.msra.mxu0 0.0
      %736 = vmatprep.subr.mxu0 0.0
      %737 = vmatpush1.msra.mxu0 0.0
      %738 = vmatprep.subr.mxu0 0.0
      %739 = vmatpush1.msra.mxu0 0.0
      %740 = vmatprep.subr.mxu0 0.0
      %741 = vmatpush1.msra.mxu0 0.0
      %742 = vmatprep.subr.mxu0 0.0
      %743 = vmatpush1.msra.mxu0 0.0
      %744 = vmatprep.subr.mxu0 0.0
      %745 = vmatpush1.msra.mxu0 0.0
      %746 = vmatprep.subr.mxu0 0.0
      %747 = vmatpush1.msra.mxu0 0.0
      %748 = vmatprep.subr.mxu0 0.0
      %749 = vmatpush1.msra.mxu0 0.0
      %750 = vmatprep.mubr.f32.mxu0 0.0
      %v751 = vand.u32 %v548, 4294901760
      %752 = vmatmul.mubr.f32.gmra.mrb[0].mxu0 %v751
      %v753 = vpop.f32.mrb[0].mxu0
      %v754 = vadd.f32 %v632, %v753
      %v755 = vpop.f32.mrb[0].mxu0
      %v756 = vadd.f32 %v634, %v755
      %757 = vdwg.mxu0
      %v758 = vand.u32 %v537, 4294901760
      %v759 = vsub.f32 %v537, %v758
      %760 = vmatprep.subr.mxu0 %v759
      %v761 = vand.u32 %v536, 4294901760
      %v762 = vsub.f32 %v536, %v761
      %763 = vmatpush1.msra.mxu0 %v762
      %v764 = vand.u32 %v539, 4294901760
      %v765 = vsub.f32 %v539, %v764
      %766 = vmatprep.subr.mxu0 %v765
      %v767 = vand.u32 %v538, 4294901760
      %v768 = vsub.f32 %v538, %v767
      %769 = vmatpush1.msra.mxu0 %v768
      %v770 = vand.u32 %v541, 4294901760
      %v771 = vsub.f32 %v541, %v770
      %772 = vmatprep.subr.mxu0 %v771
      %v773 = vand.u32 %v540, 4294901760
      %v774 = vsub.f32 %v540, %v773
      %775 = vmatpush1.msra.mxu0 %v774
      %v776 = vand.u32 %v543, 4294901760
      %v777 = vsub.f32 %v543, %v776
      %778 = vmatprep.subr.mxu0 %v777
      %v779 = vand.u32 %v542, 4294901760
      %v780 = vsub.f32 %v542, %v779
      %781 = vmatpush1.msra.mxu0 %v780
      %v782 = vand.u32 %v545, 4294901760
      %v783 = vsub.f32 %v545, %v782
      %784 = vmatprep.subr.mxu0 %v783
      %v785 = vand.u32 %v544, 4294901760
      %v786 = vsub.f32 %v544, %v785
      %787 = vmatpush1.msra.mxu0 %v786
      %788 = vmatprep.subr.mxu0 0.0
      %789 = vmatpush1.msra.mxu0 0.0
      %790 = vmatprep.subr.mxu0 0.0
      %791 = vmatpush1.msra.mxu0 0.0
      %792 = vmatprep.subr.mxu0 0.0
      %793 = vmatpush1.msra.mxu0 0.0
      %794 = vmatprep.subr.mxu0 0.0
      %795 = vmatpush1.msra.mxu0 0.0
      %796 = vmatprep.subr.mxu0 0.0
      %797 = vmatpush1.msra.mxu0 0.0
      %798 = vmatprep.subr.mxu0 0.0
      %799 = vmatpush1.msra.mxu0 0.0
      %800 = vmatprep.subr.mxu0 0.0
      %801 = vmatpush1.msra.mxu0 0.0
      %802 = vmatprep.subr.mxu0 0.0
      %803 = vmatpush1.msra.mxu0 0.0
      %804 = vmatprep.subr.mxu0 0.0
      %805 = vmatpush1.msra.mxu0 0.0
      %806 = vmatprep.subr.mxu0 0.0
      %807 = vmatpush1.msra.mxu0 0.0
      %808 = vmatprep.subr.mxu0 0.0
      %809 = vmatpush1.msra.mxu0 0.0
      %810 = vmatprep.subr.mxu0 0.0
      %811 = vmatpush1.msra.mxu0 0.0
      %812 = vmatprep.subr.mxu0 0.0
      %813 = vmatpush1.msra.mxu0 0.0
      %814 = vmatprep.subr.mxu0 0.0
      %815 = vmatpush1.msra.mxu0 0.0
      %816 = vmatprep.subr.mxu0 0.0
      %817 = vmatpush1.msra.mxu0 0.0
      %818 = vmatprep.subr.mxu0 0.0
      %819 = vmatpush1.msra.mxu0 0.0
      %820 = vmatprep.subr.mxu0 0.0
      %821 = vmatpush1.msra.mxu0 0.0
      %822 = vmatprep.subr.mxu0 0.0
      %823 = vmatpush1.msra.mxu0 0.0
      %824 = vmatprep.subr.mxu0 0.0
      %825 = vmatpush1.msra.mxu0 0.0
      %826 = vmatprep.subr.mxu0 0.0
      %827 = vmatpush1.msra.mxu0 0.0
      %828 = vmatprep.subr.mxu0 0.0
      %829 = vmatpush1.msra.mxu0 0.0
      %830 = vmatprep.subr.mxu0 0.0
      %831 = vmatpush1.msra.mxu0 0.0
      %832 = vmatprep.subr.mxu0 0.0
      %833 = vmatpush1.msra.mxu0 0.0
      %834 = vmatprep.subr.mxu0 0.0
      %835 = vmatpush1.msra.mxu0 0.0
      %836 = vmatprep.subr.mxu0 0.0
      %837 = vmatpush1.msra.mxu0 0.0
      %838 = vmatprep.subr.mxu0 0.0
      %839 = vmatpush1.msra.mxu0 0.0
      %840 = vmatprep.subr.mxu0 0.0
      %841 = vmatpush1.msra.mxu0 0.0
      %842 = vmatprep.mubr.f32.mxu0 0.0
      %v843 = vand.u32 %v548, 4294901760
      %v844 = vsub.f32 %v548, %v843
      %845 = vmatmul.mubr.f32.gmra.mrb[0].mxu0 %v844
      %v846 = vpop.f32.mrb[0].mxu0
      %v847 = vadd.f32 %v754, %v846
      %v848 = vpop.f32.mrb[0].mxu0
      %v849 = vadd.f32 %v756, %v848
      %850 = vdwg.mxu0
      %v851 = vand.u32 %v537, 4294901760
      %852 = vmatprep.subr.mxu0 %v851
      %v853 = vand.u32 %v536, 4294901760
      %854 = vmatpush1.msra.mxu0 %v853
      %v855 = vand.u32 %v539, 4294901760
      %856 = vmatprep.subr.mxu0 %v855
      %v857 = vand.u32 %v538, 4294901760
      %858 = vmatpush1.msra.mxu0 %v857
      %v859 = vand.u32 %v541, 4294901760
      %860 = vmatprep.subr.mxu0 %v859
      %v861 = vand.u32 %v540, 4294901760
      %862 = vmatpush1.msra.mxu0 %v861
      %v863 = vand.u32 %v543, 4294901760
      %864 = vmatprep.subr.mxu0 %v863
      %v865 = vand.u32 %v542, 4294901760
      %866 = vmatpush1.msra.mxu0 %v865
      %v867 = vand.u32 %v545, 4294901760
      %868 = vmatprep.subr.mxu0 %v867
      %v869 = vand.u32 %v544, 4294901760
      %870 = vmatpush1.msra.mxu0 %v869
      %871 = vmatprep.subr.mxu0 0.0
      %872 = vmatpush1.msra.mxu0 0.0
      %873 = vmatprep.subr.mxu0 0.0
      %874 = vmatpush1.msra.mxu0 0.0
      %875 = vmatprep.subr.mxu0 0.0
      %876 = vmatpush1.msra.mxu0 0.0
      %877 = vmatprep.subr.mxu0 0.0
      %878 = vmatpush1.msra.mxu0 0.0
      %879 = vmatprep.subr.mxu0 0.0
      %880 = vmatpush1.msra.mxu0 0.0
      %881 = vmatprep.subr.mxu0 0.0
      %882 = vmatpush1.msra.mxu0 0.0
      %883 = vmatprep.subr.mxu0 0.0
      %884 = vmatpush1.msra.mxu0 0.0
      %885 = vmatprep.subr.mxu0 0.0
      %886 = vmatpush1.msra.mxu0 0.0
      %887 = vmatprep.subr.mxu0 0.0
      %888 = vmatpush1.msra.mxu0 0.0
      %889 = vmatprep.subr.mxu0 0.0
      %890 = vmatpush1.msra.mxu0 0.0
      %891 = vmatprep.subr.mxu0 0.0
      %892 = vmatpush1.msra.mxu0 0.0
      %893 = vmatprep.subr.mxu0 0.0
      %894 = vmatpush1.msra.mxu0 0.0
      %895 = vmatprep.subr.mxu0 0.0
      %896 = vmatpush1.msra.mxu0 0.0
      %897 = vmatprep.subr.mxu0 0.0
      %898 = vmatpush1.msra.mxu0 0.0
      %899 = vmatprep.subr.mxu0 0.0
      %900 = vmatpush1.msra.mxu0 0.0
      %901 = vmatprep.subr.mxu0 0.0
      %902 = vmatpush1.msra.mxu0 0.0
      %903 = vmatprep.subr.mxu0 0.0
      %904 = vmatpush1.msra.mxu0 0.0
      %905 = vmatprep.subr.mxu0 0.0
      %906 = vmatpush1.msra.mxu0 0.0
      %907 = vmatprep.subr.mxu0 0.0
      %908 = vmatpush1.msra.mxu0 0.0
      %909 = vmatprep.subr.mxu0 0.0
      %910 = vmatpush1.msra.mxu0 0.0
      %911 = vmatprep.subr.mxu0 0.0
      %912 = vmatpush1.msra.mxu0 0.0
      %913 = vmatprep.subr.mxu0 0.0
      %914 = vmatpush1.msra.mxu0 0.0
      %915 = vmatprep.subr.mxu0 0.0
      %916 = vmatpush1.msra.mxu0 0.0
      %917 = vmatprep.subr.mxu0 0.0
      %918 = vmatpush1.msra.mxu0 0.0
      %919 = vmatprep.subr.mxu0 0.0
      %920 = vmatpush1.msra.mxu0 0.0
      %921 = vmatprep.subr.mxu0 0.0
      %922 = vmatpush1.msra.mxu0 0.0
      %923 = vmatprep.subr.mxu0 0.0
      %924 = vmatpush1.msra.mxu0 0.0
      %925 = vmatprep.mubr.f32.mxu0 0.0
      %v926 = vand.u32 %v548, 4294901760
      %v927 = vsub.f32 %v548, %v926
      %v928 = vand.u32 %v927, 4294901760
      %929 = vmatmul.mubr.f32.gmra.mrb[0].mxu0 %v928
      %v930 = vpop.f32.mrb[0].mxu0
      %v931 = vadd.f32 %v847, %v930
      %v932 = vpop.f32.mrb[0].mxu0
      %v933 = vadd.f32 %v849, %v932
      %934 = vdwg.mxu0
      %v935 = vand.u32 %v537, 4294901760
      %v936 = vsub.f32 %v537, %v935
      %v937 = vand.u32 %v936, 4294901760
      %938 = vmatprep.subr.mxu0 %v937
      %v939 = vand.u32 %v536, 4294901760
      %v940 = vsub.f32 %v536, %v939
      %v941 = vand.u32 %v940, 4294901760
      %942 = vmatpush1.msra.mxu0 %v941
      %v943 = vand.u32 %v539, 4294901760
      %v944 = vsub.f32 %v539, %v943
      %v945 = vand.u32 %v944, 4294901760
      %946 = vmatprep.subr.mxu0 %v945
      %v947 = vand.u32 %v538, 4294901760
      %v948 = vsub.f32 %v538, %v947
      %v949 = vand.u32 %v948, 4294901760
      %950 = vmatpush1.msra.mxu0 %v949
      %v951 = vand.u32 %v541, 4294901760
      %v952 = vsub.f32 %v541, %v951
      %v953 = vand.u32 %v952, 4294901760
      %954 = vmatprep.subr.mxu0 %v953
      %v955 = vand.u32 %v540, 4294901760
      %v956 = vsub.f32 %v540, %v955
      %v957 = vand.u32 %v956, 4294901760
      %958 = vmatpush1.msra.mxu0 %v957
      %v959 = vand.u32 %v543, 4294901760
      %v960 = vsub.f32 %v543, %v959
      %v961 = vand.u32 %v960, 4294901760
      %962 = vmatprep.subr.mxu0 %v961
      %v963 = vand.u32 %v542, 4294901760
      %v964 = vsub.f32 %v542, %v963
      %v965 = vand.u32 %v964, 4294901760
      %966 = vmatpush1.msra.mxu0 %v965
      %v967 = vand.u32 %v545, 4294901760
      %v968 = vsub.f32 %v545, %v967
      %v969 = vand.u32 %v968, 4294901760
      %970 = vmatprep.subr.mxu0 %v969
      %v971 = vand.u32 %v544, 4294901760
      %v972 = vsub.f32 %v544, %v971
      %v973 = vand.u32 %v972, 4294901760
      %974 = vmatpush1.msra.mxu0 %v973
      %975 = vmatprep.subr.mxu0 0.0
      %976 = vmatpush1.msra.mxu0 0.0
      %977 = vmatprep.subr.mxu0 0.0
      %978 = vmatpush1.msra.mxu0 0.0
      %979 = vmatprep.subr.mxu0 0.0
      %980 = vmatpush1.msra.mxu0 0.0
      %981 = vmatprep.subr.mxu0 0.0
      %982 = vmatpush1.msra.mxu0 0.0
      %983 = vmatprep.subr.mxu0 0.0
      %984 = vmatpush1.msra.mxu0 0.0
      %985 = vmatprep.subr.mxu0 0.0
      %986 = vmatpush1.msra.mxu0 0.0
      %987 = vmatprep.subr.mxu0 0.0
      %988 = vmatpush1.msra.mxu0 0.0
      %989 = vmatprep.subr.mxu0 0.0
      %990 = vmatpush1.msra.mxu0 0.0
      %991 = vmatprep.subr.mxu0 0.0
      %992 = vmatpush1.msra.mxu0 0.0
      %993 = vmatprep.subr.mxu0 0.0
      %994 = vmatpush1.msra.mxu0 0.0
      %995 = vmatprep.subr.mxu0 0.0
      %996 = vmatpush1.msra.mxu0 0.0
      %997 = vmatprep.subr.mxu0 0.0
      %998 = vmatpush1.msra.mxu0 0.0
      %999 = vmatprep.subr.mxu0 0.0
      %1000 = vmatpush1.msra.mxu0 0.0
      %1001 = vmatprep.subr.mxu0 0.0
      %1002 = vmatpush1.msra.mxu0 0.0
      %1003 = vmatprep.subr.mxu0 0.0
      %1004 = vmatpush1.msra.mxu0 0.0
      %1005 = vmatprep.subr.mxu0 0.0
      %1006 = vmatpush1.msra.mxu0 0.0
      %1007 = vmatprep.subr.mxu0 0.0
      %1008 = vmatpush1.msra.mxu0 0.0
      %1009 = vmatprep.subr.mxu0 0.0
      %1010 = vmatpush1.msra.mxu0 0.0
      %1011 = vmatprep.subr.mxu0 0.0
      %1012 = vmatpush1.msra.mxu0 0.0
      %1013 = vmatprep.subr.mxu0 0.0
      %1014 = vmatpush1.msra.mxu0 0.0
      %1015 = vmatprep.subr.mxu0 0.0
      %1016 = vmatpush1.msra.mxu0 0.0
      %1017 = vmatprep.subr.mxu0 0.0
      %1018 = vmatpush1.msra.mxu0 0.0
      %1019 = vmatprep.subr.mxu0 0.0
      %1020 = vmatpush1.msra.mxu0 0.0
      %1021 = vmatprep.subr.mxu0 0.0
      %1022 = vmatpush1.msra.mxu0 0.0
      %1023 = vmatprep.subr.mxu0 0.0
      %1024 = vmatpush1.msra.mxu0 0.0
      %1025 = vmatprep.subr.mxu0 0.0
      %1026 = vmatpush1.msra.mxu0 0.0
      %1027 = vmatprep.subr.mxu0 0.0
      %1028 = vmatpush1.msra.mxu0 0.0
      %1029 = vmatprep.mubr.f32.mxu0 0.0
      %v1030 = vand.u32 %v548, 4294901760
      %1031 = vmatmul.mubr.f32.gmra.mrb[0].mxu0 %v1030
      %v1032 = vpop.f32.mrb[0].mxu0
      %v1033 = vadd.f32 %v931, %v1032
      %v1034 = vpop.f32.mrb[0].mxu0
      %v1035 = vadd.f32 %v933, %v1034
      %1036 = vdwg.mxu0
      %v1037 = vand.u32 %v537, 4294901760
      %1038 = vmatprep.subr.mxu0 %v1037
      %v1039 = vand.u32 %v536, 4294901760
      %1040 = vmatpush1.msra.mxu0 %v1039
      %v1041 = vand.u32 %v539, 4294901760
      %1042 = vmatprep.subr.mxu0 %v1041
      %v1043 = vand.u32 %v538, 4294901760
      %1044 = vmatpush1.msra.mxu0 %v1043
      %v1045 = vand.u32 %v541, 4294901760
      %1046 = vmatprep.subr.mxu0 %v1045
      %v1047 = vand.u32 %v540, 4294901760
      %1048 = vmatpush1.msra.mxu0 %v1047
      %v1049 = vand.u32 %v543, 4294901760
      %1050 = vmatprep.subr.mxu0 %v1049
      %v1051 = vand.u32 %v542, 4294901760
      %1052 = vmatpush1.msra.mxu0 %v1051
      %v1053 = vand.u32 %v545, 4294901760
      %1054 = vmatprep.subr.mxu0 %v1053
      %v1055 = vand.u32 %v544, 4294901760
      %1056 = vmatpush1.msra.mxu0 %v1055
      %1057 = vmatprep.subr.mxu0 0.0
      %1058 = vmatpush1.msra.mxu0 0.0
      %1059 = vmatprep.subr.mxu0 0.0
      %1060 = vmatpush1.msra.mxu0 0.0
      %1061 = vmatprep.subr.mxu0 0.0
      %1062 = vmatpush1.msra.mxu0 0.0
      %1063 = vmatprep.subr.mxu0 0.0
      %1064 = vmatpush1.msra.mxu0 0.0
      %1065 = vmatprep.subr.mxu0 0.0
      %1066 = vmatpush1.msra.mxu0 0.0
      %1067 = vmatprep.subr.mxu0 0.0
      %1068 = vmatpush1.msra.mxu0 0.0
      %1069 = vmatprep.subr.mxu0 0.0
      %1070 = vmatpush1.msra.mxu0 0.0
      %1071 = vmatprep.subr.mxu0 0.0
      %1072 = vmatpush1.msra.mxu0 0.0
      %1073 = vmatprep.subr.mxu0 0.0
      %1074 = vmatpush1.msra.mxu0 0.0
      %1075 = vmatprep.subr.mxu0 0.0
      %1076 = vmatpush1.msra.mxu0 0.0
      %1077 = vmatprep.subr.mxu0 0.0
      %1078 = vmatpush1.msra.mxu0 0.0
      %1079 = vmatprep.subr.mxu0 0.0
      %1080 = vmatpush1.msra.mxu0 0.0
      %1081 = vmatprep.subr.mxu0 0.0
      %1082 = vmatpush1.msra.mxu0 0.0
      %1083 = vmatprep.subr.mxu0 0.0
      %1084 = vmatpush1.msra.mxu0 0.0
      %1085 = vmatprep.subr.mxu0 0.0
      %1086 = vmatpush1.msra.mxu0 0.0
      %1087 = vmatprep.subr.mxu0 0.0
      %1088 = vmatpush1.msra.mxu0 0.0
      %1089 = vmatprep.subr.mxu0 0.0
      %1090 = vmatpush1.msra.mxu0 0.0
      %1091 = vmatprep.subr.mxu0 0.0
      %1092 = vmatpush1.msra.mxu0 0.0
      %1093 = vmatprep.subr.mxu0 0.0
      %1094 = vmatpush1.msra.mxu0 0.0
      %1095 = vmatprep.subr.mxu0 0.0
      %1096 = vmatpush1.msra.mxu0 0.0
      %1097 = vmatprep.subr.mxu0 0.0
      %1098 = vmatpush1.msra.mxu0 0.0
      %1099 = vmatprep.subr.mxu0 0.0
      %1100 = vmatpush1.msra.mxu0 0.0
      %1101 = vmatprep.subr.mxu0 0.0
      %1102 = vmatpush1.msra.mxu0 0.0
      %1103 = vmatprep.subr.mxu0 0.0
      %1104 = vmatpush1.msra.mxu0 0.0
      %1105 = vmatprep.subr.mxu0 0.0
      %1106 = vmatpush1.msra.mxu0 0.0
      %1107 = vmatprep.subr.mxu0 0.0
      %1108 = vmatpush1.msra.mxu0 0.0
      %1109 = vmatprep.subr.mxu0 0.0
      %1110 = vmatpush1.msra.mxu0 0.0
      %1111 = vmatprep.mubr.f32.mxu0 0.0
      %v1112 = vand.u32 %v548, 4294901760
      %1113 = vmatmul.mubr.f32.gmra.mrb[0].mxu0 %v1112
      %v1114 = vpop.f32.mrb[0].mxu0
      %v1115 = vadd.f32 %v1033, %v1114
      %v1116 = vpop.f32.mrb[0].mxu0
      %v1117 = vadd.f32 %v1035, %v1116
      %1118 = vdwg.mxu0
      %v1119 = vsel %vm511, %v1115, 0.0
      %v1120 = vsel %vm511, %v1117, 0.0
      %v1121 = vadd.f32 %v1119, %v1120
      %1122 = vadd.xlane.f32.xlu0 %v1121
      %v1123 = vpop.xlane.xlu0 %1122
      %v1124 = vrot.slane %v1123, 4
      %v1125 = vadd.f32 %v1123, %v1124
      %v1126 = vrot.slane %v1125, 2
      %v1127 = vadd.f32 %v1125, %v1126
      %v1128 = vrot.slane %v1127, 1
      %v1129 = vadd.f32 %v1127, %v1128
      %s1130 = vtos %v1129
      %v1131 = vmul.f32 %v1115, %v1115
      %v1132 = vmul.f32 %v1117, %v1117
      %v1133 = vsel %vm511, %v1131, 0.0
      %v1134 = vsel %vm511, %v1132, 0.0
      %v1135 = vadd.f32 %v1133, %v1134
      %1136 = vadd.xlane.f32.xlu0 %v1135
      %v1137 = vpop.xlane.xlu0 %1136
      %v1138 = vrot.slane %v1137, 4
      %v1139 = vadd.f32 %v1137, %v1138
      %v1140 = vrot.slane %v1139, 2
      %v1141 = vadd.f32 %v1139, %v1140
      %v1142 = vrot.slane %v1141, 1
      %v1143 = vadd.f32 %v1141, %v1142
      %s1144 = vtos %v1143
      %s1145 = smul.f32 %s1130, 0.0009765625
      %s1146 = smul.f32 %s1144, 0.0009765625
      %s1147 = smul.f32 %s1145, %s1145
      %s1148 = ssub.f32 %s1146, %s1147
      %s1149 = sadd.f32 %s1148, 1e-05
      %v1150 = vstv %s1149
      %v1151 = vrsqrt.pop %v1150
      %s1152 = vtos %v1151
      %v1153 = vld [vmem:[%s6] sm:$0xf]
      %v1154 = vstv %s1152
      %v1155 = vmul.f32 %v1153, %v1154
      %v1156 = vld [vmem:[%s7] sm:$0xf]
      %v1157 = vstv %s1145
      %v1158 = vmul.f32 %v1157, %v1155
      %v1159 = vsub.f32 %v1156, %v1158
      %1161 = vset.pattern.permute.xlu0 0
      %1162 = vperm.xlu0 %1161, %v1155
      %v1163 = vpop.permute.xlu0 %1162
      %v1165 = vmul.f32 %v1115, %v1163
      %v1166 = vmul.f32 %v1117, %v1163
      %1168 = vset.pattern.permute.xlu0 0
      %1169 = vperm.xlu0 %1168, %v1159
      %v1170 = vpop.permute.xlu0 %1169
      %v1172 = vadd.f32 %v1165, %v1170
      %v1173 = vadd.f32 %v1166, %v1170
      %v1174 = vmin.f32 %v1172, 0.0
      %v1175 = vmin.f32 %v1173, 0.0
      %vm1176 = vcmp.gt.f32.partialorder %v1172, 0.0
      %vm1177 = vcmp.gt.f32.partialorder %v1173, 0.0
      %v1178 = vmul.f32 %v1174, 1.442695
      %v1179 = vpow.pop %v1178
      %v1180 = vmul.f32 %v1175, 1.442695
      %v1181 = vpow.pop %v1180
      %v1182 = vsub.f32 %v1179, 1.0
      %v1183 = vsub.f32 %v1181, 1.0
      %v1184 = vsel %vm1176, %v1172, %v1182
      %v1185 = vsel %vm1177, %v1173, %v1183
      %1186 = vrot.lane.b32.xlu0 %v1184, 17
      %v1187 = vpop.permute.xlu0 %1186
      %1188 = vrot.lane.b32.xlu0 %v1185, 17
      %v1189 = vpop.permute.xlu0 %1188
      %v1190 = vsel %vm316, %v1187, %v1189
      %v1191 = vsel %vm316, %v1189, %v1187
      %v1192 = vld [vmem:[%s1] ss:$8 sm:$0x3]
      %v1194 = vlaneseq
      %v1195 = vshrl.u32 %v1194, 7
      %v1196 = vsub.s32 0, %v1195
      %v1197 = vrot.slane %v1192, %v1196
      %v1198 = vlaneseq
      %v1199 = vshrl.u32 %v1198, 7
      %v1200 = vsub.s32 1, %v1199
      %v1201 = vrot.slane %v1192, %v1200
      %v1204 = vmul.f32 %v1191, %v1197
      %v1205 = vmul.f32 %v1190, %v1201
      %1206 = vrot.lane.b32.xlu0 %v1184, 16
      %v1207 = vpop.permute.xlu0 %1206
      %1208 = vrot.lane.b32.xlu0 %v1185, 16
      %v1209 = vpop.permute.xlu0 %1208
      %v1210 = vsel %vm337, %v1207, %v1209
      %v1211 = vsel %vm337, %v1209, %v1207
      %v1212 = vld [vmem:[%s340] ss:$8 sm:$0x3]
      %v1214 = vlaneseq
      %v1215 = vshrl.u32 %v1214, 7
      %v1216 = vsub.s32 0, %v1215
      %v1217 = vrot.slane %v1212, %v1216
      %v1218 = vlaneseq
      %v1219 = vshrl.u32 %v1218, 7
      %v1220 = vsub.s32 1, %v1219
      %v1221 = vrot.slane %v1212, %v1220
      %v1224 = vmul.f32 %v1211, %v1217
      %v1225 = vmul.f32 %v1210, %v1221
      %1226 = vrot.lane.b32.xlu0 %v1184, 15
      %v1227 = vpop.permute.xlu0 %1226
      %1228 = vrot.lane.b32.xlu0 %v1185, 15
      %v1229 = vpop.permute.xlu0 %1228
      %v1230 = vsel %vm359, %v1227, %v1229
      %v1231 = vsel %vm359, %v1229, %v1227
      %v1232 = vld [vmem:[%s362] ss:$8 sm:$0x3]
      %v1234 = vlaneseq
      %v1235 = vshrl.u32 %v1234, 7
      %v1236 = vsub.s32 0, %v1235
      %v1237 = vrot.slane %v1232, %v1236
      %v1238 = vlaneseq
      %v1239 = vshrl.u32 %v1238, 7
      %v1240 = vsub.s32 1, %v1239
      %v1241 = vrot.slane %v1232, %v1240
      %v1244 = vmul.f32 %v1231, %v1237
      %v1245 = vmul.f32 %v1230, %v1241
      %1246 = vrot.lane.b32.xlu0 %v1184, 1
      %v1247 = vpop.permute.xlu0 %1246
      %1248 = vrot.lane.b32.xlu0 %v1185, 1
      %v1249 = vpop.permute.xlu0 %1248
      %v1250 = vsel %vm381, %v1247, %v1249
      %v1251 = vsel %vm381, %v1249, %v1247
      %v1252 = vld [vmem:[%s384] ss:$8 sm:$0x3]
      %v1254 = vlaneseq
      %v1255 = vshrl.u32 %v1254, 7
      %v1256 = vsub.s32 0, %v1255
      %v1257 = vrot.slane %v1252, %v1256
      %v1258 = vlaneseq
      %v1259 = vshrl.u32 %v1258, 7
      %v1260 = vsub.s32 1, %v1259
      %v1261 = vrot.slane %v1252, %v1260
      %v1264 = vmul.f32 %v1251, %v1257
      %v1265 = vmul.f32 %v1250, %v1261
      %1266 = vrot.lane.b32.xlu0 %v1184, 127
      %v1267 = vpop.permute.xlu0 %1266
      %1268 = vrot.lane.b32.xlu0 %v1185, 127
      %v1269 = vpop.permute.xlu0 %1268
      %v1270 = vsel %vm403, %v1267, %v1269
      %v1271 = vsel %vm403, %v1269, %v1267
      %v1272 = vld [vmem:[%s406] ss:$8 sm:$0x3]
      %v1274 = vlaneseq
      %v1275 = vshrl.u32 %v1274, 7
      %v1276 = vsub.s32 0, %v1275
      %v1277 = vrot.slane %v1272, %v1276
      %v1278 = vlaneseq
      %v1279 = vshrl.u32 %v1278, 7
      %v1280 = vsub.s32 1, %v1279
      %v1281 = vrot.slane %v1272, %v1280
      %v1284 = vmul.f32 %v1270, %v1277
      %v1285 = vmul.f32 %v1271, %v1281
      %1286 = vrot.lane.b32.xlu0 %v1184, 113
      %v1287 = vpop.permute.xlu0 %1286
      %1288 = vrot.lane.b32.xlu0 %v1185, 113
      %v1289 = vpop.permute.xlu0 %1288
      %v1290 = vsel %vm425, %v1287, %v1289
      %v1291 = vsel %vm425, %v1289, %v1287
      %v1292 = vld [vmem:[%s428] ss:$8 sm:$0x3]
      %v1294 = vlaneseq
      %v1295 = vshrl.u32 %v1294, 7
      %v1296 = vsub.s32 0, %v1295
      %v1297 = vrot.slane %v1292, %v1296
      %v1298 = vlaneseq
      %v1299 = vshrl.u32 %v1298, 7
      %v1300 = vsub.s32 1, %v1299
      %v1301 = vrot.slane %v1292, %v1300
      %v1304 = vmul.f32 %v1290, %v1297
      %v1305 = vmul.f32 %v1291, %v1301
      %1306 = vrot.lane.b32.xlu0 %v1184, 112
      %v1307 = vpop.permute.xlu0 %1306
      %1308 = vrot.lane.b32.xlu0 %v1185, 112
      %v1309 = vpop.permute.xlu0 %1308
      %v1310 = vsel %vm447, %v1307, %v1309
      %v1311 = vsel %vm447, %v1309, %v1307
      %v1312 = vld [vmem:[%s450] ss:$8 sm:$0x3]
      %v1314 = vlaneseq
      %v1315 = vshrl.u32 %v1314, 7
      %v1316 = vsub.s32 0, %v1315
      %v1317 = vrot.slane %v1312, %v1316
      %v1318 = vlaneseq
      %v1319 = vshrl.u32 %v1318, 7
      %v1320 = vsub.s32 1, %v1319
      %v1321 = vrot.slane %v1312, %v1320
      %v1324 = vmul.f32 %v1310, %v1317
      %v1325 = vmul.f32 %v1311, %v1321
      %1326 = vrot.lane.b32.xlu0 %v1184, 111
      %v1327 = vpop.permute.xlu0 %1326
      %1328 = vrot.lane.b32.xlu0 %v1185, 111
      %v1329 = vpop.permute.xlu0 %1328
      %v1330 = vsel %vm469, %v1327, %v1329
      %v1331 = vsel %vm469, %v1329, %v1327
      %v1332 = vld [vmem:[%s472] ss:$8 sm:$0x3]
      %v1334 = vlaneseq
      %v1335 = vshrl.u32 %v1334, 7
      %v1336 = vsub.s32 0, %v1335
      %v1337 = vrot.slane %v1332, %v1336
      %v1338 = vlaneseq
      %v1339 = vshrl.u32 %v1338, 7
      %v1340 = vsub.s32 1, %v1339
      %v1341 = vrot.slane %v1332, %v1340
      %v1344 = vmul.f32 %v1330, %v1337
      %v1345 = vmul.f32 %v1331, %v1341
      %v1348 = vrot.slane %v1224, 4
      %v1349 = vrot.slane %v1225, 4
      %v1354 = vrot.slane %v1264, 4
      %v1355 = vrot.slane %v1265, 4
      %v1360 = vrot.slane %v1284, 4
      %v1361 = vrot.slane %v1285, 4
      %v1366 = vrot.slane %v1324, 4
      %v1367 = vrot.slane %v1325, 4
      %v1370 = vsel %vm511, %v1204, %v1348
      %v1371 = vsel %vm511, %v1205, %v1349
      %v1372 = vsel %vm511, %v1244, %v1354
      %v1373 = vsel %vm511, %v1245, %v1355
      %v1374 = vsel %vm511, %v1184, %v1360
      %v1375 = vsel %vm511, %v1185, %v1361
      %v1376 = vsel %vm511, %v1304, %v1366
      %v1377 = vsel %vm511, %v1305, %v1367
      %v1378 = vsel %vm511, %v1344, 0.0
      %v1379 = vsel %vm511, %v1345, 0.0
      %1380 = vst [vmem:[#allocation2 + $0x50] sm:$0xff] %v1370
      %1381 = vst [vmem:[#allocation2 + $0x58] sm:$0xff] %v1371
      %1382 = vst [vmem:[#allocation2 + $0x60] sm:$0xff] %v1372
      %1383 = vst [vmem:[#allocation2 + $0x68] sm:$0xff] %v1373
      %1384 = vst [vmem:[#allocation2 + $0x70] sm:$0xff] %v1374
      %1385 = vst [vmem:[#allocation2 + $0x78] sm:$0xff] %v1375
      %1386 = vst [vmem:[#allocation2 + $0x80] sm:$0xff] %v1376
      %1387 = vst [vmem:[#allocation2 + $0x88] sm:$0xff] %v1377
      %1388 = vst [vmem:[#allocation2 + $0x90] sm:$0xff] %v1378
      %1389 = vst [vmem:[#allocation2 + $0x98] sm:$0xff] %v1379
      %v1390 = vld [vmem:[%s3] sm:$0xf]
      %v1391 = vld [vmem:[#allocation2] sm:$0xff]
      %v1392 = vld [vmem:[#allocation2 + $0x8] sm:$0xff]
      %v1393 = vld [vmem:[#allocation2 + $0x10] sm:$0xff]
      %v1394 = vld [vmem:[#allocation2 + $0x18] sm:$0xff]
      %v1395 = vld [vmem:[#allocation2 + $0x20] sm:$0xff]
      %v1396 = vld [vmem:[#allocation2 + $0x28] sm:$0xff]
      %v1397 = vld [vmem:[#allocation2 + $0x30] sm:$0xff]
      %v1398 = vld [vmem:[#allocation2 + $0x38] sm:$0xff]
      %v1399 = vld [vmem:[#allocation2 + $0x40] sm:$0xff]
      %v1400 = vld [vmem:[#allocation2 + $0x48] sm:$0xff]
      %v1401 = vld [vmem:[#allocation2 + $0x50] sm:$0xff]
      %v1402 = vld [vmem:[#allocation2 + $0x58] sm:$0xff]
      %v1403 = vld [vmem:[#allocation2 + $0x60] sm:$0xff]
      %v1404 = vld [vmem:[#allocation2 + $0x68] sm:$0xff]
      %v1405 = vld [vmem:[#allocation2 + $0x70] sm:$0xff]
      %v1406 = vld [vmem:[#allocation2 + $0x78] sm:$0xff]
      %v1407 = vld [vmem:[#allocation2 + $0x80] sm:$0xff]
      %v1408 = vld [vmem:[#allocation2 + $0x88] sm:$0xff]
      %v1409 = vld [vmem:[#allocation2 + $0x90] sm:$0xff]
      %v1410 = vld [vmem:[#allocation2 + $0x98] sm:$0xff]
      %vm1411 = vcmask 654336
      %v1413 = vsel %vm1411, %v1390, 0
      %v1415 = vand.u32 %v1392, 4294901760
      %1416 = vmatprep.subr.mxu0 %v1415
      %v1417 = vand.u32 %v1391, 4294901760
      %1418 = vmatpush1.msra.mxu0 %v1417
      %v1419 = vand.u32 %v1394, 4294901760
      %1420 = vmatprep.subr.mxu0 %v1419
      %v1421 = vand.u32 %v1393, 4294901760
      %1422 = vmatpush1.msra.mxu0 %v1421
      %v1423 = vand.u32 %v1396, 4294901760
      %1424 = vmatprep.subr.mxu0 %v1423
      %v1425 = vand.u32 %v1395, 4294901760
      %1426 = vmatpush1.msra.mxu0 %v1425
      %v1427 = vand.u32 %v1398, 4294901760
      %1428 = vmatprep.subr.mxu0 %v1427
      %v1429 = vand.u32 %v1397, 4294901760
      %1430 = vmatpush1.msra.mxu0 %v1429
      %v1431 = vand.u32 %v1400, 4294901760
      %1432 = vmatprep.subr.mxu0 %v1431
      %v1433 = vand.u32 %v1399, 4294901760
      %1434 = vmatpush1.msra.mxu0 %v1433
      %v1435 = vand.u32 %v1402, 4294901760
      %1436 = vmatprep.subr.mxu0 %v1435
      %v1437 = vand.u32 %v1401, 4294901760
      %1438 = vmatpush1.msra.mxu0 %v1437
      %v1439 = vand.u32 %v1404, 4294901760
      %1440 = vmatprep.subr.mxu0 %v1439
      %v1441 = vand.u32 %v1403, 4294901760
      %1442 = vmatpush1.msra.mxu0 %v1441
      %v1443 = vand.u32 %v1406, 4294901760
      %1444 = vmatprep.subr.mxu0 %v1443
      %v1445 = vand.u32 %v1405, 4294901760
      %1446 = vmatpush1.msra.mxu0 %v1445
      %v1447 = vand.u32 %v1408, 4294901760
      %1448 = vmatprep.subr.mxu0 %v1447
      %v1449 = vand.u32 %v1407, 4294901760
      %1450 = vmatpush1.msra.mxu0 %v1449
      %v1451 = vand.u32 %v1410, 4294901760
      %1452 = vmatprep.subr.mxu0 %v1451
      %v1453 = vand.u32 %v1409, 4294901760
      %1454 = vmatpush1.msra.mxu0 %v1453
      %1455 = vmatprep.subr.mxu0 0.0
      %1456 = vmatpush1.msra.mxu0 0.0
      %1457 = vmatprep.subr.mxu0 0.0
      %1458 = vmatpush1.msra.mxu0 0.0
      %1459 = vmatprep.subr.mxu0 0.0
      %1460 = vmatpush1.msra.mxu0 0.0
      %1461 = vmatprep.subr.mxu0 0.0
      %1462 = vmatpush1.msra.mxu0 0.0
      %1463 = vmatprep.subr.mxu0 0.0
      %1464 = vmatpush1.msra.mxu0 0.0
      %1465 = vmatprep.subr.mxu0 0.0
      %1466 = vmatpush1.msra.mxu0 0.0
      %1467 = vmatprep.subr.mxu0 0.0
      %1468 = vmatpush1.msra.mxu0 0.0
      %1469 = vmatprep.subr.mxu0 0.0
      %1470 = vmatpush1.msra.mxu0 0.0
      %1471 = vmatprep.subr.mxu0 0.0
      %1472 = vmatpush1.msra.mxu0 0.0
      %1473 = vmatprep.subr.mxu0 0.0
      %1474 = vmatpush1.msra.mxu0 0.0
      %1475 = vmatprep.subr.mxu0 0.0
      %1476 = vmatpush1.msra.mxu0 0.0
      %1477 = vmatprep.subr.mxu0 0.0
      %1478 = vmatpush1.msra.mxu0 0.0
      %1479 = vmatprep.subr.mxu0 0.0
      %1480 = vmatpush1.msra.mxu0 0.0
      %1481 = vmatprep.subr.mxu0 0.0
      %1482 = vmatpush1.msra.mxu0 0.0
      %1483 = vmatprep.subr.mxu0 0.0
      %1484 = vmatpush1.msra.mxu0 0.0
      %1485 = vmatprep.subr.mxu0 0.0
      %1486 = vmatpush1.msra.mxu0 0.0
      %1487 = vmatprep.subr.mxu0 0.0
      %1488 = vmatpush1.msra.mxu0 0.0
      %1489 = vmatprep.subr.mxu0 0.0
      %1490 = vmatpush1.msra.mxu0 0.0
      %1491 = vmatprep.subr.mxu0 0.0
      %1492 = vmatpush1.msra.mxu0 0.0
      %1493 = vmatprep.subr.mxu0 0.0
      %1494 = vmatpush1.msra.mxu0 0.0
      %1495 = vmatprep.subr.mxu0 0.0
      %1496 = vmatpush1.msra.mxu0 0.0
      %1497 = vmatprep.subr.mxu0 0.0
      %1498 = vmatpush1.msra.mxu0 0.0
      %1499 = vmatprep.mubr.f32.mxu0 0.0
      %v1500 = vand.u32 %v1413, 4294901760
      %v1501 = vsub.f32 %v1413, %v1500
      %v1502 = vand.u32 %v1501, 4294901760
      %v1503 = vsub.f32 %v1501, %v1502
      %v1504 = vand.u32 %v1503, 4294901760
      %1505 = vmatmul.mubr.f32.gmra.mrb[0].mxu0 %v1504
      %v1506 = vpop.f32.mrb[0].mxu0
      %v1507 = vadd.f32 0.0, %v1506
      %v1508 = vpop.f32.mrb[0].mxu0
      %v1509 = vadd.f32 0.0, %v1508
      %1510 = vdwg.mxu0
      %v1511 = vand.u32 %v1392, 4294901760
      %v1512 = vsub.f32 %v1392, %v1511
      %v1513 = vand.u32 %v1512, 4294901760
      %v1514 = vsub.f32 %v1512, %v1513
      %v1515 = vand.u32 %v1514, 4294901760
      %1516 = vmatprep.subr.mxu0 %v1515
      %v1517 = vand.u32 %v1391, 4294901760
      %v1518 = vsub.f32 %v1391, %v1517
      %v1519 = vand.u32 %v1518, 4294901760
      %v1520 = vsub.f32 %v1518, %v1519
      %v1521 = vand.u32 %v1520, 4294901760
      %1522 = vmatpush1.msra.mxu0 %v1521
      %v1523 = vand.u32 %v1394, 4294901760
      %v1524 = vsub.f32 %v1394, %v1523
      %v1525 = vand.u32 %v1524, 4294901760
      %v1526 = vsub.f32 %v1524, %v1525
      %v1527 = vand.u32 %v1526, 4294901760
      %1528 = vmatprep.subr.mxu0 %v1527
      %v1529 = vand.u32 %v1393, 4294901760
      %v1530 = vsub.f32 %v1393, %v1529
      %v1531 = vand.u32 %v1530, 4294901760
      %v1532 = vsub.f32 %v1530, %v1531
      %v1533 = vand.u32 %v1532, 4294901760
      %1534 = vmatpush1.msra.mxu0 %v1533
      %v1535 = vand.u32 %v1396, 4294901760
      %v1536 = vsub.f32 %v1396, %v1535
      %v1537 = vand.u32 %v1536, 4294901760
      %v1538 = vsub.f32 %v1536, %v1537
      %v1539 = vand.u32 %v1538, 4294901760
      %1540 = vmatprep.subr.mxu0 %v1539
      %v1541 = vand.u32 %v1395, 4294901760
      %v1542 = vsub.f32 %v1395, %v1541
      %v1543 = vand.u32 %v1542, 4294901760
      %v1544 = vsub.f32 %v1542, %v1543
      %v1545 = vand.u32 %v1544, 4294901760
      %1546 = vmatpush1.msra.mxu0 %v1545
      %v1547 = vand.u32 %v1398, 4294901760
      %v1548 = vsub.f32 %v1398, %v1547
      %v1549 = vand.u32 %v1548, 4294901760
      %v1550 = vsub.f32 %v1548, %v1549
      %v1551 = vand.u32 %v1550, 4294901760
      %1552 = vmatprep.subr.mxu0 %v1551
      %v1553 = vand.u32 %v1397, 4294901760
      %v1554 = vsub.f32 %v1397, %v1553
      %v1555 = vand.u32 %v1554, 4294901760
      %v1556 = vsub.f32 %v1554, %v1555
      %v1557 = vand.u32 %v1556, 4294901760
      %1558 = vmatpush1.msra.mxu0 %v1557
      %v1559 = vand.u32 %v1400, 4294901760
      %v1560 = vsub.f32 %v1400, %v1559
      %v1561 = vand.u32 %v1560, 4294901760
      %v1562 = vsub.f32 %v1560, %v1561
      %v1563 = vand.u32 %v1562, 4294901760
      %1564 = vmatprep.subr.mxu0 %v1563
      %v1565 = vand.u32 %v1399, 4294901760
      %v1566 = vsub.f32 %v1399, %v1565
      %v1567 = vand.u32 %v1566, 4294901760
      %v1568 = vsub.f32 %v1566, %v1567
      %v1569 = vand.u32 %v1568, 4294901760
      %1570 = vmatpush1.msra.mxu0 %v1569
      %v1571 = vand.u32 %v1402, 4294901760
      %v1572 = vsub.f32 %v1402, %v1571
      %v1573 = vand.u32 %v1572, 4294901760
      %v1574 = vsub.f32 %v1572, %v1573
      %v1575 = vand.u32 %v1574, 4294901760
      %1576 = vmatprep.subr.mxu0 %v1575
      %v1577 = vand.u32 %v1401, 4294901760
      %v1578 = vsub.f32 %v1401, %v1577
      %v1579 = vand.u32 %v1578, 4294901760
      %v1580 = vsub.f32 %v1578, %v1579
      %v1581 = vand.u32 %v1580, 4294901760
      %1582 = vmatpush1.msra.mxu0 %v1581
      %v1583 = vand.u32 %v1404, 4294901760
      %v1584 = vsub.f32 %v1404, %v1583
      %v1585 = vand.u32 %v1584, 4294901760
      %v1586 = vsub.f32 %v1584, %v1585
      %v1587 = vand.u32 %v1586, 4294901760
      %1588 = vmatprep.subr.mxu0 %v1587
      %v1589 = vand.u32 %v1403, 4294901760
      %v1590 = vsub.f32 %v1403, %v1589
      %v1591 = vand.u32 %v1590, 4294901760
      %v1592 = vsub.f32 %v1590, %v1591
      %v1593 = vand.u32 %v1592, 4294901760
      %1594 = vmatpush1.msra.mxu0 %v1593
      %v1595 = vand.u32 %v1406, 4294901760
      %v1596 = vsub.f32 %v1406, %v1595
      %v1597 = vand.u32 %v1596, 4294901760
      %v1598 = vsub.f32 %v1596, %v1597
      %v1599 = vand.u32 %v1598, 4294901760
      %1600 = vmatprep.subr.mxu0 %v1599
      %v1601 = vand.u32 %v1405, 4294901760
      %v1602 = vsub.f32 %v1405, %v1601
      %v1603 = vand.u32 %v1602, 4294901760
      %v1604 = vsub.f32 %v1602, %v1603
      %v1605 = vand.u32 %v1604, 4294901760
      %1606 = vmatpush1.msra.mxu0 %v1605
      %v1607 = vand.u32 %v1408, 4294901760
      %v1608 = vsub.f32 %v1408, %v1607
      %v1609 = vand.u32 %v1608, 4294901760
      %v1610 = vsub.f32 %v1608, %v1609
      %v1611 = vand.u32 %v1610, 4294901760
      %1612 = vmatprep.subr.mxu0 %v1611
      %v1613 = vand.u32 %v1407, 4294901760
      %v1614 = vsub.f32 %v1407, %v1613
      %v1615 = vand.u32 %v1614, 4294901760
      %v1616 = vsub.f32 %v1614, %v1615
      %v1617 = vand.u32 %v1616, 4294901760
      %1618 = vmatpush1.msra.mxu0 %v1617
      %v1619 = vand.u32 %v1410, 4294901760
      %v1620 = vsub.f32 %v1410, %v1619
      %v1621 = vand.u32 %v1620, 4294901760
      %v1622 = vsub.f32 %v1620, %v1621
      %v1623 = vand.u32 %v1622, 4294901760
      %1624 = vmatprep.subr.mxu0 %v1623
      %v1625 = vand.u32 %v1409, 4294901760
      %v1626 = vsub.f32 %v1409, %v1625
      %v1627 = vand.u32 %v1626, 4294901760
      %v1628 = vsub.f32 %v1626, %v1627
      %v1629 = vand.u32 %v1628, 4294901760
      %1630 = vmatpush1.msra.mxu0 %v1629
      %1631 = vmatprep.subr.mxu0 0.0
      %1632 = vmatpush1.msra.mxu0 0.0
      %1633 = vmatprep.subr.mxu0 0.0
      %1634 = vmatpush1.msra.mxu0 0.0
      %1635 = vmatprep.subr.mxu0 0.0
      %1636 = vmatpush1.msra.mxu0 0.0
      %1637 = vmatprep.subr.mxu0 0.0
      %1638 = vmatpush1.msra.mxu0 0.0
      %1639 = vmatprep.subr.mxu0 0.0
      %1640 = vmatpush1.msra.mxu0 0.0
      %1641 = vmatprep.subr.mxu0 0.0
      %1642 = vmatpush1.msra.mxu0 0.0
      %1643 = vmatprep.subr.mxu0 0.0
      %1644 = vmatpush1.msra.mxu0 0.0
      %1645 = vmatprep.subr.mxu0 0.0
      %1646 = vmatpush1.msra.mxu0 0.0
      %1647 = vmatprep.subr.mxu0 0.0
      %1648 = vmatpush1.msra.mxu0 0.0
      %1649 = vmatprep.subr.mxu0 0.0
      %1650 = vmatpush1.msra.mxu0 0.0
      %1651 = vmatprep.subr.mxu0 0.0
      %1652 = vmatpush1.msra.mxu0 0.0
      %1653 = vmatprep.subr.mxu0 0.0
      %1654 = vmatpush1.msra.mxu0 0.0
      %1655 = vmatprep.subr.mxu0 0.0
      %1656 = vmatpush1.msra.mxu0 0.0
      %1657 = vmatprep.subr.mxu0 0.0
      %1658 = vmatpush1.msra.mxu0 0.0
      %1659 = vmatprep.subr.mxu0 0.0
      %1660 = vmatpush1.msra.mxu0 0.0
      %1661 = vmatprep.subr.mxu0 0.0
      %1662 = vmatpush1.msra.mxu0 0.0
      %1663 = vmatprep.subr.mxu0 0.0
      %1664 = vmatpush1.msra.mxu0 0.0
      %1665 = vmatprep.subr.mxu0 0.0
      %1666 = vmatpush1.msra.mxu0 0.0
      %1667 = vmatprep.subr.mxu0 0.0
      %1668 = vmatpush1.msra.mxu0 0.0
      %1669 = vmatprep.subr.mxu0 0.0
      %1670 = vmatpush1.msra.mxu0 0.0
      %1671 = vmatprep.subr.mxu0 0.0
      %1672 = vmatpush1.msra.mxu0 0.0
      %1673 = vmatprep.subr.mxu0 0.0
      %1674 = vmatpush1.msra.mxu0 0.0
      %1675 = vmatprep.mubr.f32.mxu0 0.0
      %v1676 = vand.u32 %v1413, 4294901760
      %1677 = vmatmul.mubr.f32.gmra.mrb[0].mxu0 %v1676
      %v1678 = vpop.f32.mrb[0].mxu0
      %v1679 = vadd.f32 %v1507, %v1678
      %v1680 = vpop.f32.mrb[0].mxu0
      %v1681 = vadd.f32 %v1509, %v1680
      %1682 = vdwg.mxu0
      %v1683 = vand.u32 %v1392, 4294901760
      %v1684 = vsub.f32 %v1392, %v1683
      %1685 = vmatprep.subr.mxu0 %v1684
      %v1686 = vand.u32 %v1391, 4294901760
      %v1687 = vsub.f32 %v1391, %v1686
      %1688 = vmatpush1.msra.mxu0 %v1687
      %v1689 = vand.u32 %v1394, 4294901760
      %v1690 = vsub.f32 %v1394, %v1689
      %1691 = vmatprep.subr.mxu0 %v1690
      %v1692 = vand.u32 %v1393, 4294901760
      %v1693 = vsub.f32 %v1393, %v1692
      %1694 = vmatpush1.msra.mxu0 %v1693
      %v1695 = vand.u32 %v1396, 4294901760
      %v1696 = vsub.f32 %v1396, %v1695
      %1697 = vmatprep.subr.mxu0 %v1696
      %v1698 = vand.u32 %v1395, 4294901760
      %v1699 = vsub.f32 %v1395, %v1698
      %1700 = vmatpush1.msra.mxu0 %v1699
      %v1701 = vand.u32 %v1398, 4294901760
      %v1702 = vsub.f32 %v1398, %v1701
      %1703 = vmatprep.subr.mxu0 %v1702
      %v1704 = vand.u32 %v1397, 4294901760
      %v1705 = vsub.f32 %v1397, %v1704
      %1706 = vmatpush1.msra.mxu0 %v1705
      %v1707 = vand.u32 %v1400, 4294901760
      %v1708 = vsub.f32 %v1400, %v1707
      %1709 = vmatprep.subr.mxu0 %v1708
      %v1710 = vand.u32 %v1399, 4294901760
      %v1711 = vsub.f32 %v1399, %v1710
      %1712 = vmatpush1.msra.mxu0 %v1711
      %v1713 = vand.u32 %v1402, 4294901760
      %v1714 = vsub.f32 %v1402, %v1713
      %1715 = vmatprep.subr.mxu0 %v1714
      %v1716 = vand.u32 %v1401, 4294901760
      %v1717 = vsub.f32 %v1401, %v1716
      %1718 = vmatpush1.msra.mxu0 %v1717
      %v1719 = vand.u32 %v1404, 4294901760
      %v1720 = vsub.f32 %v1404, %v1719
      %1721 = vmatprep.subr.mxu0 %v1720
      %v1722 = vand.u32 %v1403, 4294901760
      %v1723 = vsub.f32 %v1403, %v1722
      %1724 = vmatpush1.msra.mxu0 %v1723
      %v1725 = vand.u32 %v1406, 4294901760
      %v1726 = vsub.f32 %v1406, %v1725
      %1727 = vmatprep.subr.mxu0 %v1726
      %v1728 = vand.u32 %v1405, 4294901760
      %v1729 = vsub.f32 %v1405, %v1728
      %1730 = vmatpush1.msra.mxu0 %v1729
      %v1731 = vand.u32 %v1408, 4294901760
      %v1732 = vsub.f32 %v1408, %v1731
      %1733 = vmatprep.subr.mxu0 %v1732
      %v1734 = vand.u32 %v1407, 4294901760
      %v1735 = vsub.f32 %v1407, %v1734
      %1736 = vmatpush1.msra.mxu0 %v1735
      %v1737 = vand.u32 %v1410, 4294901760
      %v1738 = vsub.f32 %v1410, %v1737
      %1739 = vmatprep.subr.mxu0 %v1738
      %v1740 = vand.u32 %v1409, 4294901760
      %v1741 = vsub.f32 %v1409, %v1740
      %1742 = vmatpush1.msra.mxu0 %v1741
      %1743 = vmatprep.subr.mxu0 0.0
      %1744 = vmatpush1.msra.mxu0 0.0
      %1745 = vmatprep.subr.mxu0 0.0
      %1746 = vmatpush1.msra.mxu0 0.0
      %1747 = vmatprep.subr.mxu0 0.0
      %1748 = vmatpush1.msra.mxu0 0.0
      %1749 = vmatprep.subr.mxu0 0.0
      %1750 = vmatpush1.msra.mxu0 0.0
      %1751 = vmatprep.subr.mxu0 0.0
      %1752 = vmatpush1.msra.mxu0 0.0
      %1753 = vmatprep.subr.mxu0 0.0
      %1754 = vmatpush1.msra.mxu0 0.0
      %1755 = vmatprep.subr.mxu0 0.0
      %1756 = vmatpush1.msra.mxu0 0.0
      %1757 = vmatprep.subr.mxu0 0.0
      %1758 = vmatpush1.msra.mxu0 0.0
      %1759 = vmatprep.subr.mxu0 0.0
      %1760 = vmatpush1.msra.mxu0 0.0
      %1761 = vmatprep.subr.mxu0 0.0
      %1762 = vmatpush1.msra.mxu0 0.0
      %1763 = vmatprep.subr.mxu0 0.0
      %1764 = vmatpush1.msra.mxu0 0.0
      %1765 = vmatprep.subr.mxu0 0.0
      %1766 = vmatpush1.msra.mxu0 0.0
      %1767 = vmatprep.subr.mxu0 0.0
      %1768 = vmatpush1.msra.mxu0 0.0
      %1769 = vmatprep.subr.mxu0 0.0
      %1770 = vmatpush1.msra.mxu0 0.0
      %1771 = vmatprep.subr.mxu0 0.0
      %1772 = vmatpush1.msra.mxu0 0.0
      %1773 = vmatprep.subr.mxu0 0.0
      %1774 = vmatpush1.msra.mxu0 0.0
      %1775 = vmatprep.subr.mxu0 0.0
      %1776 = vmatpush1.msra.mxu0 0.0
      %1777 = vmatprep.subr.mxu0 0.0
      %1778 = vmatpush1.msra.mxu0 0.0
      %1779 = vmatprep.subr.mxu0 0.0
      %1780 = vmatpush1.msra.mxu0 0.0
      %1781 = vmatprep.subr.mxu0 0.0
      %1782 = vmatpush1.msra.mxu0 0.0
      %1783 = vmatprep.subr.mxu0 0.0
      %1784 = vmatpush1.msra.mxu0 0.0
      %1785 = vmatprep.subr.mxu0 0.0
      %1786 = vmatpush1.msra.mxu0 0.0
      %1787 = vmatprep.mubr.f32.mxu0 0.0
      %v1788 = vand.u32 %v1413, 4294901760
      %v1789 = vsub.f32 %v1413, %v1788
      %1790 = vmatmul.mubr.f32.gmra.mrb[0].mxu0 %v1789
      %v1791 = vpop.f32.mrb[0].mxu0
      %v1792 = vadd.f32 %v1679, %v1791
      %v1793 = vpop.f32.mrb[0].mxu0
      %v1794 = vadd.f32 %v1681, %v1793
      %1795 = vdwg.mxu0
      %v1796 = vand.u32 %v1392, 4294901760
      %1797 = vmatprep.subr.mxu0 %v1796
      %v1798 = vand.u32 %v1391, 4294901760
      %1799 = vmatpush1.msra.mxu0 %v1798
      %v1800 = vand.u32 %v1394, 4294901760
      %1801 = vmatprep.subr.mxu0 %v1800
      %v1802 = vand.u32 %v1393, 4294901760
      %1803 = vmatpush1.msra.mxu0 %v1802
      %v1804 = vand.u32 %v1396, 4294901760
      %1805 = vmatprep.subr.mxu0 %v1804
      %v1806 = vand.u32 %v1395, 4294901760
      %1807 = vmatpush1.msra.mxu0 %v1806
      %v1808 = vand.u32 %v1398, 4294901760
      %1809 = vmatprep.subr.mxu0 %v1808
      %v1810 = vand.u32 %v1397, 4294901760
      %1811 = vmatpush1.msra.mxu0 %v1810
      %v1812 = vand.u32 %v1400, 4294901760
      %1813 = vmatprep.subr.mxu0 %v1812
      %v1814 = vand.u32 %v1399, 4294901760
      %1815 = vmatpush1.msra.mxu0 %v1814
      %v1816 = vand.u32 %v1402, 4294901760
      %1817 = vmatprep.subr.mxu0 %v1816
      %v1818 = vand.u32 %v1401, 4294901760
      %1819 = vmatpush1.msra.mxu0 %v1818
      %v1820 = vand.u32 %v1404, 4294901760
      %1821 = vmatprep.subr.mxu0 %v1820
      %v1822 = vand.u32 %v1403, 4294901760
      %1823 = vmatpush1.msra.mxu0 %v1822
      %v1824 = vand.u32 %v1406, 4294901760
      %1825 = vmatprep.subr.mxu0 %v1824
      %v1826 = vand.u32 %v1405, 4294901760
      %1827 = vmatpush1.msra.mxu0 %v1826
      %v1828 = vand.u32 %v1408, 4294901760
      %1829 = vmatprep.subr.mxu0 %v1828
      %v1830 = vand.u32 %v1407, 4294901760
      %1831 = vmatpush1.msra.mxu0 %v1830
      %v1832 = vand.u32 %v1410, 4294901760
      %1833 = vmatprep.subr.mxu0 %v1832
      %v1834 = vand.u32 %v1409, 4294901760
      %1835 = vmatpush1.msra.mxu0 %v1834
      %1836 = vmatprep.subr.mxu0 0.0
      %1837 = vmatpush1.msra.mxu0 0.0
      %1838 = vmatprep.subr.mxu0 0.0
      %1839 = vmatpush1.msra.mxu0 0.0
      %1840 = vmatprep.subr.mxu0 0.0
      %1841 = vmatpush1.msra.mxu0 0.0
      %1842 = vmatprep.subr.mxu0 0.0
      %1843 = vmatpush1.msra.mxu0 0.0
      %1844 = vmatprep.subr.mxu0 0.0
      %1845 = vmatpush1.msra.mxu0 0.0
      %1846 = vmatprep.subr.mxu0 0.0
      %1847 = vmatpush1.msra.mxu0 0.0
      %1848 = vmatprep.subr.mxu0 0.0
      %1849 = vmatpush1.msra.mxu0 0.0
      %1850 = vmatprep.subr.mxu0 0.0
      %1851 = vmatpush1.msra.mxu0 0.0
      %1852 = vmatprep.subr.mxu0 0.0
      %1853 = vmatpush1.msra.mxu0 0.0
      %1854 = vmatprep.subr.mxu0 0.0
      %1855 = vmatpush1.msra.mxu0 0.0
      %1856 = vmatprep.subr.mxu0 0.0
      %1857 = vmatpush1.msra.mxu0 0.0
      %1858 = vmatprep.subr.mxu0 0.0
      %1859 = vmatpush1.msra.mxu0 0.0
      %1860 = vmatprep.subr.mxu0 0.0
      %1861 = vmatpush1.msra.mxu0 0.0
      %1862 = vmatprep.subr.mxu0 0.0
      %1863 = vmatpush1.msra.mxu0 0.0
      %1864 = vmatprep.subr.mxu0 0.0
      %1865 = vmatpush1.msra.mxu0 0.0
      %1866 = vmatprep.subr.mxu0 0.0
      %1867 = vmatpush1.msra.mxu0 0.0
      %1868 = vmatprep.subr.mxu0 0.0
      %1869 = vmatpush1.msra.mxu0 0.0
      %1870 = vmatprep.subr.mxu0 0.0
      %1871 = vmatpush1.msra.mxu0 0.0
      %1872 = vmatprep.subr.mxu0 0.0
      %1873 = vmatpush1.msra.mxu0 0.0
      %1874 = vmatprep.subr.mxu0 0.0
      %1875 = vmatpush1.msra.mxu0 0.0
      %1876 = vmatprep.subr.mxu0 0.0
      %1877 = vmatpush1.msra.mxu0 0.0
      %1878 = vmatprep.subr.mxu0 0.0
      %1879 = vmatpush1.msra.mxu0 0.0
      %1880 = vmatprep.mubr.f32.mxu0 0.0
      %v1881 = vand.u32 %v1413, 4294901760
      %v1882 = vsub.f32 %v1413, %v1881
      %v1883 = vand.u32 %v1882, 4294901760
      %1884 = vmatmul.mubr.f32.gmra.mrb[0].mxu0 %v1883
      %v1885 = vpop.f32.mrb[0].mxu0
      %v1886 = vadd.f32 %v1792, %v1885
      %v1887 = vpop.f32.mrb[0].mxu0
      %v1888 = vadd.f32 %v1794, %v1887
      %1889 = vdwg.mxu0
      %v1890 = vand.u32 %v1392, 4294901760
      %v1891 = vsub.f32 %v1392, %v1890
      %v1892 = vand.u32 %v1891, 4294901760
      %1893 = vmatprep.subr.mxu0 %v1892
      %v1894 = vand.u32 %v1391, 4294901760
      %v1895 = vsub.f32 %v1391, %v1894
      %v1896 = vand.u32 %v1895, 4294901760
      %1897 = vmatpush1.msra.mxu0 %v1896
      %v1898 = vand.u32 %v1394, 4294901760
      %v1899 = vsub.f32 %v1394, %v1898
      %v1900 = vand.u32 %v1899, 4294901760
      %1901 = vmatprep.subr.mxu0 %v1900
      %v1902 = vand.u32 %v1393, 4294901760
      %v1903 = vsub.f32 %v1393, %v1902
      %v1904 = vand.u32 %v1903, 4294901760
      %1905 = vmatpush1.msra.mxu0 %v1904
      %v1906 = vand.u32 %v1396, 4294901760
      %v1907 = vsub.f32 %v1396, %v1906
      %v1908 = vand.u32 %v1907, 4294901760
      %1909 = vmatprep.subr.mxu0 %v1908
      %v1910 = vand.u32 %v1395, 4294901760
      %v1911 = vsub.f32 %v1395, %v1910
      %v1912 = vand.u32 %v1911, 4294901760
      %1913 = vmatpush1.msra.mxu0 %v1912
      %v1914 = vand.u32 %v1398, 4294901760
      %v1915 = vsub.f32 %v1398, %v1914
      %v1916 = vand.u32 %v1915, 4294901760
      %1917 = vmatprep.subr.mxu0 %v1916
      %v1918 = vand.u32 %v1397, 4294901760
      %v1919 = vsub.f32 %v1397, %v1918
      %v1920 = vand.u32 %v1919, 4294901760
      %1921 = vmatpush1.msra.mxu0 %v1920
      %v1922 = vand.u32 %v1400, 4294901760
      %v1923 = vsub.f32 %v1400, %v1922
      %v1924 = vand.u32 %v1923, 4294901760
      %1925 = vmatprep.subr.mxu0 %v1924
      %v1926 = vand.u32 %v1399, 4294901760
      %v1927 = vsub.f32 %v1399, %v1926
      %v1928 = vand.u32 %v1927, 4294901760
      %1929 = vmatpush1.msra.mxu0 %v1928
      %v1930 = vand.u32 %v1402, 4294901760
      %v1931 = vsub.f32 %v1402, %v1930
      %v1932 = vand.u32 %v1931, 4294901760
      %1933 = vmatprep.subr.mxu0 %v1932
      %v1934 = vand.u32 %v1401, 4294901760
      %v1935 = vsub.f32 %v1401, %v1934
      %v1936 = vand.u32 %v1935, 4294901760
      %1937 = vmatpush1.msra.mxu0 %v1936
      %v1938 = vand.u32 %v1404, 4294901760
      %v1939 = vsub.f32 %v1404, %v1938
      %v1940 = vand.u32 %v1939, 4294901760
      %1941 = vmatprep.subr.mxu0 %v1940
      %v1942 = vand.u32 %v1403, 4294901760
      %v1943 = vsub.f32 %v1403, %v1942
      %v1944 = vand.u32 %v1943, 4294901760
      %1945 = vmatpush1.msra.mxu0 %v1944
      %v1946 = vand.u32 %v1406, 4294901760
      %v1947 = vsub.f32 %v1406, %v1946
      %v1948 = vand.u32 %v1947, 4294901760
      %1949 = vmatprep.subr.mxu0 %v1948
      %v1950 = vand.u32 %v1405, 4294901760
      %v1951 = vsub.f32 %v1405, %v1950
      %v1952 = vand.u32 %v1951, 4294901760
      %1953 = vmatpush1.msra.mxu0 %v1952
      %v1954 = vand.u32 %v1408, 4294901760
      %v1955 = vsub.f32 %v1408, %v1954
      %v1956 = vand.u32 %v1955, 4294901760
      %1957 = vmatprep.subr.mxu0 %v1956
      %v1958 = vand.u32 %v1407, 4294901760
      %v1959 = vsub.f32 %v1407, %v1958
      %v1960 = vand.u32 %v1959, 4294901760
      %1961 = vmatpush1.msra.mxu0 %v1960
      %v1962 = vand.u32 %v1410, 4294901760
      %v1963 = vsub.f32 %v1410, %v1962
      %v1964 = vand.u32 %v1963, 4294901760
      %1965 = vmatprep.subr.mxu0 %v1964
      %v1966 = vand.u32 %v1409, 4294901760
      %v1967 = vsub.f32 %v1409, %v1966
      %v1968 = vand.u32 %v1967, 4294901760
      %1969 = vmatpush1.msra.mxu0 %v1968
      %1970 = vmatprep.subr.mxu0 0.0
      %1971 = vmatpush1.msra.mxu0 0.0
      %1972 = vmatprep.subr.mxu0 0.0
      %1973 = vmatpush1.msra.mxu0 0.0
      %1974 = vmatprep.subr.mxu0 0.0
      %1975 = vmatpush1.msra.mxu0 0.0
      %1976 = vmatprep.subr.mxu0 0.0
      %1977 = vmatpush1.msra.mxu0 0.0
      %1978 = vmatprep.subr.mxu0 0.0
      %1979 = vmatpush1.msra.mxu0 0.0
      %1980 = vmatprep.subr.mxu0 0.0
      %1981 = vmatpush1.msra.mxu0 0.0
      %1982 = vmatprep.subr.mxu0 0.0
      %1983 = vmatpush1.msra.mxu0 0.0
      %1984 = vmatprep.subr.mxu0 0.0
      %1985 = vmatpush1.msra.mxu0 0.0
      %1986 = vmatprep.subr.mxu0 0.0
      %1987 = vmatpush1.msra.mxu0 0.0
      %1988 = vmatprep.subr.mxu0 0.0
      %1989 = vmatpush1.msra.mxu0 0.0
      %1990 = vmatprep.subr.mxu0 0.0
      %1991 = vmatpush1.msra.mxu0 0.0
      %1992 = vmatprep.subr.mxu0 0.0
      %1993 = vmatpush1.msra.mxu0 0.0
      %1994 = vmatprep.subr.mxu0 0.0
      %1995 = vmatpush1.msra.mxu0 0.0
      %1996 = vmatprep.subr.mxu0 0.0
      %1997 = vmatpush1.msra.mxu0 0.0
      %1998 = vmatprep.subr.mxu0 0.0
      %1999 = vmatpush1.msra.mxu0 0.0
      %2000 = vmatprep.subr.mxu0 0.0
      %2001 = vmatpush1.msra.mxu0 0.0
      %2002 = vmatprep.subr.mxu0 0.0
      %2003 = vmatpush1.msra.mxu0 0.0
      %2004 = vmatprep.subr.mxu0 0.0
      %2005 = vmatpush1.msra.mxu0 0.0
      %2006 = vmatprep.subr.mxu0 0.0
      %2007 = vmatpush1.msra.mxu0 0.0
      %2008 = vmatprep.subr.mxu0 0.0
      %2009 = vmatpush1.msra.mxu0 0.0
      %2010 = vmatprep.subr.mxu0 0.0
      %2011 = vmatpush1.msra.mxu0 0.0
      %2012 = vmatprep.subr.mxu0 0.0
      %2013 = vmatpush1.msra.mxu0 0.0
      %2014 = vmatprep.mubr.f32.mxu0 0.0
      %v2015 = vand.u32 %v1413, 4294901760
      %2016 = vmatmul.mubr.f32.gmra.mrb[0].mxu0 %v2015
      %v2017 = vpop.f32.mrb[0].mxu0
      %v2018 = vadd.f32 %v1886, %v2017
      %v2019 = vpop.f32.mrb[0].mxu0
      %v2020 = vadd.f32 %v1888, %v2019
      %2021 = vdwg.mxu0
      %v2022 = vand.u32 %v1392, 4294901760
      %2023 = vmatprep.subr.mxu0 %v2022
      %v2024 = vand.u32 %v1391, 4294901760
      %2025 = vmatpush1.msra.mxu0 %v2024
      %v2026 = vand.u32 %v1394, 4294901760
      %2027 = vmatprep.subr.mxu0 %v2026
      %v2028 = vand.u32 %v1393, 4294901760
      %2029 = vmatpush1.msra.mxu0 %v2028
      %v2030 = vand.u32 %v1396, 4294901760
      %2031 = vmatprep.subr.mxu0 %v2030
      %v2032 = vand.u32 %v1395, 4294901760
      %2033 = vmatpush1.msra.mxu0 %v2032
      %v2034 = vand.u32 %v1398, 4294901760
      %2035 = vmatprep.subr.mxu0 %v2034
      %v2036 = vand.u32 %v1397, 4294901760
      %2037 = vmatpush1.msra.mxu0 %v2036
      %v2038 = vand.u32 %v1400, 4294901760
      %2039 = vmatprep.subr.mxu0 %v2038
      %v2040 = vand.u32 %v1399, 4294901760
      %2041 = vmatpush1.msra.mxu0 %v2040
      %v2042 = vand.u32 %v1402, 4294901760
      %2043 = vmatprep.subr.mxu0 %v2042
      %v2044 = vand.u32 %v1401, 4294901760
      %2045 = vmatpush1.msra.mxu0 %v2044
      %v2046 = vand.u32 %v1404, 4294901760
      %2047 = vmatprep.subr.mxu0 %v2046
      %v2048 = vand.u32 %v1403, 4294901760
      %2049 = vmatpush1.msra.mxu0 %v2048
      %v2050 = vand.u32 %v1406, 4294901760
      %2051 = vmatprep.subr.mxu0 %v2050
      %v2052 = vand.u32 %v1405, 4294901760
      %2053 = vmatpush1.msra.mxu0 %v2052
      %v2054 = vand.u32 %v1408, 4294901760
      %2055 = vmatprep.subr.mxu0 %v2054
      %v2056 = vand.u32 %v1407, 4294901760
      %2057 = vmatpush1.msra.mxu0 %v2056
      %v2058 = vand.u32 %v1410, 4294901760
      %2059 = vmatprep.subr.mxu0 %v2058
      %v2060 = vand.u32 %v1409, 4294901760
      %2061 = vmatpush1.msra.mxu0 %v2060
      %2062 = vmatprep.subr.mxu0 0.0
      %2063 = vmatpush1.msra.mxu0 0.0
      %2064 = vmatprep.subr.mxu0 0.0
      %2065 = vmatpush1.msra.mxu0 0.0
      %2066 = vmatprep.subr.mxu0 0.0
      %2067 = vmatpush1.msra.mxu0 0.0
      %2068 = vmatprep.subr.mxu0 0.0
      %2069 = vmatpush1.msra.mxu0 0.0
      %2070 = vmatprep.subr.mxu0 0.0
      %2071 = vmatpush1.msra.mxu0 0.0
      %2072 = vmatprep.subr.mxu0 0.0
      %2073 = vmatpush1.msra.mxu0 0.0
      %2074 = vmatprep.subr.mxu0 0.0
      %2075 = vmatpush1.msra.mxu0 0.0
      %2076 = vmatprep.subr.mxu0 0.0
      %2077 = vmatpush1.msra.mxu0 0.0
      %2078 = vmatprep.subr.mxu0 0.0
      %2079 = vmatpush1.msra.mxu0 0.0
      %2080 = vmatprep.subr.mxu0 0.0
      %2081 = vmatpush1.msra.mxu0 0.0
      %2082 = vmatprep.subr.mxu0 0.0
      %2083 = vmatpush1.msra.mxu0 0.0
      %2084 = vmatprep.subr.mxu0 0.0
      %2085 = vmatpush1.msra.mxu0 0.0
      %2086 = vmatprep.subr.mxu0 0.0
      %2087 = vmatpush1.msra.mxu0 0.0
      %2088 = vmatprep.subr.mxu0 0.0
      %2089 = vmatpush1.msra.mxu0 0.0
      %2090 = vmatprep.subr.mxu0 0.0
      %2091 = vmatpush1.msra.mxu0 0.0
      %2092 = vmatprep.subr.mxu0 0.0
      %2093 = vmatpush1.msra.mxu0 0.0
      %2094 = vmatprep.subr.mxu0 0.0
      %2095 = vmatpush1.msra.mxu0 0.0
      %2096 = vmatprep.subr.mxu0 0.0
      %2097 = vmatpush1.msra.mxu0 0.0
      %2098 = vmatprep.subr.mxu0 0.0
      %2099 = vmatpush1.msra.mxu0 0.0
      %2100 = vmatprep.subr.mxu0 0.0
      %2101 = vmatpush1.msra.mxu0 0.0
      %2102 = vmatprep.subr.mxu0 0.0
      %2103 = vmatpush1.msra.mxu0 0.0
      %2104 = vmatprep.subr.mxu0 0.0
      %2105 = vmatpush1.msra.mxu0 0.0
      %2106 = vmatprep.mubr.f32.mxu0 0.0
      %v2107 = vand.u32 %v1413, 4294901760
      %2108 = vmatmul.mubr.f32.gmra.mrb[0].mxu0 %v2107
      %v2109 = vpop.f32.mrb[0].mxu0
      %v2110 = vadd.f32 %v2018, %v2109
      %v2111 = vpop.f32.mrb[0].mxu0
      %v2112 = vadd.f32 %v2020, %v2111
      %2113 = vdwg.mxu0
      %v2114 = vsel %vm511, %v2110, 0.0
      %v2115 = vsel %vm511, %v2112, 0.0
      %v2116 = vadd.f32 %v2114, %v2115
      %2117 = vadd.xlane.f32.xlu0 %v2116
      %v2118 = vpop.xlane.xlu0 %2117
      %v2119 = vrot.slane %v2118, 4
      %v2120 = vadd.f32 %v2118, %v2119
      %v2121 = vrot.slane %v2120, 2
      %v2122 = vadd.f32 %v2120, %v2121
      %v2123 = vrot.slane %v2122, 1
      %v2124 = vadd.f32 %v2122, %v2123
      %s2125 = vtos %v2124
      %v2126 = vmul.f32 %v2110, %v2110
      %v2127 = vmul.f32 %v2112, %v2112
      %v2128 = vsel %vm511, %v2126, 0.0
      %v2129 = vsel %vm511, %v2127, 0.0
      %v2130 = vadd.f32 %v2128, %v2129
      %2131 = vadd.xlane.f32.xlu0 %v2130
      %v2132 = vpop.xlane.xlu0 %2131
      %v2133 = vrot.slane %v2132, 4
      %v2134 = vadd.f32 %v2132, %v2133
      %v2135 = vrot.slane %v2134, 2
      %v2136 = vadd.f32 %v2134, %v2135
      %v2137 = vrot.slane %v2136, 1
      %v2138 = vadd.f32 %v2136, %v2137
      %s2139 = vtos %v2138
      %s2140 = smul.f32 %s2125, 0.0009765625
      %s2141 = smul.f32 %s2139, 0.0009765625
      %s2142 = smul.f32 %s2140, %s2140
      %s2143 = ssub.f32 %s2141, %s2142
      %s2144 = sadd.f32 %s2143, 1e-05
      %v2145 = vstv %s2144
      %v2146 = vrsqrt.pop %v2145
      %s2147 = vtos %v2146
      %s2148 = scalar_lea.vmem %s6, 4
      %v2149 = vld [vmem:[%s2148] sm:$0xf]
      %v2150 = vstv %s2147
      %v2151 = vmul.f32 %v2149, %v2150
      %s2152 = scalar_lea.vmem %s7, 4
      %v2153 = vld [vmem:[%s2152] sm:$0xf]
      %v2154 = vstv %s2140
      %v2155 = vmul.f32 %v2154, %v2151
      %v2156 = vsub.f32 %v2153, %v2155
      %2158 = vset.pattern.permute.xlu0 0
      %2159 = vperm.xlu0 %2158, %v2151
      %v2160 = vpop.permute.xlu0 %2159
      %v2162 = vmul.f32 %v2110, %v2160
      %v2163 = vmul.f32 %v2112, %v2160
      %2165 = vset.pattern.permute.xlu0 0
      %2166 = vperm.xlu0 %2165, %v2156
      %v2167 = vpop.permute.xlu0 %2166
      %v2169 = vadd.f32 %v2162, %v2167
      %v2170 = vadd.f32 %v2163, %v2167
      %v2171 = vmin.f32 %v2169, 0.0
      %v2172 = vmin.f32 %v2170, 0.0
      %vm2173 = vcmp.gt.f32.partialorder %v2169, 0.0
      %vm2174 = vcmp.gt.f32.partialorder %v2170, 0.0
      %v2175 = vmul.f32 %v2171, 1.442695
      %v2176 = vpow.pop %v2175
      %v2177 = vmul.f32 %v2172, 1.442695
      %v2178 = vpow.pop %v2177
      %v2179 = vsub.f32 %v2176, 1.0
      %v2180 = vsub.f32 %v2178, 1.0
      %v2181 = vsel %vm2173, %v2169, %v2179
      %v2182 = vsel %vm2174, %v2170, %v2180
      %2183 = vrot.lane.b32.xlu0 %v2181, 17
      %v2184 = vpop.permute.xlu0 %2183
      %2185 = vrot.lane.b32.xlu0 %v2182, 17
      %v2186 = vpop.permute.xlu0 %2185
      %v2187 = vsel %vm316, %v2184, %v2186
      %v2188 = vsel %vm316, %v2186, %v2184
      %v2189 = vld [vmem:[%s1] ss:$8 sm:$0x3]
      %v2191 = vlaneseq
      %v2192 = vshrl.u32 %v2191, 7
      %v2193 = vsub.s32 0, %v2192
      %v2194 = vrot.slane %v2189, %v2193
      %v2195 = vlaneseq
      %v2196 = vshrl.u32 %v2195, 7
      %v2197 = vsub.s32 1, %v2196
      %v2198 = vrot.slane %v2189, %v2197
      %v2201 = vmul.f32 %v2188, %v2194
      %v2202 = vmul.f32 %v2187, %v2198
      %2203 = vrot.lane.b32.xlu0 %v2181, 16
      %v2204 = vpop.permute.xlu0 %2203
      %2205 = vrot.lane.b32.xlu0 %v2182, 16
      %v2206 = vpop.permute.xlu0 %2205
      %v2207 = vsel %vm337, %v2204, %v2206
      %v2208 = vsel %vm337, %v2206, %v2204
      %v2209 = vld [vmem:[%s340] ss:$8 sm:$0x3]
      %v2211 = vlaneseq
      %v2212 = vshrl.u32 %v2211, 7
      %v2213 = vsub.s32 0, %v2212
      %v2214 = vrot.slane %v2209, %v2213
      %v2215 = vlaneseq
      %v2216 = vshrl.u32 %v2215, 7
      %v2217 = vsub.s32 1, %v2216
      %v2218 = vrot.slane %v2209, %v2217
      %v2221 = vmul.f32 %v2208, %v2214
      %v2222 = vmul.f32 %v2207, %v2218
      %2223 = vrot.lane.b32.xlu0 %v2181, 15
      %v2224 = vpop.permute.xlu0 %2223
      %2225 = vrot.lane.b32.xlu0 %v2182, 15
      %v2226 = vpop.permute.xlu0 %2225
      %v2227 = vsel %vm359, %v2224, %v2226
      %v2228 = vsel %vm359, %v2226, %v2224
      %v2229 = vld [vmem:[%s362] ss:$8 sm:$0x3]
      %v2231 = vlaneseq
      %v2232 = vshrl.u32 %v2231, 7
      %v2233 = vsub.s32 0, %v2232
      %v2234 = vrot.slane %v2229, %v2233
      %v2235 = vlaneseq
      %v2236 = vshrl.u32 %v2235, 7
      %v2237 = vsub.s32 1, %v2236
      %v2238 = vrot.slane %v2229, %v2237
      %v2241 = vmul.f32 %v2228, %v2234
      %v2242 = vmul.f32 %v2227, %v2238
      %2243 = vrot.lane.b32.xlu0 %v2181, 1
      %v2244 = vpop.permute.xlu0 %2243
      %2245 = vrot.lane.b32.xlu0 %v2182, 1
      %v2246 = vpop.permute.xlu0 %2245
      %v2247 = vsel %vm381, %v2244, %v2246
      %v2248 = vsel %vm381, %v2246, %v2244
      %v2249 = vld [vmem:[%s384] ss:$8 sm:$0x3]
      %v2251 = vlaneseq
      %v2252 = vshrl.u32 %v2251, 7
      %v2253 = vsub.s32 0, %v2252
      %v2254 = vrot.slane %v2249, %v2253
      %v2255 = vlaneseq
      %v2256 = vshrl.u32 %v2255, 7
      %v2257 = vsub.s32 1, %v2256
      %v2258 = vrot.slane %v2249, %v2257
      %v2261 = vmul.f32 %v2248, %v2254
      %v2262 = vmul.f32 %v2247, %v2258
      %2263 = vrot.lane.b32.xlu0 %v2181, 127
      %v2264 = vpop.permute.xlu0 %2263
      %2265 = vrot.lane.b32.xlu0 %v2182, 127
      %v2266 = vpop.permute.xlu0 %2265
      %v2267 = vsel %vm403, %v2264, %v2266
      %v2268 = vsel %vm403, %v2266, %v2264
      %v2269 = vld [vmem:[%s406] ss:$8 sm:$0x3]
      %v2271 = vlaneseq
      %v2272 = vshrl.u32 %v2271, 7
      %v2273 = vsub.s32 0, %v2272
      %v2274 = vrot.slane %v2269, %v2273
      %v2275 = vlaneseq
      %v2276 = vshrl.u32 %v2275, 7
      %v2277 = vsub.s32 1, %v2276
      %v2278 = vrot.slane %v2269, %v2277
      %v2281 = vmul.f32 %v2267, %v2274
      %v2282 = vmul.f32 %v2268, %v2278
      %2283 = vrot.lane.b32.xlu0 %v2181, 113
      %v2284 = vpop.permute.xlu0 %2283
      %2285 = vrot.lane.b32.xlu0 %v2182, 113
      %v2286 = vpop.permute.xlu0 %2285
      %v2287 = vsel %vm425, %v2284, %v2286
      %v2288 = vsel %vm425, %v2286, %v2284
      %v2289 = vld [vmem:[%s428] ss:$8 sm:$0x3]
      %v2291 = vlaneseq
      %v2292 = vshrl.u32 %v2291, 7
      %v2293 = vsub.s32 0, %v2292
      %v2294 = vrot.slane %v2289, %v2293
      %v2295 = vlaneseq
      %v2296 = vshrl.u32 %v2295, 7
      %v2297 = vsub.s32 1, %v2296
      %v2298 = vrot.slane %v2289, %v2297
      %v2301 = vmul.f32 %v2287, %v2294
      %v2302 = vmul.f32 %v2288, %v2298
      %2303 = vrot.lane.b32.xlu0 %v2181, 112
      %v2304 = vpop.permute.xlu0 %2303
      %2305 = vrot.lane.b32.xlu0 %v2182, 112
      %v2306 = vpop.permute.xlu0 %2305
      %v2307 = vsel %vm447, %v2304, %v2306
      %v2308 = vsel %vm447, %v2306, %v2304
      %v2309 = vld [vmem:[%s450] ss:$8 sm:$0x3]
      %v2311 = vlaneseq
      %v2312 = vshrl.u32 %v2311, 7
      %v2313 = vsub.s32 0, %v2312
      %v2314 = vrot.slane %v2309, %v2313
      %v2315 = vlaneseq
      %v2316 = vshrl.u32 %v2315, 7
      %v2317 = vsub.s32 1, %v2316
      %v2318 = vrot.slane %v2309, %v2317
      %v2321 = vmul.f32 %v2307, %v2314
      %v2322 = vmul.f32 %v2308, %v2318
      %2323 = vrot.lane.b32.xlu0 %v2181, 111
      %v2324 = vpop.permute.xlu0 %2323
      %2325 = vrot.lane.b32.xlu0 %v2182, 111
      %v2326 = vpop.permute.xlu0 %2325
      %v2327 = vsel %vm469, %v2324, %v2326
      %v2328 = vsel %vm469, %v2326, %v2324
      %v2329 = vld [vmem:[%s472] ss:$8 sm:$0x3]
      %v2331 = vlaneseq
      %v2332 = vshrl.u32 %v2331, 7
      %v2333 = vsub.s32 0, %v2332
      %v2334 = vrot.slane %v2329, %v2333
      %v2335 = vlaneseq
      %v2336 = vshrl.u32 %v2335, 7
      %v2337 = vsub.s32 1, %v2336
      %v2338 = vrot.slane %v2329, %v2337
      %v2341 = vmul.f32 %v2327, %v2334
      %v2342 = vmul.f32 %v2328, %v2338
      %v2345 = vrot.slane %v2221, 4
      %v2346 = vrot.slane %v2222, 4
      %v2351 = vrot.slane %v2261, 4
      %v2352 = vrot.slane %v2262, 4
      %v2357 = vrot.slane %v2281, 4
      %v2358 = vrot.slane %v2282, 4
      %v2363 = vrot.slane %v2321, 4
      %v2364 = vrot.slane %v2322, 4
      %v2367 = vsel %vm511, %v2201, %v2345
      %v2368 = vsel %vm511, %v2202, %v2346
      %v2369 = vsel %vm511, %v2241, %v2351
      %v2370 = vsel %vm511, %v2242, %v2352
      %v2371 = vsel %vm511, %v2181, %v2357
      %v2372 = vsel %vm511, %v2182, %v2358
      %v2373 = vsel %vm511, %v2301, %v2363
      %v2374 = vsel %vm511, %v2302, %v2364
      %v2375 = vsel %vm511, %v2341, 0.0
      %v2376 = vsel %vm511, %v2342, 0.0
      %2377 = vst [vmem:[#allocation2 + $0xa0] sm:$0xff] %v2367
      %2378 = vst [vmem:[#allocation2 + $0xa8] sm:$0xff] %v2368
      %2379 = vst [vmem:[#allocation2 + $0xb0] sm:$0xff] %v2369
      %2380 = vst [vmem:[#allocation2 + $0xb8] sm:$0xff] %v2370
      %2381 = vst [vmem:[#allocation2 + $0xc0] sm:$0xff] %v2371
      %2382 = vst [vmem:[#allocation2 + $0xc8] sm:$0xff] %v2372
      %2383 = vst [vmem:[#allocation2 + $0xd0] sm:$0xff] %v2373
      %2384 = vst [vmem:[#allocation2 + $0xd8] sm:$0xff] %v2374
      %2385 = vst [vmem:[#allocation2 + $0xe0] sm:$0xff] %v2375
      %2386 = vst [vmem:[#allocation2 + $0xe8] sm:$0xff] %v2376
      %v2387 = vld [vmem:[%s4] sm:$0xf]
      %v2388 = vld [vmem:[#allocation2] sm:$0xff]
      %v2389 = vld [vmem:[#allocation2 + $0x8] sm:$0xff]
      %v2390 = vld [vmem:[#allocation2 + $0x10] sm:$0xff]
      %v2391 = vld [vmem:[#allocation2 + $0x18] sm:$0xff]
      %v2392 = vld [vmem:[#allocation2 + $0x20] sm:$0xff]
      %v2393 = vld [vmem:[#allocation2 + $0x28] sm:$0xff]
      %v2394 = vld [vmem:[#allocation2 + $0x30] sm:$0xff]
      %v2395 = vld [vmem:[#allocation2 + $0x38] sm:$0xff]
      %v2396 = vld [vmem:[#allocation2 + $0x40] sm:$0xff]
      %v2397 = vld [vmem:[#allocation2 + $0x48] sm:$0xff]
      %v2398 = vld [vmem:[#allocation2 + $0x50] sm:$0xff]
      %v2399 = vld [vmem:[#allocation2 + $0x58] sm:$0xff]
      %v2400 = vld [vmem:[#allocation2 + $0x60] sm:$0xff]
      %v2401 = vld [vmem:[#allocation2 + $0x68] sm:$0xff]
      %v2402 = vld [vmem:[#allocation2 + $0x70] sm:$0xff]
      %v2403 = vld [vmem:[#allocation2 + $0x78] sm:$0xff]
      %v2404 = vld [vmem:[#allocation2 + $0x80] sm:$0xff]
      %v2405 = vld [vmem:[#allocation2 + $0x88] sm:$0xff]
      %v2406 = vld [vmem:[#allocation2 + $0x90] sm:$0xff]
      %v2407 = vld [vmem:[#allocation2 + $0x98] sm:$0xff]
      %v2408 = vld [vmem:[#allocation2 + $0xa0] sm:$0xff]
      %v2409 = vld [vmem:[#allocation2 + $0xa8] sm:$0xff]
      %v2410 = vld [vmem:[#allocation2 + $0xb0] sm:$0xff]
      %v2411 = vld [vmem:[#allocation2 + $0xb8] sm:$0xff]
      %v2412 = vld [vmem:[#allocation2 + $0xc0] sm:$0xff]
      %v2413 = vld [vmem:[#allocation2 + $0xc8] sm:$0xff]
      %v2414 = vld [vmem:[#allocation2 + $0xd0] sm:$0xff]
      %v2415 = vld [vmem:[#allocation2 + $0xd8] sm:$0xff]
      %v2416 = vld [vmem:[#allocation2 + $0xe0] sm:$0xff]
      %v2417 = vld [vmem:[#allocation2 + $0xe8] sm:$0xff]
      %vm2418 = vcmask 982016
      %v2420 = vsel %vm2418, %v2387, 0
      %v2422 = vand.u32 %v2389, 4294901760
      %2423 = vmatprep.subr.mxu0 %v2422
      %v2424 = vand.u32 %v2388, 4294901760
      %2425 = vmatpush1.msra.mxu0 %v2424
      %v2426 = vand.u32 %v2391, 4294901760
      %2427 = vmatprep.subr.mxu0 %v2426
      %v2428 = vand.u32 %v2390, 4294901760
      %2429 = vmatpush1.msra.mxu0 %v2428
      %v2430 = vand.u32 %v2393, 4294901760
      %2431 = vmatprep.subr.mxu0 %v2430
      %v2432 = vand.u32 %v2392, 4294901760
      %2433 = vmatpush1.msra.mxu0 %v2432
      %v2434 = vand.u32 %v2395, 4294901760
      %2435 = vmatprep.subr.mxu0 %v2434
      %v2436 = vand.u32 %v2394, 4294901760
      %2437 = vmatpush1.msra.mxu0 %v2436
      %v2438 = vand.u32 %v2397, 4294901760
      %2439 = vmatprep.subr.mxu0 %v2438
      %v2440 = vand.u32 %v2396, 4294901760
      %2441 = vmatpush1.msra.mxu0 %v2440
      %v2442 = vand.u32 %v2399, 4294901760
      %2443 = vmatprep.subr.mxu0 %v2442
      %v2444 = vand.u32 %v2398, 4294901760
      %2445 = vmatpush1.msra.mxu0 %v2444
      %v2446 = vand.u32 %v2401, 4294901760
      %2447 = vmatprep.subr.mxu0 %v2446
      %v2448 = vand.u32 %v2400, 4294901760
      %2449 = vmatpush1.msra.mxu0 %v2448
      %v2450 = vand.u32 %v2403, 4294901760
      %2451 = vmatprep.subr.mxu0 %v2450
      %v2452 = vand.u32 %v2402, 4294901760
      %2453 = vmatpush1.msra.mxu0 %v2452
      %v2454 = vand.u32 %v2405, 4294901760
      %2455 = vmatprep.subr.mxu0 %v2454
      %v2456 = vand.u32 %v2404, 4294901760
      %2457 = vmatpush1.msra.mxu0 %v2456
      %v2458 = vand.u32 %v2407, 4294901760
      %2459 = vmatprep.subr.mxu0 %v2458
      %v2460 = vand.u32 %v2406, 4294901760
      %2461 = vmatpush1.msra.mxu0 %v2460
      %v2462 = vand.u32 %v2409, 4294901760
      %2463 = vmatprep.subr.mxu0 %v2462
      %v2464 = vand.u32 %v2408, 4294901760
      %2465 = vmatpush1.msra.mxu0 %v2464
      %v2466 = vand.u32 %v2411, 4294901760
      %2467 = vmatprep.subr.mxu0 %v2466
      %v2468 = vand.u32 %v2410, 4294901760
      %2469 = vmatpush1.msra.mxu0 %v2468
      %v2470 = vand.u32 %v2413, 4294901760
      %2471 = vmatprep.subr.mxu0 %v2470
      %v2472 = vand.u32 %v2412, 4294901760
      %2473 = vmatpush1.msra.mxu0 %v2472
      %v2474 = vand.u32 %v2415, 4294901760
      %2475 = vmatprep.subr.mxu0 %v2474
      %v2476 = vand.u32 %v2414, 4294901760
      %2477 = vmatpush1.msra.mxu0 %v2476
      %v2478 = vand.u32 %v2417, 4294901760
      %2479 = vmatprep.subr.mxu0 %v2478
      %v2480 = vand.u32 %v2416, 4294901760
      %2481 = vmatpush1.msra.mxu0 %v2480
      %2482 = vmatprep.subr.mxu0 0.0
      %2483 = vmatpush1.msra.mxu0 0.0
      %2484 = vmatprep.subr.mxu0 0.0
      %2485 = vmatpush1.msra.mxu0 0.0
      %2486 = vmatprep.subr.mxu0 0.0
      %2487 = vmatpush1.msra.mxu0 0.0
      %2488 = vmatprep.subr.mxu0 0.0
      %2489 = vmatpush1.msra.mxu0 0.0
      %2490 = vmatprep.subr.mxu0 0.0
      %2491 = vmatpush1.msra.mxu0 0.0
      %2492 = vmatprep.subr.mxu0 0.0
      %2493 = vmatpush1.msra.mxu0 0.0
      %2494 = vmatprep.subr.mxu0 0.0
      %2495 = vmatpush1.msra.mxu0 0.0
      %2496 = vmatprep.subr.mxu0 0.0
      %2497 = vmatpush1.msra.mxu0 0.0
      %2498 = vmatprep.subr.mxu0 0.0
      %2499 = vmatpush1.msra.mxu0 0.0
      %2500 = vmatprep.subr.mxu0 0.0
      %2501 = vmatpush1.msra.mxu0 0.0
      %2502 = vmatprep.subr.mxu0 0.0
      %2503 = vmatpush1.msra.mxu0 0.0
      %2504 = vmatprep.subr.mxu0 0.0
      %2505 = vmatpush1.msra.mxu0 0.0
      %2506 = vmatprep.subr.mxu0 0.0
      %2507 = vmatpush1.msra.mxu0 0.0
      %2508 = vmatprep.subr.mxu0 0.0
      %2509 = vmatpush1.msra.mxu0 0.0
      %2510 = vmatprep.subr.mxu0 0.0
      %2511 = vmatpush1.msra.mxu0 0.0
      %2512 = vmatprep.subr.mxu0 0.0
      %2513 = vmatpush1.msra.mxu0 0.0
      %2514 = vmatprep.subr.mxu0 0.0
      %2515 = vmatpush1.msra.mxu0 0.0
      %2516 = vmatprep.mubr.f32.mxu0 0.0
      %v2517 = vand.u32 %v2420, 4294901760
      %v2518 = vsub.f32 %v2420, %v2517
      %v2519 = vand.u32 %v2518, 4294901760
      %v2520 = vsub.f32 %v2518, %v2519
      %v2521 = vand.u32 %v2520, 4294901760
      %2522 = vmatmul.mubr.f32.gmra.mrb[0].mxu0 %v2521
      %v2523 = vpop.f32.mrb[0].mxu0
      %v2524 = vadd.f32 0.0, %v2523
      %v2525 = vpop.f32.mrb[0].mxu0
      %v2526 = vadd.f32 0.0, %v2525
      %2527 = vdwg.mxu0
      %v2528 = vand.u32 %v2389, 4294901760
      %v2529 = vsub.f32 %v2389, %v2528
      %v2530 = vand.u32 %v2529, 4294901760
      %v2531 = vsub.f32 %v2529, %v2530
      %v2532 = vand.u32 %v2531, 4294901760
      %2533 = vmatprep.subr.mxu0 %v2532
      %v2534 = vand.u32 %v2388, 4294901760
      %v2535 = vsub.f32 %v2388, %v2534
      %v2536 = vand.u32 %v2535, 4294901760
      %v2537 = vsub.f32 %v2535, %v2536
      %v2538 = vand.u32 %v2537, 4294901760
      %2539 = vmatpush1.msra.mxu0 %v2538
      %v2540 = vand.u32 %v2391, 4294901760
      %v2541 = vsub.f32 %v2391, %v2540
      %v2542 = vand.u32 %v2541, 4294901760
      %v2543 = vsub.f32 %v2541, %v2542
      %v2544 = vand.u32 %v2543, 4294901760
      %2545 = vmatprep.subr.mxu0 %v2544
      %v2546 = vand.u32 %v2390, 4294901760
      %v2547 = vsub.f32 %v2390, %v2546
      %v2548 = vand.u32 %v2547, 4294901760
      %v2549 = vsub.f32 %v2547, %v2548
      %v2550 = vand.u32 %v2549, 4294901760
      %2551 = vmatpush1.msra.mxu0 %v2550
      %v2552 = vand.u32 %v2393, 4294901760
      %v2553 = vsub.f32 %v2393, %v2552
      %v2554 = vand.u32 %v2553, 4294901760
      %v2555 = vsub.f32 %v2553, %v2554
      %v2556 = vand.u32 %v2555, 4294901760
      %2557 = vmatprep.subr.mxu0 %v2556
      %v2558 = vand.u32 %v2392, 4294901760
      %v2559 = vsub.f32 %v2392, %v2558
      %v2560 = vand.u32 %v2559, 4294901760
      %v2561 = vsub.f32 %v2559, %v2560
      %v2562 = vand.u32 %v2561, 4294901760
      %2563 = vmatpush1.msra.mxu0 %v2562
      %v2564 = vand.u32 %v2395, 4294901760
      %v2565 = vsub.f32 %v2395, %v2564
      %v2566 = vand.u32 %v2565, 4294901760
      %v2567 = vsub.f32 %v2565, %v2566
      %v2568 = vand.u32 %v2567, 4294901760
      %2569 = vmatprep.subr.mxu0 %v2568
      %v2570 = vand.u32 %v2394, 4294901760
      %v2571 = vsub.f32 %v2394, %v2570
      %v2572 = vand.u32 %v2571, 4294901760
      %v2573 = vsub.f32 %v2571, %v2572
      %v2574 = vand.u32 %v2573, 4294901760
      %2575 = vmatpush1.msra.mxu0 %v2574
      %v2576 = vand.u32 %v2397, 4294901760
      %v2577 = vsub.f32 %v2397, %v2576
      %v2578 = vand.u32 %v2577, 4294901760
      %v2579 = vsub.f32 %v2577, %v2578
      %v2580 = vand.u32 %v2579, 4294901760
      %2581 = vmatprep.subr.mxu0 %v2580
      %v2582 = vand.u32 %v2396, 4294901760
      %v2583 = vsub.f32 %v2396, %v2582
      %v2584 = vand.u32 %v2583, 4294901760
      %v2585 = vsub.f32 %v2583, %v2584
      %v2586 = vand.u32 %v2585, 4294901760
      %2587 = vmatpush1.msra.mxu0 %v2586
      %v2588 = vand.u32 %v2399, 4294901760
      %v2589 = vsub.f32 %v2399, %v2588
      %v2590 = vand.u32 %v2589, 4294901760
      %v2591 = vsub.f32 %v2589, %v2590
      %v2592 = vand.u32 %v2591, 4294901760
      %2593 = vmatprep.subr.mxu0 %v2592
      %v2594 = vand.u32 %v2398, 4294901760
      %v2595 = vsub.f32 %v2398, %v2594
      %v2596 = vand.u32 %v2595, 4294901760
      %v2597 = vsub.f32 %v2595, %v2596
      %v2598 = vand.u32 %v2597, 4294901760
      %2599 = vmatpush1.msra.mxu0 %v2598
      %v2600 = vand.u32 %v2401, 4294901760
      %v2601 = vsub.f32 %v2401, %v2600
      %v2602 = vand.u32 %v2601, 4294901760
      %v2603 = vsub.f32 %v2601, %v2602
      %v2604 = vand.u32 %v2603, 4294901760
      %2605 = vmatprep.subr.mxu0 %v2604
      %v2606 = vand.u32 %v2400, 4294901760
      %v2607 = vsub.f32 %v2400, %v2606
      %v2608 = vand.u32 %v2607, 4294901760
      %v2609 = vsub.f32 %v2607, %v2608
      %v2610 = vand.u32 %v2609, 4294901760
      %2611 = vmatpush1.msra.mxu0 %v2610
      %v2612 = vand.u32 %v2403, 4294901760
      %v2613 = vsub.f32 %v2403, %v2612
      %v2614 = vand.u32 %v2613, 4294901760
      %v2615 = vsub.f32 %v2613, %v2614
      %v2616 = vand.u32 %v2615, 4294901760
      %2617 = vmatprep.subr.mxu0 %v2616
      %v2618 = vand.u32 %v2402, 4294901760
      %v2619 = vsub.f32 %v2402, %v2618
      %v2620 = vand.u32 %v2619, 4294901760
      %v2621 = vsub.f32 %v2619, %v2620
      %v2622 = vand.u32 %v2621, 4294901760
      %2623 = vmatpush1.msra.mxu0 %v2622
      %v2624 = vand.u32 %v2405, 4294901760
      %v2625 = vsub.f32 %v2405, %v2624
      %v2626 = vand.u32 %v2625, 4294901760
      %v2627 = vsub.f32 %v2625, %v2626
      %v2628 = vand.u32 %v2627, 4294901760
      %2629 = vmatprep.subr.mxu0 %v2628
      %v2630 = vand.u32 %v2404, 4294901760
      %v2631 = vsub.f32 %v2404, %v2630
      %v2632 = vand.u32 %v2631, 4294901760
      %v2633 = vsub.f32 %v2631, %v2632
      %v2634 = vand.u32 %v2633, 4294901760
      %2635 = vmatpush1.msra.mxu0 %v2634
      %v2636 = vand.u32 %v2407, 4294901760
      %v2637 = vsub.f32 %v2407, %v2636
      %v2638 = vand.u32 %v2637, 4294901760
      %v2639 = vsub.f32 %v2637, %v2638
      %v2640 = vand.u32 %v2639, 4294901760
      %2641 = vmatprep.subr.mxu0 %v2640
      %v2642 = vand.u32 %v2406, 4294901760
      %v2643 = vsub.f32 %v2406, %v2642
      %v2644 = vand.u32 %v2643, 4294901760
      %v2645 = vsub.f32 %v2643, %v2644
      %v2646 = vand.u32 %v2645, 4294901760
      %2647 = vmatpush1.msra.mxu0 %v2646
      %v2648 = vand.u32 %v2409, 4294901760
      %v2649 = vsub.f32 %v2409, %v2648
      %v2650 = vand.u32 %v2649, 4294901760
      %v2651 = vsub.f32 %v2649, %v2650
      %v2652 = vand.u32 %v2651, 4294901760
      %2653 = vmatprep.subr.mxu0 %v2652
      %v2654 = vand.u32 %v2408, 4294901760
      %v2655 = vsub.f32 %v2408, %v2654
      %v2656 = vand.u32 %v2655, 4294901760
      %v2657 = vsub.f32 %v2655, %v2656
      %v2658 = vand.u32 %v2657, 4294901760
      %2659 = vmatpush1.msra.mxu0 %v2658
      %v2660 = vand.u32 %v2411, 4294901760
      %v2661 = vsub.f32 %v2411, %v2660
      %v2662 = vand.u32 %v2661, 4294901760
      %v2663 = vsub.f32 %v2661, %v2662
      %v2664 = vand.u32 %v2663, 4294901760
      %2665 = vmatprep.subr.mxu0 %v2664
      %v2666 = vand.u32 %v2410, 4294901760
      %v2667 = vsub.f32 %v2410, %v2666
      %v2668 = vand.u32 %v2667, 4294901760
      %v2669 = vsub.f32 %v2667, %v2668
      %v2670 = vand.u32 %v2669, 4294901760
      %2671 = vmatpush1.msra.mxu0 %v2670
      %v2672 = vand.u32 %v2413, 4294901760
      %v2673 = vsub.f32 %v2413, %v2672
      %v2674 = vand.u32 %v2673, 4294901760
      %v2675 = vsub.f32 %v2673, %v2674
      %v2676 = vand.u32 %v2675, 4294901760
      %2677 = vmatprep.subr.mxu0 %v2676
      %v2678 = vand.u32 %v2412, 4294901760
      %v2679 = vsub.f32 %v2412, %v2678
      %v2680 = vand.u32 %v2679, 4294901760
      %v2681 = vsub.f32 %v2679, %v2680
      %v2682 = vand.u32 %v2681, 4294901760
      %2683 = vmatpush1.msra.mxu0 %v2682
      %v2684 = vand.u32 %v2415, 4294901760
      %v2685 = vsub.f32 %v2415, %v2684
      %v2686 = vand.u32 %v2685, 4294901760
      %v2687 = vsub.f32 %v2685, %v2686
      %v2688 = vand.u32 %v2687, 4294901760
      %2689 = vmatprep.subr.mxu0 %v2688
      %v2690 = vand.u32 %v2414, 4294901760
      %v2691 = vsub.f32 %v2414, %v2690
      %v2692 = vand.u32 %v2691, 4294901760
      %v2693 = vsub.f32 %v2691, %v2692
      %v2694 = vand.u32 %v2693, 4294901760
      %2695 = vmatpush1.msra.mxu0 %v2694
      %v2696 = vand.u32 %v2417, 4294901760
      %v2697 = vsub.f32 %v2417, %v2696
      %v2698 = vand.u32 %v2697, 4294901760
      %v2699 = vsub.f32 %v2697, %v2698
      %v2700 = vand.u32 %v2699, 4294901760
      %2701 = vmatprep.subr.mxu0 %v2700
      %v2702 = vand.u32 %v2416, 4294901760
      %v2703 = vsub.f32 %v2416, %v2702
      %v2704 = vand.u32 %v2703, 4294901760
      %v2705 = vsub.f32 %v2703, %v2704
      %v2706 = vand.u32 %v2705, 4294901760
      %2707 = vmatpush1.msra.mxu0 %v2706
      %2708 = vmatprep.subr.mxu0 0.0
      %2709 = vmatpush1.msra.mxu0 0.0
      %2710 = vmatprep.subr.mxu0 0.0
      %2711 = vmatpush1.msra.mxu0 0.0
      %2712 = vmatprep.subr.mxu0 0.0
      %2713 = vmatpush1.msra.mxu0 0.0
      %2714 = vmatprep.subr.mxu0 0.0
      %2715 = vmatpush1.msra.mxu0 0.0
      %2716 = vmatprep.subr.mxu0 0.0
      %2717 = vmatpush1.msra.mxu0 0.0
      %2718 = vmatprep.subr.mxu0 0.0
      %2719 = vmatpush1.msra.mxu0 0.0
      %2720 = vmatprep.subr.mxu0 0.0
      %2721 = vmatpush1.msra.mxu0 0.0
      %2722 = vmatprep.subr.mxu0 0.0
      %2723 = vmatpush1.msra.mxu0 0.0
      %2724 = vmatprep.subr.mxu0 0.0
      %2725 = vmatpush1.msra.mxu0 0.0
      %2726 = vmatprep.subr.mxu0 0.0
      %2727 = vmatpush1.msra.mxu0 0.0
      %2728 = vmatprep.subr.mxu0 0.0
      %2729 = vmatpush1.msra.mxu0 0.0
      %2730 = vmatprep.subr.mxu0 0.0
      %2731 = vmatpush1.msra.mxu0 0.0
      %2732 = vmatprep.subr.mxu0 0.0
      %2733 = vmatpush1.msra.mxu0 0.0
      %2734 = vmatprep.subr.mxu0 0.0
      %2735 = vmatpush1.msra.mxu0 0.0
      %2736 = vmatprep.subr.mxu0 0.0
      %2737 = vmatpush1.msra.mxu0 0.0
      %2738 = vmatprep.subr.mxu0 0.0
      %2739 = vmatpush1.msra.mxu0 0.0
      %2740 = vmatprep.subr.mxu0 0.0
      %2741 = vmatpush1.msra.mxu0 0.0
      %2742 = vmatprep.mubr.f32.mxu0 0.0
      %v2743 = vand.u32 %v2420, 4294901760
      %2744 = vmatmul.mubr.f32.gmra.mrb[0].mxu0 %v2743
      %v2745 = vpop.f32.mrb[0].mxu0
      %v2746 = vadd.f32 %v2524, %v2745
      %v2747 = vpop.f32.mrb[0].mxu0
      %v2748 = vadd.f32 %v2526, %v2747
      %2749 = vdwg.mxu0
      %v2750 = vand.u32 %v2389, 4294901760
      %v2751 = vsub.f32 %v2389, %v2750
      %2752 = vmatprep.subr.mxu0 %v2751
      %v2753 = vand.u32 %v2388, 4294901760
      %v2754 = vsub.f32 %v2388, %v2753
      %2755 = vmatpush1.msra.mxu0 %v2754
      %v2756 = vand.u32 %v2391, 4294901760
      %v2757 = vsub.f32 %v2391, %v2756
      %2758 = vmatprep.subr.mxu0 %v2757
      %v2759 = vand.u32 %v2390, 4294901760
      %v2760 = vsub.f32 %v2390, %v2759
      %2761 = vmatpush1.msra.mxu0 %v2760
      %v2762 = vand.u32 %v2393, 4294901760
      %v2763 = vsub.f32 %v2393, %v2762
      %2764 = vmatprep.subr.mxu0 %v2763
      %v2765 = vand.u32 %v2392, 4294901760
      %v2766 = vsub.f32 %v2392, %v2765
      %2767 = vmatpush1.msra.mxu0 %v2766
      %v2768 = vand.u32 %v2395, 4294901760
      %v2769 = vsub.f32 %v2395, %v2768
      %2770 = vmatprep.subr.mxu0 %v2769
      %v2771 = vand.u32 %v2394, 4294901760
      %v2772 = vsub.f32 %v2394, %v2771
      %2773 = vmatpush1.msra.mxu0 %v2772
      %v2774 = vand.u32 %v2397, 4294901760
      %v2775 = vsub.f32 %v2397, %v2774
      %2776 = vmatprep.subr.mxu0 %v2775
      %v2777 = vand.u32 %v2396, 4294901760
      %v2778 = vsub.f32 %v2396, %v2777
      %2779 = vmatpush1.msra.mxu0 %v2778
      %v2780 = vand.u32 %v2399, 4294901760
      %v2781 = vsub.f32 %v2399, %v2780
      %2782 = vmatprep.subr.mxu0 %v2781
      %v2783 = vand.u32 %v2398, 4294901760
      %v2784 = vsub.f32 %v2398, %v2783
      %2785 = vmatpush1.msra.mxu0 %v2784
      %v2786 = vand.u32 %v2401, 4294901760
      %v2787 = vsub.f32 %v2401, %v2786
      %2788 = vmatprep.subr.mxu0 %v2787
      %v2789 = vand.u32 %v2400, 4294901760
      %v2790 = vsub.f32 %v2400, %v2789
      %2791 = vmatpush1.msra.mxu0 %v2790
      %v2792 = vand.u32 %v2403, 4294901760
      %v2793 = vsub.f32 %v2403, %v2792
      %2794 = vmatprep.subr.mxu0 %v2793
      %v2795 = vand.u32 %v2402, 4294901760
      %v2796 = vsub.f32 %v2402, %v2795
      %2797 = vmatpush1.msra.mxu0 %v2796
      %v2798 = vand.u32 %v2405, 4294901760
      %v2799 = vsub.f32 %v2405, %v2798
      %2800 = vmatprep.subr.mxu0 %v2799
      %v2801 = vand.u32 %v2404, 4294901760
      %v2802 = vsub.f32 %v2404, %v2801
      %2803 = vmatpush1.msra.mxu0 %v2802
      %v2804 = vand.u32 %v2407, 4294901760
      %v2805 = vsub.f32 %v2407, %v2804
      %2806 = vmatprep.subr.mxu0 %v2805
      %v2807 = vand.u32 %v2406, 4294901760
      %v2808 = vsub.f32 %v2406, %v2807
      %2809 = vmatpush1.msra.mxu0 %v2808
      %v2810 = vand.u32 %v2409, 4294901760
      %v2811 = vsub.f32 %v2409, %v2810
      %2812 = vmatprep.subr.mxu0 %v2811
      %v2813 = vand.u32 %v2408, 4294901760
      %v2814 = vsub.f32 %v2408, %v2813
      %2815 = vmatpush1.msra.mxu0 %v2814
      %v2816 = vand.u32 %v2411, 4294901760
      %v2817 = vsub.f32 %v2411, %v2816
      %2818 = vmatprep.subr.mxu0 %v2817
      %v2819 = vand.u32 %v2410, 4294901760
      %v2820 = vsub.f32 %v2410, %v2819
      %2821 = vmatpush1.msra.mxu0 %v2820
      %v2822 = vand.u32 %v2413, 4294901760
      %v2823 = vsub.f32 %v2413, %v2822
      %2824 = vmatprep.subr.mxu0 %v2823
      %v2825 = vand.u32 %v2412, 4294901760
      %v2826 = vsub.f32 %v2412, %v2825
      %2827 = vmatpush1.msra.mxu0 %v2826
      %v2828 = vand.u32 %v2415, 4294901760
      %v2829 = vsub.f32 %v2415, %v2828
      %2830 = vmatprep.subr.mxu0 %v2829
      %v2831 = vand.u32 %v2414, 4294901760
      %v2832 = vsub.f32 %v2414, %v2831
      %2833 = vmatpush1.msra.mxu0 %v2832
      %v2834 = vand.u32 %v2417, 4294901760
      %v2835 = vsub.f32 %v2417, %v2834
      %2836 = vmatprep.subr.mxu0 %v2835
      %v2837 = vand.u32 %v2416, 4294901760
      %v2838 = vsub.f32 %v2416, %v2837
      %2839 = vmatpush1.msra.mxu0 %v2838
      %2840 = vmatprep.subr.mxu0 0.0
      %2841 = vmatpush1.msra.mxu0 0.0
      %2842 = vmatprep.subr.mxu0 0.0
      %2843 = vmatpush1.msra.mxu0 0.0
      %2844 = vmatprep.subr.mxu0 0.0
      %2845 = vmatpush1.msra.mxu0 0.0
      %2846 = vmatprep.subr.mxu0 0.0
      %2847 = vmatpush1.msra.mxu0 0.0
      %2848 = vmatprep.subr.mxu0 0.0
      %2849 = vmatpush1.msra.mxu0 0.0
      %2850 = vmatprep.subr.mxu0 0.0
      %2851 = vmatpush1.msra.mxu0 0.0
      %2852 = vmatprep.subr.mxu0 0.0
      %2853 = vmatpush1.msra.mxu0 0.0
      %2854 = vmatprep.subr.mxu0 0.0
      %2855 = vmatpush1.msra.mxu0 0.0
      %2856 = vmatprep.subr.mxu0 0.0
      %2857 = vmatpush1.msra.mxu0 0.0
      %2858 = vmatprep.subr.mxu0 0.0
      %2859 = vmatpush1.msra.mxu0 0.0
      %2860 = vmatprep.subr.mxu0 0.0
      %2861 = vmatpush1.msra.mxu0 0.0
      %2862 = vmatprep.subr.mxu0 0.0
      %2863 = vmatpush1.msra.mxu0 0.0
      %2864 = vmatprep.subr.mxu0 0.0
      %2865 = vmatpush1.msra.mxu0 0.0
      %2866 = vmatprep.subr.mxu0 0.0
      %2867 = vmatpush1.msra.mxu0 0.0
      %2868 = vmatprep.subr.mxu0 0.0
      %2869 = vmatpush1.msra.mxu0 0.0
      %2870 = vmatprep.subr.mxu0 0.0
      %2871 = vmatpush1.msra.mxu0 0.0
      %2872 = vmatprep.subr.mxu0 0.0
      %2873 = vmatpush1.msra.mxu0 0.0
      %2874 = vmatprep.mubr.f32.mxu0 0.0
      %v2875 = vand.u32 %v2420, 4294901760
      %v2876 = vsub.f32 %v2420, %v2875
      %2877 = vmatmul.mubr.f32.gmra.mrb[0].mxu0 %v2876
      %v2878 = vpop.f32.mrb[0].mxu0
      %v2879 = vadd.f32 %v2746, %v2878
      %v2880 = vpop.f32.mrb[0].mxu0
      %v2881 = vadd.f32 %v2748, %v2880
      %2882 = vdwg.mxu0
      %v2883 = vand.u32 %v2389, 4294901760
      %2884 = vmatprep.subr.mxu0 %v2883
      %v2885 = vand.u32 %v2388, 4294901760
      %2886 = vmatpush1.msra.mxu0 %v2885
      %v2887 = vand.u32 %v2391, 4294901760
      %2888 = vmatprep.subr.mxu0 %v2887
      %v2889 = vand.u32 %v2390, 4294901760
      %2890 = vmatpush1.msra.mxu0 %v2889
      %v2891 = vand.u32 %v2393, 4294901760
      %2892 = vmatprep.subr.mxu0 %v2891
      %v2893 = vand.u32 %v2392, 4294901760
      %2894 = vmatpush1.msra.mxu0 %v2893
      %v2895 = vand.u32 %v2395, 4294901760
      %2896 = vmatprep.subr.mxu0 %v2895
      %v2897 = vand.u32 %v2394, 4294901760
      %2898 = vmatpush1.msra.mxu0 %v2897
      %v2899 = vand.u32 %v2397, 4294901760
      %2900 = vmatprep.subr.mxu0 %v2899
      %v2901 = vand.u32 %v2396, 4294901760
      %2902 = vmatpush1.msra.mxu0 %v2901
      %v2903 = vand.u32 %v2399, 4294901760
      %2904 = vmatprep.subr.mxu0 %v2903
      %v2905 = vand.u32 %v2398, 4294901760
      %2906 = vmatpush1.msra.mxu0 %v2905
      %v2907 = vand.u32 %v2401, 4294901760
      %2908 = vmatprep.subr.mxu0 %v2907
      %v2909 = vand.u32 %v2400, 4294901760
      %2910 = vmatpush1.msra.mxu0 %v2909
      %v2911 = vand.u32 %v2403, 4294901760
      %2912 = vmatprep.subr.mxu0 %v2911
      %v2913 = vand.u32 %v2402, 4294901760
      %2914 = vmatpush1.msra.mxu0 %v2913
      %v2915 = vand.u32 %v2405, 4294901760
      %2916 = vmatprep.subr.mxu0 %v2915
      %v2917 = vand.u32 %v2404, 4294901760
      %2918 = vmatpush1.msra.mxu0 %v2917
      %v2919 = vand.u32 %v2407, 4294901760
      %2920 = vmatprep.subr.mxu0 %v2919
      %v2921 = vand.u32 %v2406, 4294901760
      %2922 = vmatpush1.msra.mxu0 %v2921
      %v2923 = vand.u32 %v2409, 4294901760
      %2924 = vmatprep.subr.mxu0 %v2923
      %v2925 = vand.u32 %v2408, 4294901760
      %2926 = vmatpush1.msra.mxu0 %v2925
      %v2927 = vand.u32 %v2411, 4294901760
      %2928 = vmatprep.subr.mxu0 %v2927
      %v2929 = vand.u32 %v2410, 4294901760
      %2930 = vmatpush1.msra.mxu0 %v2929
      %v2931 = vand.u32 %v2413, 4294901760
      %2932 = vmatprep.subr.mxu0 %v2931
      %v2933 = vand.u32 %v2412, 4294901760
      %2934 = vmatpush1.msra.mxu0 %v2933
      %v2935 = vand.u32 %v2415, 4294901760
      %2936 = vmatprep.subr.mxu0 %v2935
      %v2937 = vand.u32 %v2414, 4294901760
      %2938 = vmatpush1.msra.mxu0 %v2937
      %v2939 = vand.u32 %v2417, 4294901760
      %2940 = vmatprep.subr.mxu0 %v2939
      %v2941 = vand.u32 %v2416, 4294901760
      %2942 = vmatpush1.msra.mxu0 %v2941
      %2943 = vmatprep.subr.mxu0 0.0
      %2944 = vmatpush1.msra.mxu0 0.0
      %2945 = vmatprep.subr.mxu0 0.0
      %2946 = vmatpush1.msra.mxu0 0.0
      %2947 = vmatprep.subr.mxu0 0.0
      %2948 = vmatpush1.msra.mxu0 0.0
      %2949 = vmatprep.subr.mxu0 0.0
      %2950 = vmatpush1.msra.mxu0 0.0
      %2951 = vmatprep.subr.mxu0 0.0
      %2952 = vmatpush1.msra.mxu0 0.0
      %2953 = vmatprep.subr.mxu0 0.0
      %2954 = vmatpush1.msra.mxu0 0.0
      %2955 = vmatprep.subr.mxu0 0.0
      %2956 = vmatpush1.msra.mxu0 0.0
      %2957 = vmatprep.subr.mxu0 0.0
      %2958 = vmatpush1.msra.mxu0 0.0
      %2959 = vmatprep.subr.mxu0 0.0
      %2960 = vmatpush1.msra.mxu0 0.0
      %2961 = vmatprep.subr.mxu0 0.0
      %2962 = vmatpush1.msra.mxu0 0.0
      %2963 = vmatprep.subr.mxu0 0.0
      %2964 = vmatpush1.msra.mxu0 0.0
      %2965 = vmatprep.subr.mxu0 0.0
      %2966 = vmatpush1.msra.mxu0 0.0
      %2967 = vmatprep.subr.mxu0 0.0
      %2968 = vmatpush1.msra.mxu0 0.0
      %2969 = vmatprep.subr.mxu0 0.0
      %2970 = vmatpush1.msra.mxu0 0.0
      %2971 = vmatprep.subr.mxu0 0.0
      %2972 = vmatpush1.msra.mxu0 0.0
      %2973 = vmatprep.subr.mxu0 0.0
      %2974 = vmatpush1.msra.mxu0 0.0
      %2975 = vmatprep.subr.mxu0 0.0
      %2976 = vmatpush1.msra.mxu0 0.0
      %2977 = vmatprep.mubr.f32.mxu0 0.0
      %v2978 = vand.u32 %v2420, 4294901760
      %v2979 = vsub.f32 %v2420, %v2978
      %v2980 = vand.u32 %v2979, 4294901760
      %2981 = vmatmul.mubr.f32.gmra.mrb[0].mxu0 %v2980
      %v2982 = vpop.f32.mrb[0].mxu0
      %v2983 = vadd.f32 %v2879, %v2982
      %v2984 = vpop.f32.mrb[0].mxu0
      %v2985 = vadd.f32 %v2881, %v2984
      %2986 = vdwg.mxu0
      %v2987 = vand.u32 %v2389, 4294901760
      %v2988 = vsub.f32 %v2389, %v2987
      %v2989 = vand.u32 %v2988, 4294901760
      %2990 = vmatprep.subr.mxu0 %v2989
      %v2991 = vand.u32 %v2388, 4294901760
      %v2992 = vsub.f32 %v2388, %v2991
      %v2993 = vand.u32 %v2992, 4294901760
      %2994 = vmatpush1.msra.mxu0 %v2993
      %v2995 = vand.u32 %v2391, 4294901760
      %v2996 = vsub.f32 %v2391, %v2995
      %v2997 = vand.u32 %v2996, 4294901760
      %2998 = vmatprep.subr.mxu0 %v2997
      %v2999 = vand.u32 %v2390, 4294901760
      %v3000 = vsub.f32 %v2390, %v2999
      %v3001 = vand.u32 %v3000, 4294901760
      %3002 = vmatpush1.msra.mxu0 %v3001
      %v3003 = vand.u32 %v2393, 4294901760
      %v3004 = vsub.f32 %v2393, %v3003
      %v3005 = vand.u32 %v3004, 4294901760
      %3006 = vmatprep.subr.mxu0 %v3005
      %v3007 = vand.u32 %v2392, 4294901760
      %v3008 = vsub.f32 %v2392, %v3007
      %v3009 = vand.u32 %v3008, 4294901760
      %3010 = vmatpush1.msra.mxu0 %v3009
      %v3011 = vand.u32 %v2395, 4294901760
      %v3012 = vsub.f32 %v2395, %v3011
      %v3013 = vand.u32 %v3012, 4294901760
      %3014 = vmatprep.subr.mxu0 %v3013
      %v3015 = vand.u32 %v2394, 4294901760
      %v3016 = vsub.f32 %v2394, %v3015
      %v3017 = vand.u32 %v3016, 4294901760
      %3018 = vmatpush1.msra.mxu0 %v3017
      %v3019 = vand.u32 %v2397, 4294901760
      %v3020 = vsub.f32 %v2397, %v3019
      %v3021 = vand.u32 %v3020, 4294901760
      %3022 = vmatprep.subr.mxu0 %v3021
      %v3023 = vand.u32 %v2396, 4294901760
      %v3024 = vsub.f32 %v2396, %v3023
      %v3025 = vand.u32 %v3024, 4294901760
      %3026 = vmatpush1.msra.mxu0 %v3025
      %v3027 = vand.u32 %v2399, 4294901760
      %v3028 = vsub.f32 %v2399, %v3027
      %v3029 = vand.u32 %v3028, 4294901760
      %3030 = vmatprep.subr.mxu0 %v3029
      %v3031 = vand.u32 %v2398, 4294901760
      %v3032 = vsub.f32 %v2398, %v3031
      %v3033 = vand.u32 %v3032, 4294901760
      %3034 = vmatpush1.msra.mxu0 %v3033
      %v3035 = vand.u32 %v2401, 4294901760
      %v3036 = vsub.f32 %v2401, %v3035
      %v3037 = vand.u32 %v3036, 4294901760
      %3038 = vmatprep.subr.mxu0 %v3037
      %v3039 = vand.u32 %v2400, 4294901760
      %v3040 = vsub.f32 %v2400, %v3039
      %v3041 = vand.u32 %v3040, 4294901760
      %3042 = vmatpush1.msra.mxu0 %v3041
      %v3043 = vand.u32 %v2403, 4294901760
      %v3044 = vsub.f32 %v2403, %v3043
      %v3045 = vand.u32 %v3044, 4294901760
      %3046 = vmatprep.subr.mxu0 %v3045
      %v3047 = vand.u32 %v2402, 4294901760
      %v3048 = vsub.f32 %v2402, %v3047
      %v3049 = vand.u32 %v3048, 4294901760
      %3050 = vmatpush1.msra.mxu0 %v3049
      %v3051 = vand.u32 %v2405, 4294901760
      %v3052 = vsub.f32 %v2405, %v3051
      %v3053 = vand.u32 %v3052, 4294901760
      %3054 = vmatprep.subr.mxu0 %v3053
      %v3055 = vand.u32 %v2404, 4294901760
      %v3056 = vsub.f32 %v2404, %v3055
      %v3057 = vand.u32 %v3056, 4294901760
      %3058 = vmatpush1.msra.mxu0 %v3057
      %v3059 = vand.u32 %v2407, 4294901760
      %v3060 = vsub.f32 %v2407, %v3059
      %v3061 = vand.u32 %v3060, 4294901760
      %3062 = vmatprep.subr.mxu0 %v3061
      %v3063 = vand.u32 %v2406, 4294901760
      %v3064 = vsub.f32 %v2406, %v3063
      %v3065 = vand.u32 %v3064, 4294901760
      %3066 = vmatpush1.msra.mxu0 %v3065
      %v3067 = vand.u32 %v2409, 4294901760
      %v3068 = vsub.f32 %v2409, %v3067
      %v3069 = vand.u32 %v3068, 4294901760
      %3070 = vmatprep.subr.mxu0 %v3069
      %v3071 = vand.u32 %v2408, 4294901760
      %v3072 = vsub.f32 %v2408, %v3071
      %v3073 = vand.u32 %v3072, 4294901760
      %3074 = vmatpush1.msra.mxu0 %v3073
      %v3075 = vand.u32 %v2411, 4294901760
      %v3076 = vsub.f32 %v2411, %v3075
      %v3077 = vand.u32 %v3076, 4294901760
      %3078 = vmatprep.subr.mxu0 %v3077
      %v3079 = vand.u32 %v2410, 4294901760
      %v3080 = vsub.f32 %v2410, %v3079
      %v3081 = vand.u32 %v3080, 4294901760
      %3082 = vmatpush1.msra.mxu0 %v3081
      %v3083 = vand.u32 %v2413, 4294901760
      %v3084 = vsub.f32 %v2413, %v3083
      %v3085 = vand.u32 %v3084, 4294901760
      %3086 = vmatprep.subr.mxu0 %v3085
      %v3087 = vand.u32 %v2412, 4294901760
      %v3088 = vsub.f32 %v2412, %v3087
      %v3089 = vand.u32 %v3088, 4294901760
      %3090 = vmatpush1.msra.mxu0 %v3089
      %v3091 = vand.u32 %v2415, 4294901760
      %v3092 = vsub.f32 %v2415, %v3091
      %v3093 = vand.u32 %v3092, 4294901760
      %3094 = vmatprep.subr.mxu0 %v3093
      %v3095 = vand.u32 %v2414, 4294901760
      %v3096 = vsub.f32 %v2414, %v3095
      %v3097 = vand.u32 %v3096, 4294901760
      %3098 = vmatpush1.msra.mxu0 %v3097
      %v3099 = vand.u32 %v2417, 4294901760
      %v3100 = vsub.f32 %v2417, %v3099
      %v3101 = vand.u32 %v3100, 4294901760
      %3102 = vmatprep.subr.mxu0 %v3101
      %v3103 = vand.u32 %v2416, 4294901760
      %v3104 = vsub.f32 %v2416, %v3103
      %v3105 = vand.u32 %v3104, 4294901760
      %3106 = vmatpush1.msra.mxu0 %v3105
      %3107 = vmatprep.subr.mxu0 0.0
      %3108 = vmatpush1.msra.mxu0 0.0
      %3109 = vmatprep.subr.mxu0 0.0
      %3110 = vmatpush1.msra.mxu0 0.0
      %3111 = vmatprep.subr.mxu0 0.0
      %3112 = vmatpush1.msra.mxu0 0.0
      %3113 = vmatprep.subr.mxu0 0.0
      %3114 = vmatpush1.msra.mxu0 0.0
      %3115 = vmatprep.subr.mxu0 0.0
      %3116 = vmatpush1.msra.mxu0 0.0
      %3117 = vmatprep.subr.mxu0 0.0
      %3118 = vmatpush1.msra.mxu0 0.0
      %3119 = vmatprep.subr.mxu0 0.0
      %3120 = vmatpush1.msra.mxu0 0.0
      %3121 = vmatprep.subr.mxu0 0.0
      %3122 = vmatpush1.msra.mxu0 0.0
      %3123 = vmatprep.subr.mxu0 0.0
      %3124 = vmatpush1.msra.mxu0 0.0
      %3125 = vmatprep.subr.mxu0 0.0
      %3126 = vmatpush1.msra.mxu0 0.0
      %3127 = vmatprep.subr.mxu0 0.0
      %3128 = vmatpush1.msra.mxu0 0.0
      %3129 = vmatprep.subr.mxu0 0.0
      %3130 = vmatpush1.msra.mxu0 0.0
      %3131 = vmatprep.subr.mxu0 0.0
      %3132 = vmatpush1.msra.mxu0 0.0
      %3133 = vmatprep.subr.mxu0 0.0
      %3134 = vmatpush1.msra.mxu0 0.0
      %3135 = vmatprep.subr.mxu0 0.0
      %3136 = vmatpush1.msra.mxu0 0.0
      %3137 = vmatprep.subr.mxu0 0.0
      %3138 = vmatpush1.msra.mxu0 0.0
      %3139 = vmatprep.subr.mxu0 0.0
      %3140 = vmatpush1.msra.mxu0 0.0
      %3141 = vmatprep.mubr.f32.mxu0 0.0
      %v3142 = vand.u32 %v2420, 4294901760
      %3143 = vmatmul.mubr.f32.gmra.mrb[0].mxu0 %v3142
      %v3144 = vpop.f32.mrb[0].mxu0
      %v3145 = vadd.f32 %v2983, %v3144
      %v3146 = vpop.f32.mrb[0].mxu0
      %v3147 = vadd.f32 %v2985, %v3146
      %3148 = vdwg.mxu0
      %v3149 = vand.u32 %v2389, 4294901760
      %3150 = vmatprep.subr.mxu0 %v3149
      %v3151 = vand.u32 %v2388, 4294901760
      %3152 = vmatpush1.msra.mxu0 %v3151
      %v3153 = vand.u32 %v2391, 4294901760
      %3154 = vmatprep.subr.mxu0 %v3153
      %v3155 = vand.u32 %v2390, 4294901760
      %3156 = vmatpush1.msra.mxu0 %v3155
      %v3157 = vand.u32 %v2393, 4294901760
      %3158 = vmatprep.subr.mxu0 %v3157
      %v3159 = vand.u32 %v2392, 4294901760
      %3160 = vmatpush1.msra.mxu0 %v3159
      %v3161 = vand.u32 %v2395, 4294901760
      %3162 = vmatprep.subr.mxu0 %v3161
      %v3163 = vand.u32 %v2394, 4294901760
      %3164 = vmatpush1.msra.mxu0 %v3163
      %v3165 = vand.u32 %v2397, 4294901760
      %3166 = vmatprep.subr.mxu0 %v3165
      %v3167 = vand.u32 %v2396, 4294901760
      %3168 = vmatpush1.msra.mxu0 %v3167
      %v3169 = vand.u32 %v2399, 4294901760
      %3170 = vmatprep.subr.mxu0 %v3169
      %v3171 = vand.u32 %v2398, 4294901760
      %3172 = vmatpush1.msra.mxu0 %v3171
      %v3173 = vand.u32 %v2401, 4294901760
      %3174 = vmatprep.subr.mxu0 %v3173
      %v3175 = vand.u32 %v2400, 4294901760
      %3176 = vmatpush1.msra.mxu0 %v3175
      %v3177 = vand.u32 %v2403, 4294901760
      %3178 = vmatprep.subr.mxu0 %v3177
      %v3179 = vand.u32 %v2402, 4294901760
      %3180 = vmatpush1.msra.mxu0 %v3179
      %v3181 = vand.u32 %v2405, 4294901760
      %3182 = vmatprep.subr.mxu0 %v3181
      %v3183 = vand.u32 %v2404, 4294901760
      %3184 = vmatpush1.msra.mxu0 %v3183
      %v3185 = vand.u32 %v2407, 4294901760
      %3186 = vmatprep.subr.mxu0 %v3185
      %v3187 = vand.u32 %v2406, 4294901760
      %3188 = vmatpush1.msra.mxu0 %v3187
      %v3189 = vand.u32 %v2409, 4294901760
      %3190 = vmatprep.subr.mxu0 %v3189
      %v3191 = vand.u32 %v2408, 4294901760
      %3192 = vmatpush1.msra.mxu0 %v3191
      %v3193 = vand.u32 %v2411, 4294901760
      %3194 = vmatprep.subr.mxu0 %v3193
      %v3195 = vand.u32 %v2410, 4294901760
      %3196 = vmatpush1.msra.mxu0 %v3195
      %v3197 = vand.u32 %v2413, 4294901760
      %3198 = vmatprep.subr.mxu0 %v3197
      %v3199 = vand.u32 %v2412, 4294901760
      %3200 = vmatpush1.msra.mxu0 %v3199
      %v3201 = vand.u32 %v2415, 4294901760
      %3202 = vmatprep.subr.mxu0 %v3201
      %v3203 = vand.u32 %v2414, 4294901760
      %3204 = vmatpush1.msra.mxu0 %v3203
      %v3205 = vand.u32 %v2417, 4294901760
      %3206 = vmatprep.subr.mxu0 %v3205
      %v3207 = vand.u32 %v2416, 4294901760
      %3208 = vmatpush1.msra.mxu0 %v3207
      %3209 = vmatprep.subr.mxu0 0.0
      %3210 = vmatpush1.msra.mxu0 0.0
      %3211 = vmatprep.subr.mxu0 0.0
      %3212 = vmatpush1.msra.mxu0 0.0
      %3213 = vmatprep.subr.mxu0 0.0
      %3214 = vmatpush1.msra.mxu0 0.0
      %3215 = vmatprep.subr.mxu0 0.0
      %3216 = vmatpush1.msra.mxu0 0.0
      %3217 = vmatprep.subr.mxu0 0.0
      %3218 = vmatpush1.msra.mxu0 0.0
      %3219 = vmatprep.subr.mxu0 0.0
      %3220 = vmatpush1.msra.mxu0 0.0
      %3221 = vmatprep.subr.mxu0 0.0
      %3222 = vmatpush1.msra.mxu0 0.0
      %3223 = vmatprep.subr.mxu0 0.0
      %3224 = vmatpush1.msra.mxu0 0.0
      %3225 = vmatprep.subr.mxu0 0.0
      %3226 = vmatpush1.msra.mxu0 0.0
      %3227 = vmatprep.subr.mxu0 0.0
      %3228 = vmatpush1.msra.mxu0 0.0
      %3229 = vmatprep.subr.mxu0 0.0
      %3230 = vmatpush1.msra.mxu0 0.0
      %3231 = vmatprep.subr.mxu0 0.0
      %3232 = vmatpush1.msra.mxu0 0.0
      %3233 = vmatprep.subr.mxu0 0.0
      %3234 = vmatpush1.msra.mxu0 0.0
      %3235 = vmatprep.subr.mxu0 0.0
      %3236 = vmatpush1.msra.mxu0 0.0
      %3237 = vmatprep.subr.mxu0 0.0
      %3238 = vmatpush1.msra.mxu0 0.0
      %3239 = vmatprep.subr.mxu0 0.0
      %3240 = vmatpush1.msra.mxu0 0.0
      %3241 = vmatprep.subr.mxu0 0.0
      %3242 = vmatpush1.msra.mxu0 0.0
      %3243 = vmatprep.mubr.f32.mxu0 0.0
      %v3244 = vand.u32 %v2420, 4294901760
      %3245 = vmatmul.mubr.f32.gmra.mrb[0].mxu0 %v3244
      %v3246 = vpop.f32.mrb[0].mxu0
      %v3247 = vadd.f32 %v3145, %v3246
      %v3248 = vpop.f32.mrb[0].mxu0
      %v3249 = vadd.f32 %v3147, %v3248
      %3250 = vdwg.mxu0
      %v3251 = vsel %vm511, %v3247, 0.0
      %v3252 = vsel %vm511, %v3249, 0.0
      %v3253 = vadd.f32 %v3251, %v3252
      %3254 = vadd.xlane.f32.xlu0 %v3253
      %v3255 = vpop.xlane.xlu0 %3254
      %v3256 = vrot.slane %v3255, 4
      %v3257 = vadd.f32 %v3255, %v3256
      %v3258 = vrot.slane %v3257, 2
      %v3259 = vadd.f32 %v3257, %v3258
      %v3260 = vrot.slane %v3259, 1
      %v3261 = vadd.f32 %v3259, %v3260
      %s3262 = vtos %v3261
      %v3263 = vmul.f32 %v3247, %v3247
      %v3264 = vmul.f32 %v3249, %v3249
      %v3265 = vsel %vm511, %v3263, 0.0
      %v3266 = vsel %vm511, %v3264, 0.0
      %v3267 = vadd.f32 %v3265, %v3266
      %3268 = vadd.xlane.f32.xlu0 %v3267
      %v3269 = vpop.xlane.xlu0 %3268
      %v3270 = vrot.slane %v3269, 4
      %v3271 = vadd.f32 %v3269, %v3270
      %v3272 = vrot.slane %v3271, 2
      %v3273 = vadd.f32 %v3271, %v3272
      %v3274 = vrot.slane %v3273, 1
      %v3275 = vadd.f32 %v3273, %v3274
      %s3276 = vtos %v3275
      %s3277 = smul.f32 %s3262, 0.0009765625
      %s3278 = smul.f32 %s3276, 0.0009765625
      %s3279 = smul.f32 %s3277, %s3277
      %s3280 = ssub.f32 %s3278, %s3279
      %s3281 = sadd.f32 %s3280, 1e-05
      %v3282 = vstv %s3281
      %v3283 = vrsqrt.pop %v3282
      %s3284 = vtos %v3283
      %s3285 = scalar_lea.vmem %s6, 8
      %v3286 = vld [vmem:[%s3285] sm:$0xf]
      %v3287 = vstv %s3284
      %v3288 = vmul.f32 %v3286, %v3287
      %s3289 = scalar_lea.vmem %s7, 8
      %v3290 = vld [vmem:[%s3289] sm:$0xf]
      %v3291 = vstv %s3277
      %v3292 = vmul.f32 %v3291, %v3288
      %v3293 = vsub.f32 %v3290, %v3292
      %3295 = vset.pattern.permute.xlu0 0
      %3296 = vperm.xlu0 %3295, %v3288
      %v3297 = vpop.permute.xlu0 %3296
      %v3299 = vmul.f32 %v3247, %v3297
      %v3300 = vmul.f32 %v3249, %v3297
      %3302 = vset.pattern.permute.xlu0 0
      %3303 = vperm.xlu0 %3302, %v3293
      %v3304 = vpop.permute.xlu0 %3303
      %v3306 = vadd.f32 %v3299, %v3304
      %v3307 = vadd.f32 %v3300, %v3304
      %v3308 = vmin.f32 %v3306, 0.0
      %v3309 = vmin.f32 %v3307, 0.0
      %vm3310 = vcmp.gt.f32.partialorder %v3306, 0.0
      %vm3311 = vcmp.gt.f32.partialorder %v3307, 0.0
      %v3312 = vmul.f32 %v3308, 1.442695
      %v3313 = vpow.pop %v3312
      %v3314 = vmul.f32 %v3309, 1.442695
      %v3315 = vpow.pop %v3314
      %v3316 = vsub.f32 %v3313, 1.0
      %v3317 = vsub.f32 %v3315, 1.0
      %v3318 = vsel %vm3310, %v3306, %v3316
      %v3319 = vsel %vm3311, %v3307, %v3317
      %3320 = vrot.lane.b32.xlu0 %v3318, 17
      %v3321 = vpop.permute.xlu0 %3320
      %3322 = vrot.lane.b32.xlu0 %v3319, 17
      %v3323 = vpop.permute.xlu0 %3322
      %v3324 = vsel %vm316, %v3321, %v3323
      %v3325 = vsel %vm316, %v3323, %v3321
      %v3326 = vld [vmem:[%s1] ss:$8 sm:$0x3]
      %v3328 = vlaneseq
      %v3329 = vshrl.u32 %v3328, 7
      %v3330 = vsub.s32 0, %v3329
      %v3331 = vrot.slane %v3326, %v3330
      %v3332 = vlaneseq
      %v3333 = vshrl.u32 %v3332, 7
      %v3334 = vsub.s32 1, %v3333
      %v3335 = vrot.slane %v3326, %v3334
      %v3338 = vmul.f32 %v3325, %v3331
      %v3339 = vmul.f32 %v3324, %v3335
      %3340 = vrot.lane.b32.xlu0 %v3318, 16
      %v3341 = vpop.permute.xlu0 %3340
      %3342 = vrot.lane.b32.xlu0 %v3319, 16
      %v3343 = vpop.permute.xlu0 %3342
      %v3344 = vsel %vm337, %v3341, %v3343
      %v3345 = vsel %vm337, %v3343, %v3341
      %v3346 = vld [vmem:[%s340] ss:$8 sm:$0x3]
      %v3348 = vlaneseq
      %v3349 = vshrl.u32 %v3348, 7
      %v3350 = vsub.s32 0, %v3349
      %v3351 = vrot.slane %v3346, %v3350
      %v3352 = vlaneseq
      %v3353 = vshrl.u32 %v3352, 7
      %v3354 = vsub.s32 1, %v3353
      %v3355 = vrot.slane %v3346, %v3354
      %v3358 = vmul.f32 %v3345, %v3351
      %v3359 = vmul.f32 %v3344, %v3355
      %3360 = vrot.lane.b32.xlu0 %v3318, 15
      %v3361 = vpop.permute.xlu0 %3360
      %3362 = vrot.lane.b32.xlu0 %v3319, 15
      %v3363 = vpop.permute.xlu0 %3362
      %v3364 = vsel %vm359, %v3361, %v3363
      %v3365 = vsel %vm359, %v3363, %v3361
      %v3366 = vld [vmem:[%s362] ss:$8 sm:$0x3]
      %v3368 = vlaneseq
      %v3369 = vshrl.u32 %v3368, 7
      %v3370 = vsub.s32 0, %v3369
      %v3371 = vrot.slane %v3366, %v3370
      %v3372 = vlaneseq
      %v3373 = vshrl.u32 %v3372, 7
      %v3374 = vsub.s32 1, %v3373
      %v3375 = vrot.slane %v3366, %v3374
      %v3378 = vmul.f32 %v3365, %v3371
      %v3379 = vmul.f32 %v3364, %v3375
      %3380 = vrot.lane.b32.xlu0 %v3318, 1
      %v3381 = vpop.permute.xlu0 %3380
      %3382 = vrot.lane.b32.xlu0 %v3319, 1
      %v3383 = vpop.permute.xlu0 %3382
      %v3384 = vsel %vm381, %v3381, %v3383
      %v3385 = vsel %vm381, %v3383, %v3381
      %v3386 = vld [vmem:[%s384] ss:$8 sm:$0x3]
      %v3388 = vlaneseq
      %v3389 = vshrl.u32 %v3388, 7
      %v3390 = vsub.s32 0, %v3389
      %v3391 = vrot.slane %v3386, %v3390
      %v3392 = vlaneseq
      %v3393 = vshrl.u32 %v3392, 7
      %v3394 = vsub.s32 1, %v3393
      %v3395 = vrot.slane %v3386, %v3394
      %v3398 = vmul.f32 %v3385, %v3391
      %v3399 = vmul.f32 %v3384, %v3395
      %3400 = vrot.lane.b32.xlu0 %v3318, 127
      %v3401 = vpop.permute.xlu0 %3400
      %3402 = vrot.lane.b32.xlu0 %v3319, 127
      %v3403 = vpop.permute.xlu0 %3402
      %v3404 = vsel %vm403, %v3401, %v3403
      %v3405 = vsel %vm403, %v3403, %v3401
      %v3406 = vld [vmem:[%s406] ss:$8 sm:$0x3]
      %v3408 = vlaneseq
      %v3409 = vshrl.u32 %v3408, 7
      %v3410 = vsub.s32 0, %v3409
      %v3411 = vrot.slane %v3406, %v3410
      %v3412 = vlaneseq
      %v3413 = vshrl.u32 %v3412, 7
      %v3414 = vsub.s32 1, %v3413
      %v3415 = vrot.slane %v3406, %v3414
      %v3418 = vmul.f32 %v3404, %v3411
      %v3419 = vmul.f32 %v3405, %v3415
      %3420 = vrot.lane.b32.xlu0 %v3318, 113
      %v3421 = vpop.permute.xlu0 %3420
      %3422 = vrot.lane.b32.xlu0 %v3319, 113
      %v3423 = vpop.permute.xlu0 %3422
      %v3424 = vsel %vm425, %v3421, %v3423
      %v3425 = vsel %vm425, %v3423, %v3421
      %v3426 = vld [vmem:[%s428] ss:$8 sm:$0x3]
      %v3428 = vlaneseq
      %v3429 = vshrl.u32 %v3428, 7
      %v3430 = vsub.s32 0, %v3429
      %v3431 = vrot.slane %v3426, %v3430
      %v3432 = vlaneseq
      %v3433 = vshrl.u32 %v3432, 7
      %v3434 = vsub.s32 1, %v3433
      %v3435 = vrot.slane %v3426, %v3434
      %v3438 = vmul.f32 %v3424, %v3431
      %v3439 = vmul.f32 %v3425, %v3435
      %3440 = vrot.lane.b32.xlu0 %v3318, 112
      %v3441 = vpop.permute.xlu0 %3440
      %3442 = vrot.lane.b32.xlu0 %v3319, 112
      %v3443 = vpop.permute.xlu0 %3442
      %v3444 = vsel %vm447, %v3441, %v3443
      %v3445 = vsel %vm447, %v3443, %v3441
      %v3446 = vld [vmem:[%s450] ss:$8 sm:$0x3]
      %v3448 = vlaneseq
      %v3449 = vshrl.u32 %v3448, 7
      %v3450 = vsub.s32 0, %v3449
      %v3451 = vrot.slane %v3446, %v3450
      %v3452 = vlaneseq
      %v3453 = vshrl.u32 %v3452, 7
      %v3454 = vsub.s32 1, %v3453
      %v3455 = vrot.slane %v3446, %v3454
      %v3458 = vmul.f32 %v3444, %v3451
      %v3459 = vmul.f32 %v3445, %v3455
      %3460 = vrot.lane.b32.xlu0 %v3318, 111
      %v3461 = vpop.permute.xlu0 %3460
      %3462 = vrot.lane.b32.xlu0 %v3319, 111
      %v3463 = vpop.permute.xlu0 %3462
      %v3464 = vsel %vm469, %v3461, %v3463
      %v3465 = vsel %vm469, %v3463, %v3461
      %v3466 = vld [vmem:[%s472] ss:$8 sm:$0x3]
      %v3468 = vlaneseq
      %v3469 = vshrl.u32 %v3468, 7
      %v3470 = vsub.s32 0, %v3469
      %v3471 = vrot.slane %v3466, %v3470
      %v3472 = vlaneseq
      %v3473 = vshrl.u32 %v3472, 7
      %v3474 = vsub.s32 1, %v3473
      %v3475 = vrot.slane %v3466, %v3474
      %v3478 = vmul.f32 %v3464, %v3471
      %v3479 = vmul.f32 %v3465, %v3475
      %v3482 = vrot.slane %v3358, 4
      %v3483 = vrot.slane %v3359, 4
      %v3488 = vrot.slane %v3398, 4
      %v3489 = vrot.slane %v3399, 4
      %v3494 = vrot.slane %v3418, 4
      %v3495 = vrot.slane %v3419, 4
      %v3500 = vrot.slane %v3458, 4
      %v3501 = vrot.slane %v3459, 4
      %v3504 = vsel %vm511, %v3338, %v3482
      %v3505 = vsel %vm511, %v3339, %v3483
      %v3506 = vsel %vm511, %v3378, %v3488
      %v3507 = vsel %vm511, %v3379, %v3489
      %v3508 = vsel %vm511, %v3318, %v3494
      %v3509 = vsel %vm511, %v3319, %v3495
      %v3510 = vsel %vm511, %v3438, %v3500
      %v3511 = vsel %vm511, %v3439, %v3501
      %v3512 = vsel %vm511, %v3478, 0.0
      %v3513 = vsel %vm511, %v3479, 0.0
      %3514 = vst [vmem:[#allocation2 + $0xf0] sm:$0xff] %v3504
      %3515 = vst [vmem:[#allocation2 + $0xf8] sm:$0xff] %v3505
      %3516 = vst [vmem:[#allocation2 + $0x100] sm:$0xff] %v3506
      %3517 = vst [vmem:[#allocation2 + $0x108] sm:$0xff] %v3507
      %3518 = vst [vmem:[#allocation2 + $0x110] sm:$0xff] %v3508
      %3519 = vst [vmem:[#allocation2 + $0x118] sm:$0xff] %v3509
      %3520 = vst [vmem:[#allocation2 + $0x120] sm:$0xff] %v3510
      %3521 = vst [vmem:[#allocation2 + $0x128] sm:$0xff] %v3511
      %3522 = vst [vmem:[#allocation2 + $0x130] sm:$0xff] %v3512
      %3523 = vst [vmem:[#allocation2 + $0x138] sm:$0xff] %v3513
      %v3524 = vld [vmem:[%s5] sm:$0xff]
      %v3525 = vld [vmem:[#allocation2] sm:$0xff]
      %v3526 = vld [vmem:[#allocation2 + $0x8] sm:$0xff]
      %v3527 = vld [vmem:[#allocation2 + $0x10] sm:$0xff]
      %v3528 = vld [vmem:[#allocation2 + $0x18] sm:$0xff]
      %v3529 = vld [vmem:[#allocation2 + $0x20] sm:$0xff]
      %v3530 = vld [vmem:[#allocation2 + $0x28] sm:$0xff]
      %v3531 = vld [vmem:[#allocation2 + $0x30] sm:$0xff]
      %v3532 = vld [vmem:[#allocation2 + $0x38] sm:$0xff]
      %v3533 = vld [vmem:[#allocation2 + $0x40] sm:$0xff]
      %v3534 = vld [vmem:[#allocation2 + $0x48] sm:$0xff]
      %v3535 = vld [vmem:[#allocation2 + $0x50] sm:$0xff]
      %v3536 = vld [vmem:[#allocation2 + $0x58] sm:$0xff]
      %v3537 = vld [vmem:[#allocation2 + $0x60] sm:$0xff]
      %v3538 = vld [vmem:[#allocation2 + $0x68] sm:$0xff]
      %v3539 = vld [vmem:[#allocation2 + $0x70] sm:$0xff]
      %v3540 = vld [vmem:[#allocation2 + $0x78] sm:$0xff]
      %v3541 = vld [vmem:[#allocation2 + $0x80] sm:$0xff]
      %v3542 = vld [vmem:[#allocation2 + $0x88] sm:$0xff]
      %v3543 = vld [vmem:[#allocation2 + $0x90] sm:$0xff]
      %v3544 = vld [vmem:[#allocation2 + $0x98] sm:$0xff]
      %v3545 = vld [vmem:[#allocation2 + $0xa0] sm:$0xff]
      %v3546 = vld [vmem:[#allocation2 + $0xa8] sm:$0xff]
      %v3547 = vld [vmem:[#allocation2 + $0xb0] sm:$0xff]
      %v3548 = vld [vmem:[#allocation2 + $0xb8] sm:$0xff]
      %v3549 = vld [vmem:[#allocation2 + $0xc0] sm:$0xff]
      %v3550 = vld [vmem:[#allocation2 + $0xc8] sm:$0xff]
      %v3551 = vld [vmem:[#allocation2 + $0xd0] sm:$0xff]
      %v3552 = vld [vmem:[#allocation2 + $0xd8] sm:$0xff]
      %v3553 = vld [vmem:[#allocation2 + $0xe0] sm:$0xff]
      %v3554 = vld [vmem:[#allocation2 + $0xe8] sm:$0xff]
      %v3555 = vld [vmem:[#allocation2 + $0xf0] sm:$0xff]
      %v3556 = vld [vmem:[#allocation2 + $0xf8] sm:$0xff]
      %v3557 = vld [vmem:[#allocation2 + $0x100] sm:$0xff]
      %v3558 = vld [vmem:[#allocation2 + $0x108] sm:$0xff]
      %v3559 = vld [vmem:[#allocation2 + $0x110] sm:$0xff]
      %v3560 = vld [vmem:[#allocation2 + $0x118] sm:$0xff]
      %v3561 = vld [vmem:[#allocation2 + $0x120] sm:$0xff]
      %v3562 = vld [vmem:[#allocation2 + $0x128] sm:$0xff]
      %v3563 = vld [vmem:[#allocation2 + $0x130] sm:$0xff]
      %v3564 = vld [vmem:[#allocation2 + $0x138] sm:$0xff]
      %v3566 = vcombine.high %v3524, %v3524
      %vm3567 = vcmask 261120
      %v3568 = vsel %vm3567, %v3566, 0
      %v3570 = vand.u32 %v3526, 4294901760
      %3571 = vmatprep.subr.mxu0 %v3570
      %v3572 = vand.u32 %v3525, 4294901760
      %3573 = vmatpush1.msra.mxu0 %v3572
      %v3574 = vand.u32 %v3528, 4294901760
      %3575 = vmatprep.subr.mxu0 %v3574
      %v3576 = vand.u32 %v3527, 4294901760
      %3577 = vmatpush1.msra.mxu0 %v3576
      %v3578 = vand.u32 %v3530, 4294901760
      %3579 = vmatprep.subr.mxu0 %v3578
      %v3580 = vand.u32 %v3529, 4294901760
      %3581 = vmatpush1.msra.mxu0 %v3580
      %v3582 = vand.u32 %v3532, 4294901760
      %3583 = vmatprep.subr.mxu0 %v3582
      %v3584 = vand.u32 %v3531, 4294901760
      %3585 = vmatpush1.msra.mxu0 %v3584
      %v3586 = vand.u32 %v3534, 4294901760
      %3587 = vmatprep.subr.mxu0 %v3586
      %v3588 = vand.u32 %v3533, 4294901760
      %3589 = vmatpush1.msra.mxu0 %v3588
      %v3590 = vand.u32 %v3536, 4294901760
      %3591 = vmatprep.subr.mxu0 %v3590
      %v3592 = vand.u32 %v3535, 4294901760
      %3593 = vmatpush1.msra.mxu0 %v3592
      %v3594 = vand.u32 %v3538, 4294901760
      %3595 = vmatprep.subr.mxu0 %v3594
      %v3596 = vand.u32 %v3537, 4294901760
      %3597 = vmatpush1.msra.mxu0 %v3596
      %v3598 = vand.u32 %v3540, 4294901760
      %3599 = vmatprep.subr.mxu0 %v3598
      %v3600 = vand.u32 %v3539, 4294901760
      %3601 = vmatpush1.msra.mxu0 %v3600
      %v3602 = vand.u32 %v3542, 4294901760
      %3603 = vmatprep.subr.mxu0 %v3602
      %v3604 = vand.u32 %v3541, 4294901760
      %3605 = vmatpush1.msra.mxu0 %v3604
      %v3606 = vand.u32 %v3544, 4294901760
      %3607 = vmatprep.subr.mxu0 %v3606
      %v3608 = vand.u32 %v3543, 4294901760
      %3609 = vmatpush1.msra.mxu0 %v3608
      %v3610 = vand.u32 %v3546, 4294901760
      %3611 = vmatprep.subr.mxu0 %v3610
      %v3612 = vand.u32 %v3545, 4294901760
      %3613 = vmatpush1.msra.mxu0 %v3612
      %v3614 = vand.u32 %v3548, 4294901760
      %3615 = vmatprep.subr.mxu0 %v3614
      %v3616 = vand.u32 %v3547, 4294901760
      %3617 = vmatpush1.msra.mxu0 %v3616
      %v3618 = vand.u32 %v3550, 4294901760
      %3619 = vmatprep.subr.mxu0 %v3618
      %v3620 = vand.u32 %v3549, 4294901760
      %3621 = vmatpush1.msra.mxu0 %v3620
      %v3622 = vand.u32 %v3552, 4294901760
      %3623 = vmatprep.subr.mxu0 %v3622
      %v3624 = vand.u32 %v3551, 4294901760
      %3625 = vmatpush1.msra.mxu0 %v3624
      %v3626 = vand.u32 %v3554, 4294901760
      %3627 = vmatprep.subr.mxu0 %v3626
      %v3628 = vand.u32 %v3553, 4294901760
      %3629 = vmatpush1.msra.mxu0 %v3628
      %v3630 = vand.u32 %v3556, 4294901760
      %3631 = vmatprep.subr.mxu0 %v3630
      %v3632 = vand.u32 %v3555, 4294901760
      %3633 = vmatpush1.msra.mxu0 %v3632
      %v3634 = vand.u32 %v3558, 4294901760
      %3635 = vmatprep.subr.mxu0 %v3634
      %v3636 = vand.u32 %v3557, 4294901760
      %3637 = vmatpush1.msra.mxu0 %v3636
      %v3638 = vand.u32 %v3560, 4294901760
      %3639 = vmatprep.subr.mxu0 %v3638
      %v3640 = vand.u32 %v3559, 4294901760
      %3641 = vmatpush1.msra.mxu0 %v3640
      %v3642 = vand.u32 %v3562, 4294901760
      %3643 = vmatprep.subr.mxu0 %v3642
      %v3644 = vand.u32 %v3561, 4294901760
      %3645 = vmatpush1.msra.mxu0 %v3644
      %v3646 = vand.u32 %v3564, 4294901760
      %3647 = vmatprep.subr.mxu0 %v3646
      %v3648 = vand.u32 %v3563, 4294901760
      %3649 = vmatpush1.msra.mxu0 %v3648
      %3650 = vmatprep.subr.mxu0 0.0
      %3651 = vmatpush1.msra.mxu0 0.0
      %3652 = vmatprep.subr.mxu0 0.0
      %3653 = vmatpush1.msra.mxu0 0.0
      %3654 = vmatprep.subr.mxu0 0.0
      %3655 = vmatpush1.msra.mxu0 0.0
      %3656 = vmatprep.subr.mxu0 0.0
      %3657 = vmatpush1.msra.mxu0 0.0
      %3658 = vmatprep.subr.mxu0 0.0
      %3659 = vmatpush1.msra.mxu0 0.0
      %3660 = vmatprep.subr.mxu0 0.0
      %3661 = vmatpush1.msra.mxu0 0.0
      %3662 = vmatprep.subr.mxu0 0.0
      %3663 = vmatpush1.msra.mxu0 0.0
      %3664 = vmatprep.subr.mxu0 0.0
      %3665 = vmatpush1.msra.mxu0 0.0
      %3666 = vmatprep.subr.mxu0 0.0
      %3667 = vmatpush1.msra.mxu0 0.0
      %3668 = vmatprep.subr.mxu0 0.0
      %3669 = vmatpush1.msra.mxu0 0.0
      %3670 = vmatprep.subr.mxu0 0.0
      %3671 = vmatpush1.msra.mxu0 0.0
      %3672 = vmatprep.subr.mxu0 0.0
      %3673 = vmatpush1.msra.mxu0 0.0
      %v3674 = vand.u32 %v3568, 4294901760
      %v3675 = vsub.f32 %v3568, %v3674
      %v3676 = vand.u32 %v3675, 4294901760
      %v3677 = vsub.f32 %v3675, %v3676
      %v3678 = vand.u32 %v3677, 4294901760
      %3679 = vmatprep.mubr.f32.mxu0 %v3678
      %v3680 = vand.u32 %v3524, 4294901760
      %v3681 = vsub.f32 %v3524, %v3680
      %v3682 = vand.u32 %v3681, 4294901760
      %v3683 = vsub.f32 %v3681, %v3682
      %v3684 = vand.u32 %v3683, 4294901760
      %3685 = vmatmul.mubr.f32.gmra.mrb[0].mxu0 %v3684
      %v3686 = vpop.f32.mrb[0].mxu0
      %v3687 = vadd.f32 0.0, %v3686
      %v3688 = vpop.f32.mrb[0].mxu0
      %v3689 = vadd.f32 0.0, %v3688
      %3690 = vdwg.mxu0
      %v3691 = vand.u32 %v3526, 4294901760
      %v3692 = vsub.f32 %v3526, %v3691
      %v3693 = vand.u32 %v3692, 4294901760
      %v3694 = vsub.f32 %v3692, %v3693
      %v3695 = vand.u32 %v3694, 4294901760
      %3696 = vmatprep.subr.mxu0 %v3695
      %v3697 = vand.u32 %v3525, 4294901760
      %v3698 = vsub.f32 %v3525, %v3697
      %v3699 = vand.u32 %v3698, 4294901760
      %v3700 = vsub.f32 %v3698, %v3699
      %v3701 = vand.u32 %v3700, 4294901760
      %3702 = vmatpush1.msra.mxu0 %v3701
      %v3703 = vand.u32 %v3528, 4294901760
      %v3704 = vsub.f32 %v3528, %v3703
      %v3705 = vand.u32 %v3704, 4294901760
      %v3706 = vsub.f32 %v3704, %v3705
      %v3707 = vand.u32 %v3706, 4294901760
      %3708 = vmatprep.subr.mxu0 %v3707
      %v3709 = vand.u32 %v3527, 4294901760
      %v3710 = vsub.f32 %v3527, %v3709
      %v3711 = vand.u32 %v3710, 4294901760
      %v3712 = vsub.f32 %v3710, %v3711
      %v3713 = vand.u32 %v3712, 4294901760
      %3714 = vmatpush1.msra.mxu0 %v3713
      %v3715 = vand.u32 %v3530, 4294901760
      %v3716 = vsub.f32 %v3530, %v3715
      %v3717 = vand.u32 %v3716, 4294901760
      %v3718 = vsub.f32 %v3716, %v3717
      %v3719 = vand.u32 %v3718, 4294901760
      %3720 = vmatprep.subr.mxu0 %v3719
      %v3721 = vand.u32 %v3529, 4294901760
      %v3722 = vsub.f32 %v3529, %v3721
      %v3723 = vand.u32 %v3722, 4294901760
      %v3724 = vsub.f32 %v3722, %v3723
      %v3725 = vand.u32 %v3724, 4294901760
      %3726 = vmatpush1.msra.mxu0 %v3725
      %v3727 = vand.u32 %v3532, 4294901760
      %v3728 = vsub.f32 %v3532, %v3727
      %v3729 = vand.u32 %v3728, 4294901760
      %v3730 = vsub.f32 %v3728, %v3729
      %v3731 = vand.u32 %v3730, 4294901760
      %3732 = vmatprep.subr.mxu0 %v3731
      %v3733 = vand.u32 %v3531, 4294901760
      %v3734 = vsub.f32 %v3531, %v3733
      %v3735 = vand.u32 %v3734, 4294901760
      %v3736 = vsub.f32 %v3734, %v3735
      %v3737 = vand.u32 %v3736, 4294901760
      %3738 = vmatpush1.msra.mxu0 %v3737
      %v3739 = vand.u32 %v3534, 4294901760
      %v3740 = vsub.f32 %v3534, %v3739
      %v3741 = vand.u32 %v3740, 4294901760
      %v3742 = vsub.f32 %v3740, %v3741
      %v3743 = vand.u32 %v3742, 4294901760
      %3744 = vmatprep.subr.mxu0 %v3743
      %v3745 = vand.u32 %v3533, 4294901760
      %v3746 = vsub.f32 %v3533, %v3745
      %v3747 = vand.u32 %v3746, 4294901760
      %v3748 = vsub.f32 %v3746, %v3747
      %v3749 = vand.u32 %v3748, 4294901760
      %3750 = vmatpush1.msra.mxu0 %v3749
      %v3751 = vand.u32 %v3536, 4294901760
      %v3752 = vsub.f32 %v3536, %v3751
      %v3753 = vand.u32 %v3752, 4294901760
      %v3754 = vsub.f32 %v3752, %v3753
      %v3755 = vand.u32 %v3754, 4294901760
      %3756 = vmatprep.subr.mxu0 %v3755
      %v3757 = vand.u32 %v3535, 4294901760
      %v3758 = vsub.f32 %v3535, %v3757
      %v3759 = vand.u32 %v3758, 4294901760
      %v3760 = vsub.f32 %v3758, %v3759
      %v3761 = vand.u32 %v3760, 4294901760
      %3762 = vmatpush1.msra.mxu0 %v3761
      %v3763 = vand.u32 %v3538, 4294901760
      %v3764 = vsub.f32 %v3538, %v3763
      %v3765 = vand.u32 %v3764, 4294901760
      %v3766 = vsub.f32 %v3764, %v3765
      %v3767 = vand.u32 %v3766, 4294901760
      %3768 = vmatprep.subr.mxu0 %v3767
      %v3769 = vand.u32 %v3537, 4294901760
      %v3770 = vsub.f32 %v3537, %v3769
      %v3771 = vand.u32 %v3770, 4294901760
      %v3772 = vsub.f32 %v3770, %v3771
      %v3773 = vand.u32 %v3772, 4294901760
      %3774 = vmatpush1.msra.mxu0 %v3773
      %v3775 = vand.u32 %v3540, 4294901760
      %v3776 = vsub.f32 %v3540, %v3775
      %v3777 = vand.u32 %v3776, 4294901760
      %v3778 = vsub.f32 %v3776, %v3777
      %v3779 = vand.u32 %v3778, 4294901760
      %3780 = vmatprep.subr.mxu0 %v3779
      %v3781 = vand.u32 %v3539, 4294901760
      %v3782 = vsub.f32 %v3539, %v3781
      %v3783 = vand.u32 %v3782, 4294901760
      %v3784 = vsub.f32 %v3782, %v3783
      %v3785 = vand.u32 %v3784, 4294901760
      %3786 = vmatpush1.msra.mxu0 %v3785
      %v3787 = vand.u32 %v3542, 4294901760
      %v3788 = vsub.f32 %v3542, %v3787
      %v3789 = vand.u32 %v3788, 4294901760
      %v3790 = vsub.f32 %v3788, %v3789
      %v3791 = vand.u32 %v3790, 4294901760
      %3792 = vmatprep.subr.mxu0 %v3791
      %v3793 = vand.u32 %v3541, 4294901760
      %v3794 = vsub.f32 %v3541, %v3793
      %v3795 = vand.u32 %v3794, 4294901760
      %v3796 = vsub.f32 %v3794, %v3795
      %v3797 = vand.u32 %v3796, 4294901760
      %3798 = vmatpush1.msra.mxu0 %v3797
      %v3799 = vand.u32 %v3544, 4294901760
      %v3800 = vsub.f32 %v3544, %v3799
      %v3801 = vand.u32 %v3800, 4294901760
      %v3802 = vsub.f32 %v3800, %v3801
      %v3803 = vand.u32 %v3802, 4294901760
      %3804 = vmatprep.subr.mxu0 %v3803
      %v3805 = vand.u32 %v3543, 4294901760
      %v3806 = vsub.f32 %v3543, %v3805
      %v3807 = vand.u32 %v3806, 4294901760
      %v3808 = vsub.f32 %v3806, %v3807
      %v3809 = vand.u32 %v3808, 4294901760
      %3810 = vmatpush1.msra.mxu0 %v3809
      %v3811 = vand.u32 %v3546, 4294901760
      %v3812 = vsub.f32 %v3546, %v3811
      %v3813 = vand.u32 %v3812, 4294901760
      %v3814 = vsub.f32 %v3812, %v3813
      %v3815 = vand.u32 %v3814, 4294901760
      %3816 = vmatprep.subr.mxu0 %v3815
      %v3817 = vand.u32 %v3545, 4294901760
      %v3818 = vsub.f32 %v3545, %v3817
      %v3819 = vand.u32 %v3818, 4294901760
      %v3820 = vsub.f32 %v3818, %v3819
      %v3821 = vand.u32 %v3820, 4294901760
      %3822 = vmatpush1.msra.mxu0 %v3821
      %v3823 = vand.u32 %v3548, 4294901760
      %v3824 = vsub.f32 %v3548, %v3823
      %v3825 = vand.u32 %v3824, 4294901760
      %v3826 = vsub.f32 %v3824, %v3825
      %v3827 = vand.u32 %v3826, 4294901760
      %3828 = vmatprep.subr.mxu0 %v3827
      %v3829 = vand.u32 %v3547, 4294901760
      %v3830 = vsub.f32 %v3547, %v3829
      %v3831 = vand.u32 %v3830, 4294901760
      %v3832 = vsub.f32 %v3830, %v3831
      %v3833 = vand.u32 %v3832, 4294901760
      %3834 = vmatpush1.msra.mxu0 %v3833
      %v3835 = vand.u32 %v3550, 4294901760
      %v3836 = vsub.f32 %v3550, %v3835
      %v3837 = vand.u32 %v3836, 4294901760
      %v3838 = vsub.f32 %v3836, %v3837
      %v3839 = vand.u32 %v3838, 4294901760
      %3840 = vmatprep.subr.mxu0 %v3839
      %v3841 = vand.u32 %v3549, 4294901760
      %v3842 = vsub.f32 %v3549, %v3841
      %v3843 = vand.u32 %v3842, 4294901760
      %v3844 = vsub.f32 %v3842, %v3843
      %v3845 = vand.u32 %v3844, 4294901760
      %3846 = vmatpush1.msra.mxu0 %v3845
      %v3847 = vand.u32 %v3552, 4294901760
      %v3848 = vsub.f32 %v3552, %v3847
      %v3849 = vand.u32 %v3848, 4294901760
      %v3850 = vsub.f32 %v3848, %v3849
      %v3851 = vand.u32 %v3850, 4294901760
      %3852 = vmatprep.subr.mxu0 %v3851
      %v3853 = vand.u32 %v3551, 4294901760
      %v3854 = vsub.f32 %v3551, %v3853
      %v3855 = vand.u32 %v3854, 4294901760
      %v3856 = vsub.f32 %v3854, %v3855
      %v3857 = vand.u32 %v3856, 4294901760
      %3858 = vmatpush1.msra.mxu0 %v3857
      %v3859 = vand.u32 %v3554, 4294901760
      %v3860 = vsub.f32 %v3554, %v3859
      %v3861 = vand.u32 %v3860, 4294901760
      %v3862 = vsub.f32 %v3860, %v3861
      %v3863 = vand.u32 %v3862, 4294901760
      %3864 = vmatprep.subr.mxu0 %v3863
      %v3865 = vand.u32 %v3553, 4294901760
      %v3866 = vsub.f32 %v3553, %v3865
      %v3867 = vand.u32 %v3866, 4294901760
      %v3868 = vsub.f32 %v3866, %v3867
      %v3869 = vand.u32 %v3868, 4294901760
      %3870 = vmatpush1.msra.mxu0 %v3869
      %v3871 = vand.u32 %v3556, 4294901760
      %v3872 = vsub.f32 %v3556, %v3871
      %v3873 = vand.u32 %v3872, 4294901760
      %v3874 = vsub.f32 %v3872, %v3873
      %v3875 = vand.u32 %v3874, 4294901760
      %3876 = vmatprep.subr.mxu0 %v3875
      %v3877 = vand.u32 %v3555, 4294901760
      %v3878 = vsub.f32 %v3555, %v3877
      %v3879 = vand.u32 %v3878, 4294901760
      %v3880 = vsub.f32 %v3878, %v3879
      %v3881 = vand.u32 %v3880, 4294901760
      %3882 = vmatpush1.msra.mxu0 %v3881
      %v3883 = vand.u32 %v3558, 4294901760
      %v3884 = vsub.f32 %v3558, %v3883
      %v3885 = vand.u32 %v3884, 4294901760
      %v3886 = vsub.f32 %v3884, %v3885
      %v3887 = vand.u32 %v3886, 4294901760
      %3888 = vmatprep.subr.mxu0 %v3887
      %v3889 = vand.u32 %v3557, 4294901760
      %v3890 = vsub.f32 %v3557, %v3889
      %v3891 = vand.u32 %v3890, 4294901760
      %v3892 = vsub.f32 %v3890, %v3891
      %v3893 = vand.u32 %v3892, 4294901760
      %3894 = vmatpush1.msra.mxu0 %v3893
      %v3895 = vand.u32 %v3560, 4294901760
      %v3896 = vsub.f32 %v3560, %v3895
      %v3897 = vand.u32 %v3896, 4294901760
      %v3898 = vsub.f32 %v3896, %v3897
      %v3899 = vand.u32 %v3898, 4294901760
      %3900 = vmatprep.subr.mxu0 %v3899
      %v3901 = vand.u32 %v3559, 4294901760
      %v3902 = vsub.f32 %v3559, %v3901
      %v3903 = vand.u32 %v3902, 4294901760
      %v3904 = vsub.f32 %v3902, %v3903
      %v3905 = vand.u32 %v3904, 4294901760
      %3906 = vmatpush1.msra.mxu0 %v3905
      %v3907 = vand.u32 %v3562, 4294901760
      %v3908 = vsub.f32 %v3562, %v3907
      %v3909 = vand.u32 %v3908, 4294901760
      %v3910 = vsub.f32 %v3908, %v3909
      %v3911 = vand.u32 %v3910, 4294901760
      %3912 = vmatprep.subr.mxu0 %v3911
      %v3913 = vand.u32 %v3561, 4294901760
      %v3914 = vsub.f32 %v3561, %v3913
      %v3915 = vand.u32 %v3914, 4294901760
      %v3916 = vsub.f32 %v3914, %v3915
      %v3917 = vand.u32 %v3916, 4294901760
      %3918 = vmatpush1.msra.mxu0 %v3917
      %v3919 = vand.u32 %v3564, 4294901760
      %v3920 = vsub.f32 %v3564, %v3919
      %v3921 = vand.u32 %v3920, 4294901760
      %v3922 = vsub.f32 %v3920, %v3921
      %v3923 = vand.u32 %v3922, 4294901760
      %3924 = vmatprep.subr.mxu0 %v3923
      %v3925 = vand.u32 %v3563, 4294901760
      %v3926 = vsub.f32 %v3563, %v3925
      %v3927 = vand.u32 %v3926, 4294901760
      %v3928 = vsub.f32 %v3926, %v3927
      %v3929 = vand.u32 %v3928, 4294901760
      %3930 = vmatpush1.msra.mxu0 %v3929
      %3931 = vmatprep.subr.mxu0 0.0
      %3932 = vmatpush1.msra.mxu0 0.0
      %3933 = vmatprep.subr.mxu0 0.0
      %3934 = vmatpush1.msra.mxu0 0.0
      %3935 = vmatprep.subr.mxu0 0.0
      %3936 = vmatpush1.msra.mxu0 0.0
      %3937 = vmatprep.subr.mxu0 0.0
      %3938 = vmatpush1.msra.mxu0 0.0
      %3939 = vmatprep.subr.mxu0 0.0
      %3940 = vmatpush1.msra.mxu0 0.0
      %3941 = vmatprep.subr.mxu0 0.0
      %3942 = vmatpush1.msra.mxu0 0.0
      %3943 = vmatprep.subr.mxu0 0.0
      %3944 = vmatpush1.msra.mxu0 0.0
      %3945 = vmatprep.subr.mxu0 0.0
      %3946 = vmatpush1.msra.mxu0 0.0
      %3947 = vmatprep.subr.mxu0 0.0
      %3948 = vmatpush1.msra.mxu0 0.0
      %3949 = vmatprep.subr.mxu0 0.0
      %3950 = vmatpush1.msra.mxu0 0.0
      %3951 = vmatprep.subr.mxu0 0.0
      %3952 = vmatpush1.msra.mxu0 0.0
      %3953 = vmatprep.subr.mxu0 0.0
      %3954 = vmatpush1.msra.mxu0 0.0
      %v3955 = vand.u32 %v3568, 4294901760
      %3956 = vmatprep.mubr.f32.mxu0 %v3955
      %v3957 = vand.u32 %v3524, 4294901760
      %3958 = vmatmul.mubr.f32.gmra.mrb[0].mxu0 %v3957
      %v3959 = vpop.f32.mrb[0].mxu0
      %v3960 = vadd.f32 %v3687, %v3959
      %v3961 = vpop.f32.mrb[0].mxu0
      %v3962 = vadd.f32 %v3689, %v3961
      %3963 = vdwg.mxu0
      %v3964 = vand.u32 %v3526, 4294901760
      %v3965 = vsub.f32 %v3526, %v3964
      %3966 = vmatprep.subr.mxu0 %v3965
      %v3967 = vand.u32 %v3525, 4294901760
      %v3968 = vsub.f32 %v3525, %v3967
      %3969 = vmatpush1.msra.mxu0 %v3968
      %v3970 = vand.u32 %v3528, 4294901760
      %v3971 = vsub.f32 %v3528, %v3970
      %3972 = vmatprep.subr.mxu0 %v3971
      %v3973 = vand.u32 %v3527, 4294901760
      %v3974 = vsub.f32 %v3527, %v3973
      %3975 = vmatpush1.msra.mxu0 %v3974
      %v3976 = vand.u32 %v3530, 4294901760
      %v3977 = vsub.f32 %v3530, %v3976
      %3978 = vmatprep.subr.mxu0 %v3977
      %v3979 = vand.u32 %v3529, 4294901760
      %v3980 = vsub.f32 %v3529, %v3979
      %3981 = vmatpush1.msra.mxu0 %v3980
      %v3982 = vand.u32 %v3532, 4294901760
      %v3983 = vsub.f32 %v3532, %v3982
      %3984 = vmatprep.subr.mxu0 %v3983
      %v3985 = vand.u32 %v3531, 4294901760
      %v3986 = vsub.f32 %v3531, %v3985
      %3987 = vmatpush1.msra.mxu0 %v3986
      %v3988 = vand.u32 %v3534, 4294901760
      %v3989 = vsub.f32 %v3534, %v3988
      %3990 = vmatprep.subr.mxu0 %v3989
      %v3991 = vand.u32 %v3533, 4294901760
      %v3992 = vsub.f32 %v3533, %v3991
      %3993 = vmatpush1.msra.mxu0 %v3992
      %v3994 = vand.u32 %v3536, 4294901760
      %v3995 = vsub.f32 %v3536, %v3994
      %3996 = vmatprep.subr.mxu0 %v3995
      %v3997 = vand.u32 %v3535, 4294901760
      %v3998 = vsub.f32 %v3535, %v3997
      %3999 = vmatpush1.msra.mxu0 %v3998
      %v4000 = vand.u32 %v3538, 4294901760
      %v4001 = vsub.f32 %v3538, %v4000
      %4002 = vmatprep.subr.mxu0 %v4001
      %v4003 = vand.u32 %v3537, 4294901760
      %v4004 = vsub.f32 %v3537, %v4003
      %4005 = vmatpush1.msra.mxu0 %v4004
      %v4006 = vand.u32 %v3540, 4294901760
      %v4007 = vsub.f32 %v3540, %v4006
      %4008 = vmatprep.subr.mxu0 %v4007
      %v4009 = vand.u32 %v3539, 4294901760
      %v4010 = vsub.f32 %v3539, %v4009
      %4011 = vmatpush1.msra.mxu0 %v4010
      %v4012 = vand.u32 %v3542, 4294901760
      %v4013 = vsub.f32 %v3542, %v4012
      %4014 = vmatprep.subr.mxu0 %v4013
      %v4015 = vand.u32 %v3541, 4294901760
      %v4016 = vsub.f32 %v3541, %v4015
      %4017 = vmatpush1.msra.mxu0 %v4016
      %v4018 = vand.u32 %v3544, 4294901760
      %v4019 = vsub.f32 %v3544, %v4018
      %4020 = vmatprep.subr.mxu0 %v4019
      %v4021 = vand.u32 %v3543, 4294901760
      %v4022 = vsub.f32 %v3543, %v4021
      %4023 = vmatpush1.msra.mxu0 %v4022
      %v4024 = vand.u32 %v3546, 4294901760
      %v4025 = vsub.f32 %v3546, %v4024
      %4026 = vmatprep.subr.mxu0 %v4025
      %v4027 = vand.u32 %v3545, 4294901760
      %v4028 = vsub.f32 %v3545, %v4027
      %4029 = vmatpush1.msra.mxu0 %v4028
      %v4030 = vand.u32 %v3548, 4294901760
      %v4031 = vsub.f32 %v3548, %v4030
      %4032 = vmatprep.subr.mxu0 %v4031
      %v4033 = vand.u32 %v3547, 4294901760
      %v4034 = vsub.f32 %v3547, %v4033
      %4035 = vmatpush1.msra.mxu0 %v4034
      %v4036 = vand.u32 %v3550, 4294901760
      %v4037 = vsub.f32 %v3550, %v4036
      %4038 = vmatprep.subr.mxu0 %v4037
      %v4039 = vand.u32 %v3549, 4294901760
      %v4040 = vsub.f32 %v3549, %v4039
      %4041 = vmatpush1.msra.mxu0 %v4040
      %v4042 = vand.u32 %v3552, 4294901760
      %v4043 = vsub.f32 %v3552, %v4042
      %4044 = vmatprep.subr.mxu0 %v4043
      %v4045 = vand.u32 %v3551, 4294901760
      %v4046 = vsub.f32 %v3551, %v4045
      %4047 = vmatpush1.msra.mxu0 %v4046
      %v4048 = vand.u32 %v3554, 4294901760
      %v4049 = vsub.f32 %v3554, %v4048
      %4050 = vmatprep.subr.mxu0 %v4049
      %v4051 = vand.u32 %v3553, 4294901760
      %v4052 = vsub.f32 %v3553, %v4051
      %4053 = vmatpush1.msra.mxu0 %v4052
      %v4054 = vand.u32 %v3556, 4294901760
      %v4055 = vsub.f32 %v3556, %v4054
      %4056 = vmatprep.subr.mxu0 %v4055
      %v4057 = vand.u32 %v3555, 4294901760
      %v4058 = vsub.f32 %v3555, %v4057
      %4059 = vmatpush1.msra.mxu0 %v4058
      %v4060 = vand.u32 %v3558, 4294901760
      %v4061 = vsub.f32 %v3558, %v4060
      %4062 = vmatprep.subr.mxu0 %v4061
      %v4063 = vand.u32 %v3557, 4294901760
      %v4064 = vsub.f32 %v3557, %v4063
      %4065 = vmatpush1.msra.mxu0 %v4064
      %v4066 = vand.u32 %v3560, 4294901760
      %v4067 = vsub.f32 %v3560, %v4066
      %4068 = vmatprep.subr.mxu0 %v4067
      %v4069 = vand.u32 %v3559, 4294901760
      %v4070 = vsub.f32 %v3559, %v4069
      %4071 = vmatpush1.msra.mxu0 %v4070
      %v4072 = vand.u32 %v3562, 4294901760
      %v4073 = vsub.f32 %v3562, %v4072
      %4074 = vmatprep.subr.mxu0 %v4073
      %v4075 = vand.u32 %v3561, 4294901760
      %v4076 = vsub.f32 %v3561, %v4075
      %4077 = vmatpush1.msra.mxu0 %v4076
      %v4078 = vand.u32 %v3564, 4294901760
      %v4079 = vsub.f32 %v3564, %v4078
      %4080 = vmatprep.subr.mxu0 %v4079
      %v4081 = vand.u32 %v3563, 4294901760
      %v4082 = vsub.f32 %v3563, %v4081
      %4083 = vmatpush1.msra.mxu0 %v4082
      %4084 = vmatprep.subr.mxu0 0.0
      %4085 = vmatpush1.msra.mxu0 0.0
      %4086 = vmatprep.subr.mxu0 0.0
      %4087 = vmatpush1.msra.mxu0 0.0
      %4088 = vmatprep.subr.mxu0 0.0
      %4089 = vmatpush1.msra.mxu0 0.0
      %4090 = vmatprep.subr.mxu0 0.0
      %4091 = vmatpush1.msra.mxu0 0.0
      %4092 = vmatprep.subr.mxu0 0.0
      %4093 = vmatpush1.msra.mxu0 0.0
      %4094 = vmatprep.subr.mxu0 0.0
      %4095 = vmatpush1.msra.mxu0 0.0
      %4096 = vmatprep.subr.mxu0 0.0
      %4097 = vmatpush1.msra.mxu0 0.0
      %4098 = vmatprep.subr.mxu0 0.0
      %4099 = vmatpush1.msra.mxu0 0.0
      %4100 = vmatprep.subr.mxu0 0.0
      %4101 = vmatpush1.msra.mxu0 0.0
      %4102 = vmatprep.subr.mxu0 0.0
      %4103 = vmatpush1.msra.mxu0 0.0
      %4104 = vmatprep.subr.mxu0 0.0
      %4105 = vmatpush1.msra.mxu0 0.0
      %4106 = vmatprep.subr.mxu0 0.0
      %4107 = vmatpush1.msra.mxu0 0.0
      %v4108 = vand.u32 %v3568, 4294901760
      %v4109 = vsub.f32 %v3568, %v4108
      %4110 = vmatprep.mubr.f32.mxu0 %v4109
      %v4111 = vand.u32 %v3524, 4294901760
      %v4112 = vsub.f32 %v3524, %v4111
      %4113 = vmatmul.mubr.f32.gmra.mrb[0].mxu0 %v4112
      %v4114 = vpop.f32.mrb[0].mxu0
      %v4115 = vadd.f32 %v3960, %v4114
      %v4116 = vpop.f32.mrb[0].mxu0
      %v4117 = vadd.f32 %v3962, %v4116
      %4118 = vdwg.mxu0
      %v4119 = vand.u32 %v3526, 4294901760
      %4120 = vmatprep.subr.mxu0 %v4119
      %v4121 = vand.u32 %v3525, 4294901760
      %4122 = vmatpush1.msra.mxu0 %v4121
      %v4123 = vand.u32 %v3528, 4294901760
      %4124 = vmatprep.subr.mxu0 %v4123
      %v4125 = vand.u32 %v3527, 4294901760
      %4126 = vmatpush1.msra.mxu0 %v4125
      %v4127 = vand.u32 %v3530, 4294901760
      %4128 = vmatprep.subr.mxu0 %v4127
      %v4129 = vand.u32 %v3529, 4294901760
      %4130 = vmatpush1.msra.mxu0 %v4129
      %v4131 = vand.u32 %v3532, 4294901760
      %4132 = vmatprep.subr.mxu0 %v4131
      %v4133 = vand.u32 %v3531, 4294901760
      %4134 = vmatpush1.msra.mxu0 %v4133
      %v4135 = vand.u32 %v3534, 4294901760
      %4136 = vmatprep.subr.mxu0 %v4135
      %v4137 = vand.u32 %v3533, 4294901760
      %4138 = vmatpush1.msra.mxu0 %v4137
      %v4139 = vand.u32 %v3536, 4294901760
      %4140 = vmatprep.subr.mxu0 %v4139
      %v4141 = vand.u32 %v3535, 4294901760
      %4142 = vmatpush1.msra.mxu0 %v4141
      %v4143 = vand.u32 %v3538, 4294901760
      %4144 = vmatprep.subr.mxu0 %v4143
      %v4145 = vand.u32 %v3537, 4294901760
      %4146 = vmatpush1.msra.mxu0 %v4145
      %v4147 = vand.u32 %v3540, 4294901760
      %4148 = vmatprep.subr.mxu0 %v4147
      %v4149 = vand.u32 %v3539, 4294901760
      %4150 = vmatpush1.msra.mxu0 %v4149
      %v4151 = vand.u32 %v3542, 4294901760
      %4152 = vmatprep.subr.mxu0 %v4151
      %v4153 = vand.u32 %v3541, 4294901760
      %4154 = vmatpush1.msra.mxu0 %v4153
      %v4155 = vand.u32 %v3544, 4294901760
      %4156 = vmatprep.subr.mxu0 %v4155
      %v4157 = vand.u32 %v3543, 4294901760
      %4158 = vmatpush1.msra.mxu0 %v4157
      %v4159 = vand.u32 %v3546, 4294901760
      %4160 = vmatprep.subr.mxu0 %v4159
      %v4161 = vand.u32 %v3545, 4294901760
      %4162 = vmatpush1.msra.mxu0 %v4161
      %v4163 = vand.u32 %v3548, 4294901760
      %4164 = vmatprep.subr.mxu0 %v4163
      %v4165 = vand.u32 %v3547, 4294901760
      %4166 = vmatpush1.msra.mxu0 %v4165
      %v4167 = vand.u32 %v3550, 4294901760
      %4168 = vmatprep.subr.mxu0 %v4167
      %v4169 = vand.u32 %v3549, 4294901760
      %4170 = vmatpush1.msra.mxu0 %v4169
      %v4171 = vand.u32 %v3552, 4294901760
      %4172 = vmatprep.subr.mxu0 %v4171
      %v4173 = vand.u32 %v3551, 4294901760
      %4174 = vmatpush1.msra.mxu0 %v4173
      %v4175 = vand.u32 %v3554, 4294901760
      %4176 = vmatprep.subr.mxu0 %v4175
      %v4177 = vand.u32 %v3553, 4294901760
      %4178 = vmatpush1.msra.mxu0 %v4177
      %v4179 = vand.u32 %v3556, 4294901760
      %4180 = vmatprep.subr.mxu0 %v4179
      %v4181 = vand.u32 %v3555, 4294901760
      %4182 = vmatpush1.msra.mxu0 %v4181
      %v4183 = vand.u32 %v3558, 4294901760
      %4184 = vmatprep.subr.mxu0 %v4183
      %v4185 = vand.u32 %v3557, 4294901760
      %4186 = vmatpush1.msra.mxu0 %v4185
      %v4187 = vand.u32 %v3560, 4294901760
      %4188 = vmatprep.subr.mxu0 %v4187
      %v4189 = vand.u32 %v3559, 4294901760
      %4190 = vmatpush1.msra.mxu0 %v4189
      %v4191 = vand.u32 %v3562, 4294901760
      %4192 = vmatprep.subr.mxu0 %v4191
      %v4193 = vand.u32 %v3561, 4294901760
      %4194 = vmatpush1.msra.mxu0 %v4193
      %v4195 = vand.u32 %v3564, 4294901760
      %4196 = vmatprep.subr.mxu0 %v4195
      %v4197 = vand.u32 %v3563, 4294901760
      %4198 = vmatpush1.msra.mxu0 %v4197
      %4199 = vmatprep.subr.mxu0 0.0
      %4200 = vmatpush1.msra.mxu0 0.0
      %4201 = vmatprep.subr.mxu0 0.0
      %4202 = vmatpush1.msra.mxu0 0.0
      %4203 = vmatprep.subr.mxu0 0.0
      %4204 = vmatpush1.msra.mxu0 0.0
      %4205 = vmatprep.subr.mxu0 0.0
      %4206 = vmatpush1.msra.mxu0 0.0
      %4207 = vmatprep.subr.mxu0 0.0
      %4208 = vmatpush1.msra.mxu0 0.0
      %4209 = vmatprep.subr.mxu0 0.0
      %4210 = vmatpush1.msra.mxu0 0.0
      %4211 = vmatprep.subr.mxu0 0.0
      %4212 = vmatpush1.msra.mxu0 0.0
      %4213 = vmatprep.subr.mxu0 0.0
      %4214 = vmatpush1.msra.mxu0 0.0
      %4215 = vmatprep.subr.mxu0 0.0
      %4216 = vmatpush1.msra.mxu0 0.0
      %4217 = vmatprep.subr.mxu0 0.0
      %4218 = vmatpush1.msra.mxu0 0.0
      %4219 = vmatprep.subr.mxu0 0.0
      %4220 = vmatpush1.msra.mxu0 0.0
      %4221 = vmatprep.subr.mxu0 0.0
      %4222 = vmatpush1.msra.mxu0 0.0
      %v4223 = vand.u32 %v3568, 4294901760
      %v4224 = vsub.f32 %v3568, %v4223
      %v4225 = vand.u32 %v4224, 4294901760
      %4226 = vmatprep.mubr.f32.mxu0 %v4225
      %v4227 = vand.u32 %v3524, 4294901760
      %v4228 = vsub.f32 %v3524, %v4227
      %v4229 = vand.u32 %v4228, 4294901760
      %4230 = vmatmul.mubr.f32.gmra.mrb[0].mxu0 %v4229
      %v4231 = vpop.f32.mrb[0].mxu0
      %v4232 = vadd.f32 %v4115, %v4231
      %v4233 = vpop.f32.mrb[0].mxu0
      %v4234 = vadd.f32 %v4117, %v4233
      %4235 = vdwg.mxu0
      %v4236 = vand.u32 %v3526, 4294901760
      %v4237 = vsub.f32 %v3526, %v4236
      %v4238 = vand.u32 %v4237, 4294901760
      %4239 = vmatprep.subr.mxu0 %v4238
      %v4240 = vand.u32 %v3525, 4294901760
      %v4241 = vsub.f32 %v3525, %v4240
      %v4242 = vand.u32 %v4241, 4294901760
      %4243 = vmatpush1.msra.mxu0 %v4242
      %v4244 = vand.u32 %v3528, 4294901760
      %v4245 = vsub.f32 %v3528, %v4244
      %v4246 = vand.u32 %v4245, 4294901760
      %4247 = vmatprep.subr.mxu0 %v4246
      %v4248 = vand.u32 %v3527, 4294901760
      %v4249 = vsub.f32 %v3527, %v4248
      %v4250 = vand.u32 %v4249, 4294901760
      %4251 = vmatpush1.msra.mxu0 %v4250
      %v4252 = vand.u32 %v3530, 4294901760
      %v4253 = vsub.f32 %v3530, %v4252
      %v4254 = vand.u32 %v4253, 4294901760
      %4255 = vmatprep.subr.mxu0 %v4254
      %v4256 = vand.u32 %v3529, 4294901760
      %v4257 = vsub.f32 %v3529, %v4256
      %v4258 = vand.u32 %v4257, 4294901760
      %4259 = vmatpush1.msra.mxu0 %v4258
      %v4260 = vand.u32 %v3532, 4294901760
      %v4261 = vsub.f32 %v3532, %v4260
      %v4262 = vand.u32 %v4261, 4294901760
      %4263 = vmatprep.subr.mxu0 %v4262
      %v4264 = vand.u32 %v3531, 4294901760
      %v4265 = vsub.f32 %v3531, %v4264
      %v4266 = vand.u32 %v4265, 4294901760
      %4267 = vmatpush1.msra.mxu0 %v4266
      %v4268 = vand.u32 %v3534, 4294901760
      %v4269 = vsub.f32 %v3534, %v4268
      %v4270 = vand.u32 %v4269, 4294901760
      %4271 = vmatprep.subr.mxu0 %v4270
      %v4272 = vand.u32 %v3533, 4294901760
      %v4273 = vsub.f32 %v3533, %v4272
      %v4274 = vand.u32 %v4273, 4294901760
      %4275 = vmatpush1.msra.mxu0 %v4274
      %v4276 = vand.u32 %v3536, 4294901760
      %v4277 = vsub.f32 %v3536, %v4276
      %v4278 = vand.u32 %v4277, 4294901760
      %4279 = vmatprep.subr.mxu0 %v4278
      %v4280 = vand.u32 %v3535, 4294901760
      %v4281 = vsub.f32 %v3535, %v4280
      %v4282 = vand.u32 %v4281, 4294901760
      %4283 = vmatpush1.msra.mxu0 %v4282
      %v4284 = vand.u32 %v3538, 4294901760
      %v4285 = vsub.f32 %v3538, %v4284
      %v4286 = vand.u32 %v4285, 4294901760
      %4287 = vmatprep.subr.mxu0 %v4286
      %v4288 = vand.u32 %v3537, 4294901760
      %v4289 = vsub.f32 %v3537, %v4288
      %v4290 = vand.u32 %v4289, 4294901760
      %4291 = vmatpush1.msra.mxu0 %v4290
      %v4292 = vand.u32 %v3540, 4294901760
      %v4293 = vsub.f32 %v3540, %v4292
      %v4294 = vand.u32 %v4293, 4294901760
      %4295 = vmatprep.subr.mxu0 %v4294
      %v4296 = vand.u32 %v3539, 4294901760
      %v4297 = vsub.f32 %v3539, %v4296
      %v4298 = vand.u32 %v4297, 4294901760
      %4299 = vmatpush1.msra.mxu0 %v4298
      %v4300 = vand.u32 %v3542, 4294901760
      %v4301 = vsub.f32 %v3542, %v4300
      %v4302 = vand.u32 %v4301, 4294901760
      %4303 = vmatprep.subr.mxu0 %v4302
      %v4304 = vand.u32 %v3541, 4294901760
      %v4305 = vsub.f32 %v3541, %v4304
      %v4306 = vand.u32 %v4305, 4294901760
      %4307 = vmatpush1.msra.mxu0 %v4306
      %v4308 = vand.u32 %v3544, 4294901760
      %v4309 = vsub.f32 %v3544, %v4308
      %v4310 = vand.u32 %v4309, 4294901760
      %4311 = vmatprep.subr.mxu0 %v4310
      %v4312 = vand.u32 %v3543, 4294901760
      %v4313 = vsub.f32 %v3543, %v4312
      %v4314 = vand.u32 %v4313, 4294901760
      %4315 = vmatpush1.msra.mxu0 %v4314
      %v4316 = vand.u32 %v3546, 4294901760
      %v4317 = vsub.f32 %v3546, %v4316
      %v4318 = vand.u32 %v4317, 4294901760
      %4319 = vmatprep.subr.mxu0 %v4318
      %v4320 = vand.u32 %v3545, 4294901760
      %v4321 = vsub.f32 %v3545, %v4320
      %v4322 = vand.u32 %v4321, 4294901760
      %4323 = vmatpush1.msra.mxu0 %v4322
      %v4324 = vand.u32 %v3548, 4294901760
      %v4325 = vsub.f32 %v3548, %v4324
      %v4326 = vand.u32 %v4325, 4294901760
      %4327 = vmatprep.subr.mxu0 %v4326
      %v4328 = vand.u32 %v3547, 4294901760
      %v4329 = vsub.f32 %v3547, %v4328
      %v4330 = vand.u32 %v4329, 4294901760
      %4331 = vmatpush1.msra.mxu0 %v4330
      %v4332 = vand.u32 %v3550, 4294901760
      %v4333 = vsub.f32 %v3550, %v4332
      %v4334 = vand.u32 %v4333, 4294901760
      %4335 = vmatprep.subr.mxu0 %v4334
      %v4336 = vand.u32 %v3549, 4294901760
      %v4337 = vsub.f32 %v3549, %v4336
      %v4338 = vand.u32 %v4337, 4294901760
      %4339 = vmatpush1.msra.mxu0 %v4338
      %v4340 = vand.u32 %v3552, 4294901760
      %v4341 = vsub.f32 %v3552, %v4340
      %v4342 = vand.u32 %v4341, 4294901760
      %4343 = vmatprep.subr.mxu0 %v4342
      %v4344 = vand.u32 %v3551, 4294901760
      %v4345 = vsub.f32 %v3551, %v4344
      %v4346 = vand.u32 %v4345, 4294901760
      %4347 = vmatpush1.msra.mxu0 %v4346
      %v4348 = vand.u32 %v3554, 4294901760
      %v4349 = vsub.f32 %v3554, %v4348
      %v4350 = vand.u32 %v4349, 4294901760
      %4351 = vmatprep.subr.mxu0 %v4350
      %v4352 = vand.u32 %v3553, 4294901760
      %v4353 = vsub.f32 %v3553, %v4352
      %v4354 = vand.u32 %v4353, 4294901760
      %4355 = vmatpush1.msra.mxu0 %v4354
      %v4356 = vand.u32 %v3556, 4294901760
      %v4357 = vsub.f32 %v3556, %v4356
      %v4358 = vand.u32 %v4357, 4294901760
      %4359 = vmatprep.subr.mxu0 %v4358
      %v4360 = vand.u32 %v3555, 4294901760
      %v4361 = vsub.f32 %v3555, %v4360
      %v4362 = vand.u32 %v4361, 4294901760
      %4363 = vmatpush1.msra.mxu0 %v4362
      %v4364 = vand.u32 %v3558, 4294901760
      %v4365 = vsub.f32 %v3558, %v4364
      %v4366 = vand.u32 %v4365, 4294901760
      %4367 = vmatprep.subr.mxu0 %v4366
      %v4368 = vand.u32 %v3557, 4294901760
      %v4369 = vsub.f32 %v3557, %v4368
      %v4370 = vand.u32 %v4369, 4294901760
      %4371 = vmatpush1.msra.mxu0 %v4370
      %v4372 = vand.u32 %v3560, 4294901760
      %v4373 = vsub.f32 %v3560, %v4372
      %v4374 = vand.u32 %v4373, 4294901760
      %4375 = vmatprep.subr.mxu0 %v4374
      %v4376 = vand.u32 %v3559, 4294901760
      %v4377 = vsub.f32 %v3559, %v4376
      %v4378 = vand.u32 %v4377, 4294901760
      %4379 = vmatpush1.msra.mxu0 %v4378
      %v4380 = vand.u32 %v3562, 4294901760
      %v4381 = vsub.f32 %v3562, %v4380
      %v4382 = vand.u32 %v4381, 4294901760
      %4383 = vmatprep.subr.mxu0 %v4382
      %v4384 = vand.u32 %v3561, 4294901760
      %v4385 = vsub.f32 %v3561, %v4384
      %v4386 = vand.u32 %v4385, 4294901760
      %4387 = vmatpush1.msra.mxu0 %v4386
      %v4388 = vand.u32 %v3564, 4294901760
      %v4389 = vsub.f32 %v3564, %v4388
      %v4390 = vand.u32 %v4389, 4294901760
      %4391 = vmatprep.subr.mxu0 %v4390
      %v4392 = vand.u32 %v3563, 4294901760
      %v4393 = vsub.f32 %v3563, %v4392
      %v4394 = vand.u32 %v4393, 4294901760
      %4395 = vmatpush1.msra.mxu0 %v4394
      %4396 = vmatprep.subr.mxu0 0.0
      %4397 = vmatpush1.msra.mxu0 0.0
      %4398 = vmatprep.subr.mxu0 0.0
      %4399 = vmatpush1.msra.mxu0 0.0
      %4400 = vmatprep.subr.mxu0 0.0
      %4401 = vmatpush1.msra.mxu0 0.0
      %4402 = vmatprep.subr.mxu0 0.0
      %4403 = vmatpush1.msra.mxu0 0.0
      %4404 = vmatprep.subr.mxu0 0.0
      %4405 = vmatpush1.msra.mxu0 0.0
      %4406 = vmatprep.subr.mxu0 0.0
      %4407 = vmatpush1.msra.mxu0 0.0
      %4408 = vmatprep.subr.mxu0 0.0
      %4409 = vmatpush1.msra.mxu0 0.0
      %4410 = vmatprep.subr.mxu0 0.0
      %4411 = vmatpush1.msra.mxu0 0.0
      %4412 = vmatprep.subr.mxu0 0.0
      %4413 = vmatpush1.msra.mxu0 0.0
      %4414 = vmatprep.subr.mxu0 0.0
      %4415 = vmatpush1.msra.mxu0 0.0
      %4416 = vmatprep.subr.mxu0 0.0
      %4417 = vmatpush1.msra.mxu0 0.0
      %4418 = vmatprep.subr.mxu0 0.0
      %4419 = vmatpush1.msra.mxu0 0.0
      %v4420 = vand.u32 %v3568, 4294901760
      %4421 = vmatprep.mubr.f32.mxu0 %v4420
      %v4422 = vand.u32 %v3524, 4294901760
      %4423 = vmatmul.mubr.f32.gmra.mrb[0].mxu0 %v4422
      %v4424 = vpop.f32.mrb[0].mxu0
      %v4425 = vadd.f32 %v4232, %v4424
      %v4426 = vpop.f32.mrb[0].mxu0
      %v4427 = vadd.f32 %v4234, %v4426
      %4428 = vdwg.mxu0
      %v4429 = vand.u32 %v3526, 4294901760
      %4430 = vmatprep.subr.mxu0 %v4429
      %v4431 = vand.u32 %v3525, 4294901760
      %4432 = vmatpush1.msra.mxu0 %v4431
      %v4433 = vand.u32 %v3528, 4294901760
      %4434 = vmatprep.subr.mxu0 %v4433
      %v4435 = vand.u32 %v3527, 4294901760
      %4436 = vmatpush1.msra.mxu0 %v4435
      %v4437 = vand.u32 %v3530, 4294901760
      %4438 = vmatprep.subr.mxu0 %v4437
      %v4439 = vand.u32 %v3529, 4294901760
      %4440 = vmatpush1.msra.mxu0 %v4439
      %v4441 = vand.u32 %v3532, 4294901760
      %4442 = vmatprep.subr.mxu0 %v4441
      %v4443 = vand.u32 %v3531, 4294901760
      %4444 = vmatpush1.msra.mxu0 %v4443
      %v4445 = vand.u32 %v3534, 4294901760
      %4446 = vmatprep.subr.mxu0 %v4445
      %v4447 = vand.u32 %v3533, 4294901760
      %4448 = vmatpush1.msra.mxu0 %v4447
      %v4449 = vand.u32 %v3536, 4294901760
      %4450 = vmatprep.subr.mxu0 %v4449
      %v4451 = vand.u32 %v3535, 4294901760
      %4452 = vmatpush1.msra.mxu0 %v4451
      %v4453 = vand.u32 %v3538, 4294901760
      %4454 = vmatprep.subr.mxu0 %v4453
      %v4455 = vand.u32 %v3537, 4294901760
      %4456 = vmatpush1.msra.mxu0 %v4455
      %v4457 = vand.u32 %v3540, 4294901760
      %4458 = vmatprep.subr.mxu0 %v4457
      %v4459 = vand.u32 %v3539, 4294901760
      %4460 = vmatpush1.msra.mxu0 %v4459
      %v4461 = vand.u32 %v3542, 4294901760
      %4462 = vmatprep.subr.mxu0 %v4461
      %v4463 = vand.u32 %v3541, 4294901760
      %4464 = vmatpush1.msra.mxu0 %v4463
      %v4465 = vand.u32 %v3544, 4294901760
      %4466 = vmatprep.subr.mxu0 %v4465
      %v4467 = vand.u32 %v3543, 4294901760
      %4468 = vmatpush1.msra.mxu0 %v4467
      %v4469 = vand.u32 %v3546, 4294901760
      %4470 = vmatprep.subr.mxu0 %v4469
      %v4471 = vand.u32 %v3545, 4294901760
      %4472 = vmatpush1.msra.mxu0 %v4471
      %v4473 = vand.u32 %v3548, 4294901760
      %4474 = vmatprep.subr.mxu0 %v4473
      %v4475 = vand.u32 %v3547, 4294901760
      %4476 = vmatpush1.msra.mxu0 %v4475
      %v4477 = vand.u32 %v3550, 4294901760
      %4478 = vmatprep.subr.mxu0 %v4477
      %v4479 = vand.u32 %v3549, 4294901760
      %4480 = vmatpush1.msra.mxu0 %v4479
      %v4481 = vand.u32 %v3552, 4294901760
      %4482 = vmatprep.subr.mxu0 %v4481
      %v4483 = vand.u32 %v3551, 4294901760
      %4484 = vmatpush1.msra.mxu0 %v4483
      %v4485 = vand.u32 %v3554, 4294901760
      %4486 = vmatprep.subr.mxu0 %v4485
      %v4487 = vand.u32 %v3553, 4294901760
      %4488 = vmatpush1.msra.mxu0 %v4487
      %v4489 = vand.u32 %v3556, 4294901760
      %4490 = vmatprep.subr.mxu0 %v4489
      %v4491 = vand.u32 %v3555, 4294901760
      %4492 = vmatpush1.msra.mxu0 %v4491
      %v4493 = vand.u32 %v3558, 4294901760
      %4494 = vmatprep.subr.mxu0 %v4493
      %v4495 = vand.u32 %v3557, 4294901760
      %4496 = vmatpush1.msra.mxu0 %v4495
      %v4497 = vand.u32 %v3560, 4294901760
      %4498 = vmatprep.subr.mxu0 %v4497
      %v4499 = vand.u32 %v3559, 4294901760
      %4500 = vmatpush1.msra.mxu0 %v4499
      %v4501 = vand.u32 %v3562, 4294901760
      %4502 = vmatprep.subr.mxu0 %v4501
      %v4503 = vand.u32 %v3561, 4294901760
      %4504 = vmatpush1.msra.mxu0 %v4503
      %v4505 = vand.u32 %v3564, 4294901760
      %4506 = vmatprep.subr.mxu0 %v4505
      %v4507 = vand.u32 %v3563, 4294901760
      %4508 = vmatpush1.msra.mxu0 %v4507
      %4509 = vmatprep.subr.mxu0 0.0
      %4510 = vmatpush1.msra.mxu0 0.0
      %4511 = vmatprep.subr.mxu0 0.0
      %4512 = vmatpush1.msra.mxu0 0.0
      %4513 = vmatprep.subr.mxu0 0.0
      %4514 = vmatpush1.msra.mxu0 0.0
      %4515 = vmatprep.subr.mxu0 0.0
      %4516 = vmatpush1.msra.mxu0 0.0
      %4517 = vmatprep.subr.mxu0 0.0
      %4518 = vmatpush1.msra.mxu0 0.0
      %4519 = vmatprep.subr.mxu0 0.0
      %4520 = vmatpush1.msra.mxu0 0.0
      %4521 = vmatprep.subr.mxu0 0.0
      %4522 = vmatpush1.msra.mxu0 0.0
      %4523 = vmatprep.subr.mxu0 0.0
      %4524 = vmatpush1.msra.mxu0 0.0
      %4525 = vmatprep.subr.mxu0 0.0
      %4526 = vmatpush1.msra.mxu0 0.0
      %4527 = vmatprep.subr.mxu0 0.0
      %4528 = vmatpush1.msra.mxu0 0.0
      %4529 = vmatprep.subr.mxu0 0.0
      %4530 = vmatpush1.msra.mxu0 0.0
      %4531 = vmatprep.subr.mxu0 0.0
      %4532 = vmatpush1.msra.mxu0 0.0
      %v4533 = vand.u32 %v3568, 4294901760
      %4534 = vmatprep.mubr.f32.mxu0 %v4533
      %v4535 = vand.u32 %v3524, 4294901760
      %4536 = vmatmul.mubr.f32.gmra.mrb[0].mxu0 %v4535
      %v4537 = vpop.f32.mrb[0].mxu0
      %v4538 = vadd.f32 %v4425, %v4537
      %v4539 = vpop.f32.mrb[0].mxu0
      %v4540 = vadd.f32 %v4427, %v4539
      %4541 = vdwg.mxu0
      %v4542 = vsel %vm511, %v4538, 0.0
      %v4543 = vsel %vm511, %v4540, 0.0
      %v4544 = vadd.f32 %v4542, %v4543
      %4545 = vadd.xlane.f32.xlu0 %v4544
      %v4546 = vpop.xlane.xlu0 %4545
      %v4547 = vrot.slane %v4546, 4
      %v4548 = vadd.f32 %v4546, %v4547
      %v4549 = vrot.slane %v4548, 2
      %v4550 = vadd.f32 %v4548, %v4549
      %v4551 = vrot.slane %v4550, 1
      %v4552 = vadd.f32 %v4550, %v4551
      %s4553 = vtos %v4552
      %v4554 = vmul.f32 %v4538, %v4538
      %v4555 = vmul.f32 %v4540, %v4540
      %v4556 = vsel %vm511, %v4554, 0.0
      %v4557 = vsel %vm511, %v4555, 0.0
      %v4558 = vadd.f32 %v4556, %v4557
      %4559 = vadd.xlane.f32.xlu0 %v4558
      %v4560 = vpop.xlane.xlu0 %4559
      %v4561 = vrot.slane %v4560, 4
      %v4562 = vadd.f32 %v4560, %v4561
      %v4563 = vrot.slane %v4562, 2
      %v4564 = vadd.f32 %v4562, %v4563
      %v4565 = vrot.slane %v4564, 1
      %v4566 = vadd.f32 %v4564, %v4565
      %s4567 = vtos %v4566
      %s4568 = smul.f32 %s4553, 0.0009765625
      %s4569 = smul.f32 %s4567, 0.0009765625
      %s4570 = smul.f32 %s4568, %s4568
      %s4571 = ssub.f32 %s4569, %s4570
      %s4572 = sadd.f32 %s4571, 1e-05
      %v4573 = vstv %s4572
      %v4574 = vrsqrt.pop %v4573
      %s4575 = vtos %v4574
      %s4576 = scalar_lea.vmem %s6, 12
      %v4577 = vld [vmem:[%s4576] sm:$0xf]
      %v4578 = vstv %s4575
      %v4579 = vmul.f32 %v4577, %v4578
      %s4580 = scalar_lea.vmem %s7, 12
      %v4581 = vld [vmem:[%s4580] sm:$0xf]
      %v4582 = vstv %s4568
      %v4583 = vmul.f32 %v4582, %v4579
      %v4584 = vsub.f32 %v4581, %v4583
      %4586 = vset.pattern.permute.xlu0 0
      %4587 = vperm.xlu0 %4586, %v4579
      %v4588 = vpop.permute.xlu0 %4587
      %v4590 = vmul.f32 %v4538, %v4588
      %v4591 = vmul.f32 %v4540, %v4588
      %4593 = vset.pattern.permute.xlu0 0
      %4594 = vperm.xlu0 %4593, %v4584
      %v4595 = vpop.permute.xlu0 %4594
      %v4597 = vadd.f32 %v4590, %v4595
      %v4598 = vadd.f32 %v4591, %v4595
      %v4599 = vmin.f32 %v4597, 0.0
      %v4600 = vmin.f32 %v4598, 0.0
      %vm4601 = vcmp.gt.f32.partialorder %v4597, 0.0
      %vm4602 = vcmp.gt.f32.partialorder %v4598, 0.0
      %v4603 = vmul.f32 %v4599, 1.442695
      %v4604 = vpow.pop %v4603
      %v4605 = vmul.f32 %v4600, 1.442695
      %v4606 = vpow.pop %v4605
      %v4607 = vsub.f32 %v4604, 1.0
      %v4608 = vsub.f32 %v4606, 1.0
      %v4609 = vsel %vm4601, %v4597, %v4607
      %v4610 = vsel %vm4602, %v4598, %v4608
      %v4613 = vcombine.low %v4609, %v4610
      %4615 = vst [vmem:[%s305] sm:$0xff] %v4613
      %p4616 = scmp.lt.s32.totalorder %s19, 1
      %s4617 = scalar_select %p4616, %s19, 1
      %s4618 = smul.addr %s4617, 2
      %s4619 = smul.addr %s4618, 4
      %s4620 = scalar_lea.vmem %s8, %s4619
      // Predicated region
      $region53: #{dense_block_no_out_cat.1} parent=51 // pred_check
        %p4621 = pneg %p210
      $region54: #{dense_block_no_out_cat.1} parent=51 // pred_check_branch
        %4623 = sbr.rel (%p4621) target = $region56
      $region55: #{dense_block_no_out_cat.1} parent=51 // pred_region
        _
      $region56: #{dense_block_no_out_cat.1} parent=51 // pred_fallthru
        _
    $region52: #{dense_block_no_out_cat.1} parent=5 // pred_fallthru
      _
    %p4624 = scmp.le.s32.totalorder 2, %s14
    // Predicated region
    $region57: #{dense_block_no_out_cat.1} parent=5 // pred_check
      %p4625 = pneg %p4624
    $region58: #{dense_block_no_out_cat.1} parent=5 // pred_check_branch
      %4627 = sbr.rel (%p4625) target = $region60
    $region59: #{dense_block_no_out_cat.1} parent=5 // pred_region
      %s4628 = ssub.s32 %s14, 2
      // Predicated region
      $region61: #{dense_block_no_out_cat.1} parent=59 // pred_check
        %p4629 = pneg %p216
      $region62: #{dense_block_no_out_cat.1} parent=59 // pred_check_branch
        %4631 = sbr.rel (%p4629) target = $region64
      $region63: #{dense_block_no_out_cat.1} parent=59 // pred_region
        %p4632 = scmp.lt.s32.totalorder %s20, 1
        %s4633 = scalar_select %p4632, %s20, 1
        %s4634 = smul.addr %s4633, 2
        %s4635 = smul.addr %s4634, 4
        %s4636 = scalar_lea.vmem %s8, %s4635
      $region64: #{dense_block_no_out_cat.1} parent=59 // pred_fallthru
        _
    $region60: #{dense_block_no_out_cat.1} parent=5 // pred_fallthru
      _
  $region6: #{dense_block_no_out_cat.1} parent=0 // loop_footer
    %s18 = sadd.s32 1, %s14
  $region7: #{dense_block_no_out_cat.1} parent=0 // loop_footer_branch
    %13 = sbr.rel target = $region3
  $region8: #{dense_block_no_out_cat.1} parent=0 // loop_exit
    _

</llo_original>
